<compile_context>
chip_gen: v7x
topology: tpu7x:2x2x1
jax: 0.10.0
libtpu: 0.0.40
codegen_flags: <defaults>
</compile_context>

<pallas_src>
import functools

import jax
import jax.numpy as jnp
import numpy as np
from jax.experimental import pallas as pl
from jax.experimental.pallas import tpu as pltpu

BN_EPS = 1e-3          # matches nn.BatchNorm1d(..., eps=0.001)
MAX_FILTERS = 128

_ACTS = {
    "id": lambda v: v,
    "relu": lambda v: jnp.maximum(v, 0.0),
    "leaky": lambda v: jnp.where(v > 0, v, 0.2 * v),   # LeakyReLU(0.2)
    "sigmoid": jax.nn.sigmoid,
}

_VMEM = pl.BlockSpec(memory_space=pltpu.MemorySpace.VMEM)
# Usage is only a few MB; limit set explicitly for cross-generation portability.
_CPARAMS = pltpu.CompilerParams(vmem_limit_bytes=32 * 1024 * 1024)


# ----------------------------------------------------------------------------
# Pallas kernels
# ----------------------------------------------------------------------------
def _matmul_bias_act_kernel(x_ref, w_ref, b_ref, o_ref, *, act):
    """o = act(x @ w + b).  BatchNorm scale/shift are pre-folded into w/b."""
    y = jnp.dot(x_ref[...], w_ref[...], preferred_element_type=jnp.float32)
    o_ref[...] = act(y + b_ref[...])


def _fc_head_kernel(flat_ref, eps_ref, w1_ref, b1_ref, wml_ref, bml_ref,
                    wdec_ref, bdec_ref, sdec_ref, tdec_ref,
                    wp1_ref, bp1_ref, wp2_ref, bp2_ref, wp3_ref, bp3_ref,
                    mean_ref, logvar_ref, z_ref, dec_ref, yhat_ref, *, z_n):
    """Fused FC head: fc1+sigmoid -> [mean|log_var] -> reparameterize ->
    decoder fc+ReLU -> decoder BatchNorm(128) affine -> property predictor."""
    f32 = jnp.float32
    # encoder FC head
    x1 = jax.nn.sigmoid(
        jnp.dot(flat_ref[...], w1_ref[...], preferred_element_type=f32) + b1_ref[...])
    ml = jnp.dot(x1, wml_ref[...], preferred_element_type=f32) + bml_ref[...]
    mean = ml[:, :z_n]
    log_var = ml[:, z_n:]
    # reparameterize (eps supplied from host)
    z = eps_ref[...] * jnp.exp(0.5 * log_var) + mean
    # decoder fc + ReLU, then folded BatchNorm1d(max_filters) as a per-column affine
    dec = jnp.maximum(
        jnp.dot(z, wdec_ref[...], preferred_element_type=f32) + bdec_ref[...], 0.0)
    dec = dec * sdec_ref[...] + tdec_ref[...]
    # property predictor: ReLU -> Linear -> ReLU -> Linear -> ReLU -> Linear -> Sigmoid
    y = jnp.maximum(mean, 0.0)
    y = jnp.maximum(jnp.dot(y, wp1_ref[...], preferred_element_type=f32) + bp1_ref[...], 0.0)
    y = jnp.maximum(jnp.dot(y, wp2_ref[...], preferred_element_type=f32) + bp2_ref[...], 0.0)
    y_hat = jax.nn.sigmoid(
        jnp.dot(y, wp3_ref[...], preferred_element_type=f32) + bp3_ref[...])

    mean_ref[...] = mean
    logvar_ref[...] = log_var
    z_ref[...] = z
    dec_ref[...] = dec
    yhat_ref[...] = y_hat


# ----------------------------------------------------------------------------
# Pallas wrappers
# ----------------------------------------------------------------------------
def matmul_bias_act(x, w, b_row, act="id"):
    m = x.shape[0]
    nf = w.shape[1]
    return pl.pallas_call(
        functools.partial(_matmul_bias_act_kernel, act=_ACTS[act]),
        out_shape=jax.ShapeDtypeStruct((m, nf), jnp.float32),
        in_specs=[_VMEM, _VMEM, _VMEM],
        out_specs=_VMEM,
        compiler_params=_CPARAMS,
    )(x, w, b_row)


def fc_head(flat, eps, p):
    n = flat.shape[0]
    z_n = eps.shape[1]
    dec_dim = p["dec_fc_w"].shape[1]
    y_dim = p["p3_w"].shape[1]
    out_shape = (
        jax.ShapeDtypeStruct((n, z_n), jnp.float32),      # mean
        jax.ShapeDtypeStruct((n, z_n), jnp.float32),      # log_var
        jax.ShapeDtypeStruct((n, z_n), jnp.float32),      # z
        jax.ShapeDtypeStruct((n, dec_dim), jnp.float32),  # decoder fc output (L,C-flat)
        jax.ShapeDtypeStruct((n, y_dim), jnp.float32),    # y_hat
    )
    return pl.pallas_call(
        functools.partial(_fc_head_kernel, z_n=z_n),
        out_shape=out_shape,
        in_specs=[_VMEM] * 16,
        out_specs=(_VMEM,) * 5,
        compiler_params=_CPARAMS,
    )(flat, eps,
      p["fc1_w"], p["fc1_b"], p["ml_w"], p["ml_b"],
      p["dec_fc_w"], p["dec_fc_b"], p["dec_fc_s"], p["dec_fc_t"],
      p["p1_w"], p["p1_b"], p["p2_w"], p["p2_b"], p["p3_w"], p["p3_b"])


# ----------------------------------------------------------------------------
# Glue (pure indexing, XLA): im2col / dilation in lane-dense NLC layout
# ----------------------------------------------------------------------------
def im2col_nlc(x, k, stride, padding):
    """x: (N, L, C) -> patches (N*L_out, K*C), feature order (K-major, C-minor)."""
    n, l, c = x.shape
    xp = jnp.pad(x, ((0, 0), (padding, padding), (0, 0)))
    l_out = (l + 2 * padding - k) // stride + 1
    span = (l_out - 1) * stride + 1
    cols = [xp[:, t:t + span:stride, :] for t in range(k)]    # each (N, L_out, C)
    patches = jnp.concatenate(cols, axis=-1)                  # (N, L_out, K*C)
    return patches.reshape(n * l_out, k * c), l_out


def dilate_pad_nlc(x, k, stride, padding, output_padding):
    """ConvTranspose1d input prep (NLC): zero-insert by stride, pad (k-1-p, k-1-p+op)."""
    n, l, c = x.shape
    if stride > 1:
        l_dil = (l - 1) * stride + 1
        x = jnp.zeros((n, l_dil, c), x.dtype).at[:, ::stride, :].set(x)
    pad_l = k - 1 - padding
    pad_r = k - 1 - padding + output_padding
    return jnp.pad(x, ((0, 0), (pad_l, pad_r), (0, 0)))


def conv_stage(x, w_mat, b_row, k, s, p, act):
    """Conv1d (+ folded BatchNorm) + activation on an NLC tensor -> NLC tensor."""
    n = x.shape[0]
    patches, l_out = im2col_nlc(x, k, s, p)
    y = matmul_bias_act(patches, w_mat, b_row, act=act)
    return y.reshape(n, l_out, -1)


def convT_stage(x, w_mat, b_row, k, s, p, op, act):
    """ConvTranspose1d (+ folded trailing BatchNorm) + activation on an NLC tensor."""
    n = x.shape[0]
    xd = dilate_pad_nlc(x, k, s, p, op)
    patches, l_out = im2col_nlc(xd, k, 1, 0)
    y = matmul_bias_act(patches, w_mat, b_row, act=act)
    return y.reshape(n, l_out, -1)


# ----------------------------------------------------------------------------
# Full VAE forward (7 pallas_calls)
# ----------------------------------------------------------------------------
def vae_forward(params, x, eps):
    n, c, l = x.shape
    map_size = l // 4
    x_nlc = jnp.transpose(x, (0, 2, 1))   # NCL -> NLC (features on the 128-lane axis)

    # ---- Encoder: 3x (Conv1d -> BN(folded) -> LeakyReLU) ----
    h = conv_stage(x_nlc, params["enc1_w"], params["enc1_b"], k=5, s=2, p=2, act="leaky")
    h = conv_stage(h, params["enc2_w"], params["enc2_b"], k=3, s=2, p=1, act="leaky")
    h = conv_stage(h, params["enc3_w"], params["enc3_b"], k=3, s=1, p=1, act="leaky")
    flat = h.reshape(n, -1)               # (L, C)-ordered flatten; fc1 rows pre-permuted

    # ---- Fused FC head: fc1 / mean / log_var / reparam / dec_fc / BN1 / predictor ----
    mean, log_var, z, d, y_hat = fc_head(flat, eps, params)
    d = d.reshape(n, map_size, MAX_FILTERS)   # NLC view of decoder fc output

    # ---- Decoder: 3x ConvTranspose1d (trailing BN folded into weights) ----
    d = convT_stage(d, params["dec1_w"], params["dec1_b"], k=3, s=1, p=1, op=0, act="id")
    d = convT_stage(d, params["dec2_w"], params["dec2_b"], k=3, s=2, p=1, op=1, act="id")
    xh = convT_stage(d, params["dec3_w"], params["dec3_b"], k=5, s=2, p=2, op=1,
                     act="sigmoid")

    x_hat = jnp.transpose(xh, (0, 2, 1))  # back to NCL to match the PyTorch module
    return z, x_hat, mean, log_var, y_hat


# ----------------------------------------------------------------------------
# One-time parameter preprocessing: layout + BatchNorm/bias folding
# ----------------------------------------------------------------------------
def _bn_affine(bn):
    gamma, beta, rm, rv = bn
    scale = gamma / jnp.sqrt(rv + BN_EPS)
    return scale, beta - rm * scale


def prepare_params(raw, c, l, z_n):
    mf = MAX_FILTERS
    map_size = l // 4
    p = {}

    # Encoder: Conv -> BN -> LeakyReLU  =>  BN folds exactly into the conv epilogue.
    enc_convs = ["enc_conv1", "enc_conv2", "enc_conv3"]
    for i, name in enumerate(enc_convs, start=1):
        w, b = raw[name]                                              # (C_out, C_in, K)
        s, t = _bn_affine(raw[f"enc_bn{i}"])                          # per C_out
        w_mat = jnp.transpose(w, (2, 1, 0)).reshape(-1, w.shape[0])   # (K*C_in, C_out)
        p[f"enc{i}_w"] = w_mat * s[None, :]
        p[f"enc{i}_b"] = (b * s + t).reshape(1, -1)

    # fc1: permute rows from torch's (C, L) flatten order to our (L, C) order.
    w_fc1, b_fc1 = raw["fc1_w"], raw["fc1_b"]                         # (mf*map_size, 1024)
    p["fc1_w"] = jnp.transpose(w_fc1.reshape(mf, map_size, -1), (1, 0, 2)).reshape(
        mf * map_size, -1)
    p["fc1_b"] = b_fc1.reshape(1, -1)

    # mean / log_var heads concatenated into one (1024, 2*z_n) matmul.
    p["ml_w"] = jnp.concatenate([raw["fc_mean_w"], raw["fc_lv_w"]], axis=1)
    p["ml_b"] = jnp.concatenate([raw["fc_mean_b"], raw["fc_lv_b"]]).reshape(1, -1)

    # Decoder fc: permute cols from torch's (C, L) view order to our (L, C) order.
    # The BatchNorm1d(mf) that follows (after the ReLU) becomes a per-column affine
    # applied inside the fused head kernel (cannot fold through the ReLU).
    w_dec, b_dec = raw["dec_fc_w"], raw["dec_fc_b"]                   # (z_n, mf*map_size)
    p["dec_fc_w"] = jnp.transpose(w_dec.reshape(z_n, mf, map_size), (0, 2, 1)).reshape(
        z_n, mf * map_size)
    p["dec_fc_b"] = jnp.transpose(b_dec.reshape(mf, map_size), (1, 0)).reshape(1, -1)
    s1, t1 = _bn_affine(raw["dec_bn1"])                               # per channel (mf,)
    p["dec_fc_s"] = jnp.tile(s1, map_size).reshape(1, -1)             # col j -> chan j % mf
    p["dec_fc_t"] = jnp.tile(t1, map_size).reshape(1, -1)

    # Decoder ConvTranspose stages.  The BN that directly follows each of the first two
    # ConvTs (no activation in between) folds exactly into that ConvT's output columns.
    def convT_mat(w):                                                 # torch (C_in, C_out, K)
        return jnp.transpose(w[:, :, ::-1], (2, 0, 1)).reshape(-1, w.shape[1])

    w, b = raw["dec_convT1"]
    s2, t2 = _bn_affine(raw["dec_bn2"])
    p["dec1_w"] = convT_mat(w) * s2[None, :]
    p["dec1_b"] = (b * s2 + t2).reshape(1, -1)

    w, b = raw["dec_convT2"]
    s3, t3 = _bn_affine(raw["dec_bn3"])
    p["dec2_w"] = convT_mat(w) * s3[None, :]
    p["dec2_b"] = (b * s3 + t3).reshape(1, -1)

    w, b = raw["dec_convT3"]
    p["dec3_w"] = convT_mat(w)
    p["dec3_b"] = b.reshape(1, -1)

    # Property predictor.
    for i in (1, 2, 3):
        p[f"p{i}_w"] = raw[f"p{i}_w"]
        p[f"p{i}_b"] = raw[f"p{i}_b"].reshape(1, -1)
    return p


# ----------------------------------------------------------------------------
# Deterministic synthetic parameters (torch layouts / shapes of the module)
# ----------------------------------------------------------------------------
def init_params(key, c, l, z_n, y_dim):
    keys = iter(jax.random.split(key, 32))

    def w(shape, fan_in):
        return (1.0 / np.sqrt(fan_in)) * jax.random.normal(next(keys), shape, jnp.float32)

    def b(nf):
        return 0.01 * jax.random.normal(next(keys), (nf,), jnp.float32)

    def bn(nf):  # (gamma, beta, running_mean, running_var) at PyTorch init
        return (jnp.ones((nf,), jnp.float32), jnp.zeros((nf,), jnp.float32),
                jnp.zeros((nf,), jnp.float32), jnp.ones((nf,), jnp.float32))

    mf = MAX_FILTERS
    map_size = l // 4
    flat = map_size * mf
    return {
        # encoder
        "enc_conv1": (w((mf // 4, c, 5), c * 5), b(mf // 4)), "enc_bn1": bn(mf // 4),
        "enc_conv2": (w((mf // 2, mf // 4, 3), (mf // 4) * 3), b(mf // 2)), "enc_bn2": bn(mf // 2),
        "enc_conv3": (w((mf, mf // 2, 3), (mf // 2) * 3), b(mf)), "enc_bn3": bn(mf),
        "fc1_w": w((flat, 1024), flat), "fc1_b": b(1024),
        "fc_mean_w": w((1024, z_n), 1024), "fc_mean_b": b(z_n),
        "fc_lv_w": w((1024, z_n), 1024), "fc_lv_b": b(z_n),
        # decoder
        "dec_fc_w": w((z_n, mf * map_size), z_n), "dec_fc_b": b(mf * map_size),
        "dec_bn1": bn(mf),
        "dec_convT1": (w((mf, mf // 2, 3), mf * 3), b(mf // 2)),
        "dec_bn2": bn(mf // 2),
        "dec_convT2": (w((mf // 2, mf // 4, 3), (mf // 2) * 3), b(mf // 4)),
        "dec_bn3": bn(mf // 4),
        "dec_convT3": (w((mf // 4, c, 5), (mf // 4) * 5), b(c)),
        # property predictor
        "p1_w": w((z_n, z_n // 2), z_n), "p1_b": b(z_n // 2),
        "p2_w": w((z_n // 2, z_n // 8), z_n // 2), "p2_b": b(z_n // 8),
        "p3_w": w((z_n // 8, y_dim), z_n // 8), "p3_b": b(y_dim),
    }


if __name__ == "__main__":
    key = jax.random.PRNGKey(0)
    N, C, L = 2, 4, 16          # x: (batch, channels, length)  (NCL)
    Z_N, Y_DIM = 32, 2          # latent dim, number of predicted properties

    kx, keps, kp = jax.random.split(key, 3)
    x = jax.random.normal(kx, (N, C, L), dtype=jnp.float32)
    eps = jax.random.normal(keps, (N, Z_N), dtype=jnp.float32)   # reparameterization noise
    raw = init_params(kp, C, L, Z_N, Y_DIM)
    params = prepare_params(raw, C, L, Z_N)   # one-time weight folding / layout prep

    fwd = jax.jit(vae_forward)
    z, x_hat, mean, log_var, y_hat = fwd(params, x, eps)
    jax.block_until_ready((z, x_hat, mean, log_var, y_hat))

    assert z.shape == (N, Z_N)
    assert x_hat.shape == (N, C, L)
    assert mean.shape == (N, Z_N) and log_var.shape == (N, Z_N)
    assert y_hat.shape == (N, Y_DIM)
    assert bool(jnp.all(jnp.isfinite(x_hat))) and bool(jnp.all(jnp.isfinite(y_hat)))
    assert bool(jnp.all(x_hat >= 0.0)) and bool(jnp.all(x_hat <= 1.0))
    assert bool(jnp.all(y_hat >= 0.0)) and bool(jnp.all(y_hat <= 1.0))
    print("KERNEL_OK")
</pallas_src>

<mosaic_0001>
module attributes {stable_mosaic.version = 11 : i64} {
  func.func @_matmul_bias_act_kernel(%arg0: memref<16x20xf32, #tpu.memory_space<vmem>>, %arg1: memref<20x32xf32, #tpu.memory_space<vmem>>, %arg2: memref<1x32xf32, #tpu.memory_space<vmem>>, %arg3: memref<16x32xf32, #tpu.memory_space<vmem>>) attributes {dimension_semantics = [], scalar_prefetch = 0 : i64, scratch_operands = 0 : i64, tpu.core_type = #tpu.core_type<tc>} {
    %c0 = arith.constant 0 : index
    %c0_0 = arith.constant 0 : index
    %0 = vector.load %arg0[%c0, %c0_0] : memref<16x20xf32, #tpu.memory_space<vmem>>, vector<16x20xf32>
    %c0_1 = arith.constant 0 : index
    %c0_2 = arith.constant 0 : index
    %1 = vector.load %arg1[%c0_1, %c0_2] : memref<20x32xf32, #tpu.memory_space<vmem>>, vector<20x32xf32>
    %cst = arith.constant dense<0.000000e+00> : vector<16x32xf32>
    %2 = tpu.matmul %0, %1, %cst {dimension_numbers = #tpu.dot_dimension_numbers<[1], [0], [0], [1], [0, 0, 1, 1], [], []>} : vector<16x20xf32>, vector<20x32xf32>, vector<16x32xf32> -> vector<16x32xf32>
    %c0_3 = arith.constant 0 : index
    %c0_4 = arith.constant 0 : index
    %3 = vector.load %arg2[%c0_3, %c0_4] : memref<1x32xf32, #tpu.memory_space<vmem>>, vector<1x32xf32>
    %4 = vector.broadcast %3 : vector<1x32xf32> to vector<16x32xf32>
    %5 = arith.addf %2, %4 : vector<16x32xf32>
    %cst_5 = arith.constant 0.000000e+00 : f32
    %6 = vector.broadcast %cst_5 : f32 to vector<16x32xf32>
    %7 = arith.cmpf ogt, %5, %6 : vector<16x32xf32>
    %cst_6 = arith.constant 2.000000e-01 : f32
    %8 = vector.broadcast %cst_6 : f32 to vector<16x32xf32>
    %9 = arith.mulf %8, %5 : vector<16x32xf32>
    %10 = arith.select %7, %5, %9 : vector<16x32xi1>, vector<16x32xf32>
    %c0_7 = arith.constant 0 : index
    %c0_8 = arith.constant 0 : index
    %11 = vector.load %arg3[%c0_7, %c0_8] : memref<16x32xf32, #tpu.memory_space<vmem>>, vector<16x32xf32>
    tpu.vector_store %arg3[%c0_7, %c0_8], %10 {strides = array<i32>} : memref<16x32xf32, #tpu.memory_space<vmem>>, vector<16x32xf32>,
    return
  }
}

module attributes {stable_mosaic.version = 11 : i64} {
  func.func @_matmul_bias_act_kernel(%arg0: memref<8x96xf32, #tpu.memory_space<vmem>>, %arg1: memref<96x64xf32, #tpu.memory_space<vmem>>, %arg2: memref<1x64xf32, #tpu.memory_space<vmem>>, %arg3: memref<8x64xf32, #tpu.memory_space<vmem>>) attributes {dimension_semantics = [], scalar_prefetch = 0 : i64, scratch_operands = 0 : i64, tpu.core_type = #tpu.core_type<tc>} {
    %c0 = arith.constant 0 : index
    %c0_0 = arith.constant 0 : index
    %0 = vector.load %arg0[%c0, %c0_0] : memref<8x96xf32, #tpu.memory_space<vmem>>, vector<8x96xf32>
    %c0_1 = arith.constant 0 : index
    %c0_2 = arith.constant 0 : index
    %1 = vector.load %arg1[%c0_1, %c0_2] : memref<96x64xf32, #tpu.memory_space<vmem>>, vector<96x64xf32>
    %cst = arith.constant dense<0.000000e+00> : vector<8x64xf32>
    %2 = tpu.matmul %0, %1, %cst {dimension_numbers = #tpu.dot_dimension_numbers<[1], [0], [0], [1], [0, 0, 1, 1], [], []>} : vector<8x96xf32>, vector<96x64xf32>, vector<8x64xf32> -> vector<8x64xf32>
    %c0_3 = arith.constant 0 : index
    %c0_4 = arith.constant 0 : index
    %3 = vector.load %arg2[%c0_3, %c0_4] : memref<1x64xf32, #tpu.memory_space<vmem>>, vector<1x64xf32>
    %4 = vector.broadcast %3 : vector<1x64xf32> to vector<8x64xf32>
    %5 = arith.addf %2, %4 : vector<8x64xf32>
    %cst_5 = arith.constant 0.000000e+00 : f32
    %6 = vector.broadcast %cst_5 : f32 to vector<8x64xf32>
    %7 = arith.cmpf ogt, %5, %6 : vector<8x64xf32>
    %cst_6 = arith.constant 2.000000e-01 : f32
    %8 = vector.broadcast %cst_6 : f32 to vector<8x64xf32>
    %9 = arith.mulf %8, %5 : vector<8x64xf32>
    %10 = arith.select %7, %5, %9 : vector<8x64xi1>, vector<8x64xf32>
    %c0_7 = arith.constant 0 : index
    %c0_8 = arith.constant 0 : index
    %11 = vector.load %arg3[%c0_7, %c0_8] : memref<8x64xf32, #tpu.memory_space<vmem>>, vector<8x64xf32>
    tpu.vector_store %arg3[%c0_7, %c0_8], %10 {strides = array<i32>} : memref<8x64xf32, #tpu.memory_space<vmem>>, vector<8x64xf32>,
    return
  }
}

module attributes {stable_mosaic.version = 11 : i64} {
  func.func @_matmul_bias_act_kernel(%arg0: memref<8x192xf32, #tpu.memory_space<vmem>>, %arg1: memref<192x128xf32, #tpu.memory_space<vmem>>, %arg2: memref<1x128xf32, #tpu.memory_space<vmem>>, %arg3: memref<8x128xf32, #tpu.memory_space<vmem>>) attributes {dimension_semantics = [], scalar_prefetch = 0 : i64, scratch_operands = 0 : i64, tpu.core_type = #tpu.core_type<tc>} {
    %c0 = arith.constant 0 : index
    %c0_0 = arith.constant 0 : index
    %0 = vector.load %arg0[%c0, %c0_0] : memref<8x192xf32, #tpu.memory_space<vmem>>, vector<8x192xf32>
    %c0_1 = arith.constant 0 : index
    %c0_2 = arith.constant 0 : index
    %1 = vector.load %arg1[%c0_1, %c0_2] : memref<192x128xf32, #tpu.memory_space<vmem>>, vector<192x128xf32>
    %cst = arith.constant dense<0.000000e+00> : vector<8x128xf32>
    %2 = tpu.matmul %0, %1, %cst {dimension_numbers = #tpu.dot_dimension_numbers<[1], [0], [0], [1], [0, 0, 1, 1], [], []>} : vector<8x192xf32>, vector<192x128xf32>, vector<8x128xf32> -> vector<8x128xf32>
    %c0_3 = arith.constant 0 : index
    %c0_4 = arith.constant 0 : index
    %3 = vector.load %arg2[%c0_3, %c0_4] : memref<1x128xf32, #tpu.memory_space<vmem>>, vector<1x128xf32>
    %4 = vector.broadcast %3 : vector<1x128xf32> to vector<8x128xf32>
    %5 = arith.addf %2, %4 : vector<8x128xf32>
    %cst_5 = arith.constant 0.000000e+00 : f32
    %6 = vector.broadcast %cst_5 : f32 to vector<8x128xf32>
    %7 = arith.cmpf ogt, %5, %6 : vector<8x128xf32>
    %cst_6 = arith.constant 2.000000e-01 : f32
    %8 = vector.broadcast %cst_6 : f32 to vector<8x128xf32>
    %9 = arith.mulf %8, %5 : vector<8x128xf32>
    %10 = arith.select %7, %5, %9 : vector<8x128xi1>, vector<8x128xf32>
    %c0_7 = arith.constant 0 : index
    %c0_8 = arith.constant 0 : index
    %11 = vector.load %arg3[%c0_7, %c0_8] : memref<8x128xf32, #tpu.memory_space<vmem>>, vector<8x128xf32>
    tpu.vector_store %arg3[%c0_7, %c0_8], %10 {strides = array<i32>} : memref<8x128xf32, #tpu.memory_space<vmem>>, vector<8x128xf32>,
    return
  }
}

module attributes {stable_mosaic.version = 11 : i64} {
  func.func @_fc_head_kernel(%arg0: memref<2x512xf32, #tpu.memory_space<vmem>>, %arg1: memref<2x32xf32, #tpu.memory_space<vmem>>, %arg2: memref<512x1024xf32, #tpu.memory_space<vmem>>, %arg3: memref<1x1024xf32, #tpu.memory_space<vmem>>, %arg4: memref<1024x64xf32, #tpu.memory_space<vmem>>, %arg5: memref<1x64xf32, #tpu.memory_space<vmem>>, %arg6: memref<32x512xf32, #tpu.memory_space<vmem>>, %arg7: memref<1x512xf32, #tpu.memory_space<vmem>>, %arg8: memref<1x512xf32, #tpu.memory_space<vmem>>, %arg9: memref<1x512xf32, #tpu.memory_space<vmem>>, %arg10: memref<32x16xf32, #tpu.memory_space<vmem>>, %arg11: memref<1x16xf32, #tpu.memory_space<vmem>>, %arg12: memref<16x4xf32, #tpu.memory_space<vmem>>, %arg13: memref<1x4xf32, #tpu.memory_space<vmem>>, %arg14: memref<4x2xf32, #tpu.memory_space<vmem>>, %arg15: memref<1x2xf32, #tpu.memory_space<vmem>>, %arg16: memref<2x32xf32, #tpu.memory_space<vmem>>, %arg17: memref<2x32xf32, #tpu.memory_space<vmem>>, %arg18: memref<2x32xf32, #tpu.memory_space<vmem>>, %arg19: memref<2x512xf32, #tpu.memory_space<vmem>>, %arg20: memref<2x2xf32, #tpu.memory_space<vmem>>) attributes {dimension_semantics = [], scalar_prefetch = 0 : i64, scratch_operands = 0 : i64, tpu.core_type = #tpu.core_type<tc>} {
    %c0 = arith.constant 0 : index
    %c0_0 = arith.constant 0 : index
    %0 = vector.load %arg0[%c0, %c0_0] : memref<2x512xf32, #tpu.memory_space<vmem>>, vector<2x512xf32>
    %c0_1 = arith.constant 0 : index
    %c0_2 = arith.constant 0 : index
    %1 = vector.load %arg2[%c0_1, %c0_2] : memref<512x1024xf32, #tpu.memory_space<vmem>>, vector<512x1024xf32>
    %cst = arith.constant dense<0.000000e+00> : vector<2x1024xf32>
    %2 = tpu.matmul %0, %1, %cst {dimension_numbers = #tpu.dot_dimension_numbers<[1], [0], [0], [1], [0, 0, 1, 1], [], []>} : vector<2x512xf32>, vector<512x1024xf32>, vector<2x1024xf32> -> vector<2x1024xf32>
    %c0_3 = arith.constant 0 : index
    %c0_4 = arith.constant 0 : index
    %3 = vector.load %arg3[%c0_3, %c0_4] : memref<1x1024xf32, #tpu.memory_space<vmem>>, vector<1x1024xf32>
    %4 = vector.broadcast %3 : vector<1x1024xf32> to vector<2x1024xf32>
    %5 = arith.addf %2, %4 : vector<2x1024xf32>
    %6 = arith.negf %5 : vector<2x1024xf32>
    %7 = math.exp %6 : vector<2x1024xf32>
    %cst_5 = arith.constant 1.000000e+00 : f32
    %8 = vector.broadcast %cst_5 : f32 to vector<2x1024xf32>
    %9 = arith.addf %8, %7 : vector<2x1024xf32>
    %10 = arith.divf %8, %9 : vector<2x1024xf32>
    %c0_6 = arith.constant 0 : index
    %c0_7 = arith.constant 0 : index
    %11 = vector.load %arg4[%c0_6, %c0_7] : memref<1024x64xf32, #tpu.memory_space<vmem>>, vector<1024x64xf32>
    %cst_8 = arith.constant dense<0.000000e+00> : vector<2x64xf32>
    %12 = tpu.matmul %10, %11, %cst_8 {dimension_numbers = #tpu.dot_dimension_numbers<[1], [0], [0], [1], [0, 0, 1, 1], [], []>} : vector<2x1024xf32>, vector<1024x64xf32>, vector<2x64xf32> -> vector<2x64xf32>
    %c0_9 = arith.constant 0 : index
    %c0_10 = arith.constant 0 : index
    %13 = vector.load %arg5[%c0_9, %c0_10] : memref<1x64xf32, #tpu.memory_space<vmem>>, vector<1x64xf32>
    %14 = vector.broadcast %13 : vector<1x64xf32> to vector<2x64xf32>
    %15 = arith.addf %12, %14 : vector<2x64xf32>
    %16 = vector.extract_strided_slice %15 {offsets = [0, 0], sizes = [2, 32], strides = [1, 1]} : vector<2x64xf32> to vector<2x32xf32>
    %17 = vector.extract_strided_slice %15 {offsets = [0, 32], sizes = [2, 32], strides = [1, 1]} : vector<2x64xf32> to vector<2x32xf32>
    %c0_11 = arith.constant 0 : index
    %c0_12 = arith.constant 0 : index
    %18 = vector.load %arg1[%c0_11, %c0_12] : memref<2x32xf32, #tpu.memory_space<vmem>>, vector<2x32xf32>
    %cst_13 = arith.constant 5.000000e-01 : f32
    %19 = vector.broadcast %cst_13 : f32 to vector<2x32xf32>
    %20 = arith.mulf %19, %17 : vector<2x32xf32>
    %21 = math.exp %20 : vector<2x32xf32>
    %22 = arith.mulf %18, %21 : vector<2x32xf32>
    %23 = arith.addf %22, %16 : vector<2x32xf32>
    %c0_14 = arith.constant 0 : index
    %c0_15 = arith.constant 0 : index
    %24 = vector.load %arg6[%c0_14, %c0_15] : memref<32x512xf32, #tpu.memory_space<vmem>>, vector<32x512xf32>
    %cst_16 = arith.constant dense<0.000000e+00> : vector<2x512xf32>
    %25 = tpu.matmul %23, %24, %cst_16 {dimension_numbers = #tpu.dot_dimension_numbers<[1], [0], [0], [1], [0, 0, 1, 1], [], []>} : vector<2x32xf32>, vector<32x512xf32>, vector<2x512xf32> -> vector<2x512xf32>
    %c0_17 = arith.constant 0 : index
    %c0_18 = arith.constant 0 : index
    %26 = vector.load %arg7[%c0_17, %c0_18] : memref<1x512xf32, #tpu.memory_space<vmem>>, vector<1x512xf32>
    %27 = vector.broadcast %26 : vector<1x512xf32> to vector<2x512xf32>
    %28 = arith.addf %25, %27 : vector<2x512xf32>
    %cst_19 = arith.constant 0.000000e+00 : f32
    %29 = vector.broadcast %cst_19 : f32 to vector<2x512xf32>
    %30 = arith.maximumf %28, %29 : vector<2x512xf32>
    %c0_20 = arith.constant 0 : index
    %c0_21 = arith.constant 0 : index
    %31 = vector.load %arg8[%c0_20, %c0_21] : memref<1x512xf32, #tpu.memory_space<vmem>>, vector<1x512xf32>
    %32 = vector.broadcast %31 : vector<1x512xf32> to vector<2x512xf32>
    %33 = arith.mulf %30, %32 : vector<2x512xf32>
    %c0_22 = arith.constant 0 : index
    %c0_23 = arith.constant 0 : index
    %34 = vector.load %arg9[%c0_22, %c0_23] : memref<1x512xf32, #tpu.memory_space<vmem>>, vector<1x512xf32>
    %35 = vector.broadcast %34 : vector<1x512xf32> to vector<2x512xf32>
    %36 = arith.addf %33, %35 : vector<2x512xf32>
    %cst_24 = arith.constant 0.000000e+00 : f32
    %37 = vector.broadcast %cst_24 : f32 to vector<2x32xf32>
    %38 = arith.maximumf %16, %37 : vector<2x32xf32>
    %c0_25 = arith.constant 0 : index
    %c0_26 = arith.constant 0 : index
    %39 = vector.load %arg10[%c0_25, %c0_26] : memref<32x16xf32, #tpu.memory_space<vmem>>, vector<32x16xf32>
    %cst_27 = arith.constant dense<0.000000e+00> : vector<2x16xf32>
    %40 = tpu.matmul %38, %39, %cst_27 {dimension_numbers = #tpu.dot_dimension_numbers<[1], [0], [0], [1], [0, 0, 1, 1], [], []>} : vector<2x32xf32>, vector<32x16xf32>, vector<2x16xf32> -> vector<2x16xf32>
    %c0_28 = arith.constant 0 : index
    %c0_29 = arith.constant 0 : index
    %41 = vector.load %arg11[%c0_28, %c0_29] : memref<1x16xf32, #tpu.memory_space<vmem>>, vector<1x16xf32>
    %42 = vector.broadcast %41 : vector<1x16xf32> to vector<2x16xf32>
    %43 = arith.addf %40, %42 : vector<2x16xf32>
    %cst_30 = arith.constant 0.000000e+00 : f32
    %44 = vector.broadcast %cst_30 : f32 to vector<2x16xf32>
    %45 = arith.maximumf %43, %44 : vector<2x16xf32>
    %c0_31 = arith.constant 0 : index
    %c0_32 = arith.constant 0 : index
    %46 = vector.load %arg12[%c0_31, %c0_32] : memref<16x4xf32, #tpu.memory_space<vmem>>, vector<16x4xf32>
    %cst_33 = arith.constant dense<0.000000e+00> : vector<2x4xf32>
    %47 = tpu.matmul %45, %46, %cst_33 {dimension_numbers = #tpu.dot_dimension_numbers<[1], [0], [0], [1], [0, 0, 1, 1], [], []>} : vector<2x16xf32>, vector<16x4xf32>, vector<2x4xf32> -> vector<2x4xf32>
    %c0_34 = arith.constant 0 : index
    %c0_35 = arith.constant 0 : index
    %48 = vector.load %arg13[%c0_34, %c0_35] : memref<1x4xf32, #tpu.memory_space<vmem>>, vector<1x4xf32>
    %49 = vector.broadcast %48 : vector<1x4xf32> to vector<2x4xf32>
    %50 = arith.addf %47, %49 : vector<2x4xf32>
    %cst_36 = arith.constant 0.000000e+00 : f32
    %51 = vector.broadcast %cst_36 : f32 to vector<2x4xf32>
    %52 = arith.maximumf %50, %51 : vector<2x4xf32>
    %c0_37 = arith.constant 0 : index
    %c0_38 = arith.constant 0 : index
    %53 = vector.load %arg14[%c0_37, %c0_38] : memref<4x2xf32, #tpu.memory_space<vmem>>, vector<4x2xf32>
    %cst_39 = arith.constant dense<0.000000e+00> : vector<2x2xf32>
    %54 = tpu.matmul %52, %53, %cst_39 {dimension_numbers = #tpu.dot_dimension_numbers<[1], [0], [0], [1], [0, 0, 1, 1], [], []>} : vector<2x4xf32>, vector<4x2xf32>, vector<2x2xf32> -> vector<2x2xf32>
    %c0_40 = arith.constant 0 : index
    %c0_41 = arith.constant 0 : index
    %55 = vector.load %arg15[%c0_40, %c0_41] : memref<1x2xf32, #tpu.memory_space<vmem>>, vector<1x2xf32>
    %56 = vector.broadcast %55 : vector<1x2xf32> to vector<2x2xf32>
    %57 = arith.addf %54, %56 : vector<2x2xf32>
    %58 = arith.negf %57 : vector<2x2xf32>
    %59 = math.exp %58 : vector<2x2xf32>
    %cst_42 = arith.constant 1.000000e+00 : f32
    %60 = vector.broadcast %cst_42 : f32 to vector<2x2xf32>
    %61 = arith.addf %60, %59 : vector<2x2xf32>
    %62 = arith.divf %60, %61 : vector<2x2xf32>
    %c0_43 = arith.constant 0 : index
    %c0_44 = arith.constant 0 : index
    %63 = vector.load %arg16[%c0_43, %c0_44] : memref<2x32xf32, #tpu.memory_space<vmem>>, vector<2x32xf32>
    tpu.vector_store %arg16[%c0_43, %c0_44], %16 {strides = array<i32>} : memref<2x32xf32, #tpu.memory_space<vmem>>, vector<2x32xf32>,
    %c0_45 = arith.constant 0 : index
    %c0_46 = arith.constant 0 : index
    %64 = vector.load %arg17[%c0_45, %c0_46] : memref<2x32xf32, #tpu.memory_space<vmem>>, vector<2x32xf32>
    tpu.vector_store %arg17[%c0_45, %c0_46], %17 {strides = array<i32>} : memref<2x32xf32, #tpu.memory_space<vmem>>, vector<2x32xf32>,
    %c0_47 = arith.constant 0 : index
    %c0_48 = arith.constant 0 : index
    %65 = vector.load %arg18[%c0_47, %c0_48] : memref<2x32xf32, #tpu.memory_space<vmem>>, vector<2x32xf32>
    tpu.vector_store %arg18[%c0_47, %c0_48], %23 {strides = array<i32>} : memref<2x32xf32, #tpu.memory_space<vmem>>, vector<2x32xf32>,
    %c0_49 = arith.constant 0 : index
    %c0_50 = arith.constant 0 : index
    %66 = vector.load %arg19[%c0_49, %c0_50] : memref<2x512xf32, #tpu.memory_space<vmem>>, vector<2x512xf32>
    tpu.vector_store %arg19[%c0_49, %c0_50], %36 {strides = array<i32>} : memref<2x512xf32, #tpu.memory_space<vmem>>, vector<2x512xf32>,
    %c0_51 = arith.constant 0 : index
    %c0_52 = arith.constant 0 : index
    %67 = vector.load %arg20[%c0_51, %c0_52] : memref<2x2xf32, #tpu.memory_space<vmem>>, vector<2x2xf32>
    tpu.vector_store %arg20[%c0_51, %c0_52], %62 {strides = array<i32>} : memref<2x2xf32, #tpu.memory_space<vmem>>, vector<2x2xf32>,
    return
  }
}

module attributes {stable_mosaic.version = 11 : i64} {
  func.func @_matmul_bias_act_kernel(%arg0: memref<8x384xf32, #tpu.memory_space<vmem>>, %arg1: memref<384x64xf32, #tpu.memory_space<vmem>>, %arg2: memref<1x64xf32, #tpu.memory_space<vmem>>, %arg3: memref<8x64xf32, #tpu.memory_space<vmem>>) attributes {dimension_semantics = [], scalar_prefetch = 0 : i64, scratch_operands = 0 : i64, tpu.core_type = #tpu.core_type<tc>} {
    %c0 = arith.constant 0 : index
    %c0_0 = arith.constant 0 : index
    %0 = vector.load %arg0[%c0, %c0_0] : memref<8x384xf32, #tpu.memory_space<vmem>>, vector<8x384xf32>
    %c0_1 = arith.constant 0 : index
    %c0_2 = arith.constant 0 : index
    %1 = vector.load %arg1[%c0_1, %c0_2] : memref<384x64xf32, #tpu.memory_space<vmem>>, vector<384x64xf32>
    %cst = arith.constant dense<0.000000e+00> : vector<8x64xf32>
    %2 = tpu.matmul %0, %1, %cst {dimension_numbers = #tpu.dot_dimension_numbers<[1], [0], [0], [1], [0, 0, 1, 1], [], []>} : vector<8x384xf32>, vector<384x64xf32>, vector<8x64xf32> -> vector<8x64xf32>
    %c0_3 = arith.constant 0 : index
    %c0_4 = arith.constant 0 : index
    %3 = vector.load %arg2[%c0_3, %c0_4] : memref<1x64xf32, #tpu.memory_space<vmem>>, vector<1x64xf32>
    %4 = vector.broadcast %3 : vector<1x64xf32> to vector<8x64xf32>
    %5 = arith.addf %2, %4 : vector<8x64xf32>
    %c0_5 = arith.constant 0 : index
    %c0_6 = arith.constant 0 : index
    %6 = vector.load %arg3[%c0_5, %c0_6] : memref<8x64xf32, #tpu.memory_space<vmem>>, vector<8x64xf32>
    tpu.vector_store %arg3[%c0_5, %c0_6], %5 {strides = array<i32>} : memref<8x64xf32, #tpu.memory_space<vmem>>, vector<8x64xf32>,
    return
  }
}

module attributes {stable_mosaic.version = 11 : i64} {
  func.func @_matmul_bias_act_kernel(%arg0: memref<16x192xf32, #tpu.memory_space<vmem>>, %arg1: memref<192x32xf32, #tpu.memory_space<vmem>>, %arg2: memref<1x32xf32, #tpu.memory_space<vmem>>, %arg3: memref<16x32xf32, #tpu.memory_space<vmem>>) attributes {dimension_semantics = [], scalar_prefetch = 0 : i64, scratch_operands = 0 : i64, tpu.core_type = #tpu.core_type<tc>} {
    %c0 = arith.constant 0 : index
    %c0_0 = arith.constant 0 : index
    %0 = vector.load %arg0[%c0, %c0_0] : memref<16x192xf32, #tpu.memory_space<vmem>>, vector<16x192xf32>
    %c0_1 = arith.constant 0 : index
    %c0_2 = arith.constant 0 : index
    %1 = vector.load %arg1[%c0_1, %c0_2] : memref<192x32xf32, #tpu.memory_space<vmem>>, vector<192x32xf32>
    %cst = arith.constant dense<0.000000e+00> : vector<16x32xf32>
    %2 = tpu.matmul %0, %1, %cst {dimension_numbers = #tpu.dot_dimension_numbers<[1], [0], [0], [1], [0, 0, 1, 1], [], []>} : vector<16x192xf32>, vector<192x32xf32>, vector<16x32xf32> -> vector<16x32xf32>
    %c0_3 = arith.constant 0 : index
    %c0_4 = arith.constant 0 : index
    %3 = vector.load %arg2[%c0_3, %c0_4] : memref<1x32xf32, #tpu.memory_space<vmem>>, vector<1x32xf32>
    %4 = vector.broadcast %3 : vector<1x32xf32> to vector<16x32xf32>
    %5 = arith.addf %2, %4 : vector<16x32xf32>
    %c0_5 = arith.constant 0 : index
    %c0_6 = arith.constant 0 : index
    %6 = vector.load %arg3[%c0_5, %c0_6] : memref<16x32xf32, #tpu.memory_space<vmem>>, vector<16x32xf32>
    tpu.vector_store %arg3[%c0_5, %c0_6], %5 {strides = array<i32>} : memref<16x32xf32, #tpu.memory_space<vmem>>, vector<16x32xf32>,
    return
  }
}

module attributes {stable_mosaic.version = 11 : i64} {
  func.func @_matmul_bias_act_kernel(%arg0: memref<32x160xf32, #tpu.memory_space<vmem>>, %arg1: memref<160x4xf32, #tpu.memory_space<vmem>>, %arg2: memref<1x4xf32, #tpu.memory_space<vmem>>, %arg3: memref<32x4xf32, #tpu.memory_space<vmem>>) attributes {dimension_semantics = [], scalar_prefetch = 0 : i64, scratch_operands = 0 : i64, tpu.core_type = #tpu.core_type<tc>} {
    %c0 = arith.constant 0 : index
    %c0_0 = arith.constant 0 : index
    %0 = vector.load %arg0[%c0, %c0_0] : memref<32x160xf32, #tpu.memory_space<vmem>>, vector<32x160xf32>
    %c0_1 = arith.constant 0 : index
    %c0_2 = arith.constant 0 : index
    %1 = vector.load %arg1[%c0_1, %c0_2] : memref<160x4xf32, #tpu.memory_space<vmem>>, vector<160x4xf32>
    %cst = arith.constant dense<0.000000e+00> : vector<32x4xf32>
    %2 = tpu.matmul %0, %1, %cst {dimension_numbers = #tpu.dot_dimension_numbers<[1], [0], [0], [1], [0, 0, 1, 1], [], []>} : vector<32x160xf32>, vector<160x4xf32>, vector<32x4xf32> -> vector<32x4xf32>
    %c0_3 = arith.constant 0 : index
    %c0_4 = arith.constant 0 : index
    %3 = vector.load %arg2[%c0_3, %c0_4] : memref<1x4xf32, #tpu.memory_space<vmem>>, vector<1x4xf32>
    %4 = vector.broadcast %3 : vector<1x4xf32> to vector<32x4xf32>
    %5 = arith.addf %2, %4 : vector<32x4xf32>
    %6 = arith.negf %5 : vector<32x4xf32>
    %7 = math.exp %6 : vector<32x4xf32>
    %cst_5 = arith.constant 1.000000e+00 : f32
    %8 = vector.broadcast %cst_5 : f32 to vector<32x4xf32>
    %9 = arith.addf %8, %7 : vector<32x4xf32>
    %10 = arith.divf %8, %9 : vector<32x4xf32>
    %c0_6 = arith.constant 0 : index
    %c0_7 = arith.constant 0 : index
    %11 = vector.load %arg3[%c0_6, %c0_7] : memref<32x4xf32, #tpu.memory_space<vmem>>, vector<32x4xf32>
    tpu.vector_store %arg3[%c0_6, %c0_7], %10 {strides = array<i32>} : memref<32x4xf32, #tpu.memory_space<vmem>>, vector<32x4xf32>,
    return
  }
}

</mosaic_0001>

<llo_original>
// kernel: vae_forward.9
$region0: #{vae_forward.9}
  #allocation0 [shape = 'u32[]', space=smem, size = 0x4, offset = 0x4, fixed_abs, tag = 'smem constant byte address 0x4 - core index']
  #allocation1 [shape = 'u32[144,128]{1,0:T(1,128)}', space=vmem, size = 0x12000, scoped, tag = 'internal scratch']
  %s0 = inlined_call_operand.vmem [shape: f32[8,192], index: 0, kind: input, shape index: {}]
  %s1 = inlined_call_operand.hbm [shape: f32[192,128], index: 1, kind: input, shape index: {}]
  %s2 = inlined_call_operand.hbm [shape: f32[1,128], index: 2, kind: input, shape index: {}]
  %s3 = inlined_call_operand.vmem [shape: f32[8,128], index: 3, kind: output, shape index: {}]
  %s4 = sld [smem:[#allocation0]]
  $region30: #{vae_forward.9} parent=0
    _
  %s6 = ssub.s32 1, %s4
  %s7 = scalar_select 0, %s6, %s4
  $region1: #{vae_forward.9} parent=0
    #allocation2 [shape = 'u8[98304]{0}', space=vmem, size = 0x18000, scoped, tag = 'input window, operand 1, single buffered']
    #allocation3 [shape = 's32[1]{0}', space=sflag, size = 0x4, scoped, tag = 'scoped memory for vae_forward.9']
    #allocation4 [shape = 'u8[512]{0}', space=vmem, size = 0x400, scoped, tag = 'input window, operand 2, single buffered']
    #allocation5 [shape = 's32[1]{0}', space=sflag, size = 0x4, scoped, tag = 'scoped memory for vae_forward.9']
    %8 = vsyncpa [#allocation3], 0
    %9 = vsyncpa [#allocation5], 0
    // Predicated region
    $region2: #{vae_forward.9} parent=1 // pred_check
      _
    $region3: #{vae_forward.9} parent=1 // pred_check_branch
      %11 = sbr.rel (0) target = $region5
    $region4: #{vae_forward.9} parent=1 // pred_region
      _
    $region5: #{vae_forward.9} parent=1 // pred_fallthru
      _
    // Predicated region
    $region6: #{vae_forward.9} parent=1 // pred_check
      _
    $region7: #{vae_forward.9} parent=1 // pred_check_branch
      %13 = sbr.rel (0) target = $region9
    $region8: #{vae_forward.9} parent=1 // pred_region
      %s15 = ssub.s32 3072, 3072
      %16 = vsyncadd [#allocation3], %s15
      %s17 = sshll.u32 [#allocation2], 4
      %s18 = int_to_ptr.vmem [resolvable:$true] %s17
      %23 = dma.hbm_to_vmem [thread:$0]  %s1, 3072, %s18, [#allocation3], 128, 128, 8
    $region9: #{vae_forward.9} parent=1 // pred_fallthru
      _
    // Predicated region
    $region10: #{vae_forward.9} parent=1 // pred_check
      _
    $region11: #{vae_forward.9} parent=1 // pred_check_branch
      %25 = sbr.rel (0) target = $region13
    $region12: #{vae_forward.9} parent=1 // pred_region
      %s27 = ssub.s32 16, 16
      %28 = vsyncadd [#allocation5], %s27
      %s30 = sshll.u32 [#allocation4], 4
      %s31 = int_to_ptr.vmem [resolvable:$true] %s30
      %33 = dma.hbm_to_vmem [thread:$0]  %s2, 16, %s31, [#allocation5]
    $region13: #{vae_forward.9} parent=1 // pred_fallthru
      _
    // Predicated region
    $region14: #{vae_forward.9} parent=1 // pred_check
      _
    $region15: #{vae_forward.9} parent=1 // pred_check_branch
      %35 = sbr.rel (0) target = $region17
    $region16: #{vae_forward.9} parent=1 // pred_region
      %36 = dma.done [#allocation3], 3072
    $region17: #{vae_forward.9} parent=1 // pred_fallthru
      _
    // Predicated region
    $region18: #{vae_forward.9} parent=1 // pred_check
      _
    $region19: #{vae_forward.9} parent=1 // pred_check_branch
      %38 = sbr.rel (0) target = $region21
    $region20: #{vae_forward.9} parent=1 // pred_region
      %39 = dma.done [#allocation5], 16
    $region21: #{vae_forward.9} parent=1 // pred_fallthru
      _
    %v40 = vld [vmem:[%s0] sm:$0xff]
    %v41 = vld [vmem:[%s0 + $0x8] sm:$0xff]
    %v42 = vld [vmem:[#allocation2] sm:$0xff]
    %v43 = vld [vmem:[#allocation2 + $0x8] sm:$0xff]
    %v44 = vld [vmem:[#allocation2 + $0x10] sm:$0xff]
    %v45 = vld [vmem:[#allocation2 + $0x18] sm:$0xff]
    %v46 = vld [vmem:[#allocation2 + $0x20] sm:$0xff]
    %v47 = vld [vmem:[#allocation2 + $0x28] sm:$0xff]
    %v48 = vld [vmem:[#allocation2 + $0x30] sm:$0xff]
    %v49 = vld [vmem:[#allocation2 + $0x38] sm:$0xff]
    %v50 = vld [vmem:[#allocation2 + $0x40] sm:$0xff]
    %v51 = vld [vmem:[#allocation2 + $0x48] sm:$0xff]
    %v52 = vld [vmem:[#allocation2 + $0x50] sm:$0xff]
    %v53 = vld [vmem:[#allocation2 + $0x58] sm:$0xff]
    %v54 = vld [vmem:[#allocation2 + $0x60] sm:$0xff]
    %v55 = vld [vmem:[#allocation2 + $0x68] sm:$0xff]
    %v56 = vld [vmem:[#allocation2 + $0x70] sm:$0xff]
    %v57 = vld [vmem:[#allocation2 + $0x78] sm:$0xff]
    %v58 = vld [vmem:[#allocation2 + $0x80] sm:$0xff]
    %v59 = vld [vmem:[#allocation2 + $0x88] sm:$0xff]
    %v60 = vld [vmem:[#allocation2 + $0x90] sm:$0xff]
    %v61 = vld [vmem:[#allocation2 + $0x98] sm:$0xff]
    %v62 = vld [vmem:[#allocation2 + $0xa0] sm:$0xff]
    %v63 = vld [vmem:[#allocation2 + $0xa8] sm:$0xff]
    %v64 = vld [vmem:[#allocation2 + $0xb0] sm:$0xff]
    %v65 = vld [vmem:[#allocation2 + $0xb8] sm:$0xff]
    %v66 = vld [vmem:[#allocation4] sm:$0x1]
    %v68 = vlaneseq
    %v69 = vshrl.u32 %v68, 7
    %v70 = vsub.s32 0, %v69
    %v71 = vrot.slane %v66, %v70
    %vm73 = vcmask 523264
    %v75 = vsel %vm73, %v41, 0
    %77 = vmatprep.subr.mxu0 0.0
    %78 = vmatpush1.msra.mxu0 %v42
    %79 = vmatprep.subr.mxu0 0.0
    %80 = vmatpush1.msra.mxu0 %v43
    %81 = vmatprep.subr.mxu0 0.0
    %82 = vmatpush1.msra.mxu0 %v44
    %83 = vmatprep.subr.mxu0 0.0
    %84 = vmatpush1.msra.mxu0 %v45
    %85 = vmatprep.subr.mxu0 0.0
    %86 = vmatpush1.msra.mxu0 %v46
    %87 = vmatprep.subr.mxu0 0.0
    %88 = vmatpush1.msra.mxu0 %v47
    %89 = vmatprep.subr.mxu0 0.0
    %90 = vmatpush1.msra.mxu0 %v48
    %91 = vmatprep.subr.mxu0 0.0
    %92 = vmatpush1.msra.mxu0 %v49
    %93 = vmatprep.subr.mxu0 0.0
    %94 = vmatpush1.msra.mxu0 %v50
    %95 = vmatprep.subr.mxu0 0.0
    %96 = vmatpush1.msra.mxu0 %v51
    %97 = vmatprep.subr.mxu0 0.0
    %98 = vmatpush1.msra.mxu0 %v52
    %99 = vmatprep.subr.mxu0 0.0
    %100 = vmatpush1.msra.mxu0 %v53
    %101 = vmatprep.subr.mxu0 0.0
    %102 = vmatpush1.msra.mxu0 %v54
    %103 = vmatprep.subr.mxu0 0.0
    %104 = vmatpush1.msra.mxu0 %v55
    %105 = vmatprep.subr.mxu0 0.0
    %106 = vmatpush1.msra.mxu0 %v56
    %107 = vmatprep.subr.mxu0 0.0
    %108 = vmatpush1.msra.mxu0 %v57
    %109 = vmatprep.subr.mxu0 0.0
    %110 = vmatpush1.msra.mxu0 %v58
    %111 = vmatprep.subr.mxu0 0.0
    %112 = vmatpush1.msra.mxu0 %v59
    %113 = vmatprep.subr.mxu0 0.0
    %114 = vmatpush1.msra.mxu0 %v60
    %115 = vmatprep.subr.mxu0 0.0
    %116 = vmatpush1.msra.mxu0 %v61
    %117 = vmatprep.subr.mxu0 0.0
    %118 = vmatpush1.msra.mxu0 %v62
    %119 = vmatprep.subr.mxu0 0.0
    %120 = vmatpush1.msra.mxu0 %v63
    %121 = vmatprep.subr.mxu0 0.0
    %122 = vmatpush1.msra.mxu0 %v64
    %123 = vmatprep.subr.mxu0 0.0
    %124 = vmatpush1.msra.mxu0 %v65
    %125 = vmatprep.subr.mxu0 0.0
    %126 = vmatpush1.msra.mxu0 0.0
    %127 = vmatprep.subr.mxu0 0.0
    %128 = vmatpush1.msra.mxu0 0.0
    %129 = vmatprep.subr.mxu0 0.0
    %130 = vmatpush1.msra.mxu0 0.0
    %131 = vmatprep.subr.mxu0 0.0
    %132 = vmatpush1.msra.mxu0 0.0
    %133 = vmatprep.subr.mxu0 0.0
    %134 = vmatpush1.msra.mxu0 0.0
    %135 = vmatprep.subr.mxu0 0.0
    %136 = vmatpush1.msra.mxu0 0.0
    %137 = vmatprep.subr.mxu0 0.0
    %138 = vmatpush1.msra.mxu0 0.0
    %139 = vmatprep.subr.mxu0 0.0
    %140 = vmatpush1.msra.mxu0 0.0
    %141 = vmatprep.mubr.f32.mxu0 %v75
    %142 = vmatmul.mubr.f32.gmra.mrb[0].mxu0 %v40
    %v143 = vpop.f32.mrb[0].mxu0
    %v144 = vadd.f32 %v71, %v143
    %v145 = vpop.f32.mrb[0].mxu0
    %146 = vdwg.mxu0
    %vm147 = vcmp.gt.f32.partialorder %v144, 0.0
    %v148 = vmul.f32 %v144, 0.2
    %v149 = vsel %vm147, %v144, %v148
    %150 = vst [vmem:[%s3] sm:$0xff] %v149
    // Predicated region
    $region22: #{vae_forward.9} parent=1 // pred_check
      _
    $region23: #{vae_forward.9} parent=1 // pred_check_branch
      %152 = sbr.rel (0) target = $region25
    $region24: #{vae_forward.9} parent=1 // pred_region
      _
    $region25: #{vae_forward.9} parent=1 // pred_fallthru
      _
    // Predicated region
    $region26: #{vae_forward.9} parent=1 // pred_check
      _
    $region27: #{vae_forward.9} parent=1 // pred_check_branch
      %154 = sbr.rel (0) target = $region29
    $region28: #{vae_forward.9} parent=1 // pred_region
      _
    $region29: #{vae_forward.9} parent=1 // pred_fallthru
      _
    %155 = vsyncpa [#allocation3], 1
    %156 = vsyncpa [#allocation5], 1

// kernel: vae_forward.7
$region0: #{vae_forward.7}
  #allocation0 [shape = 'u32[]', space=smem, size = 0x4, offset = 0x4, fixed_abs, tag = 'smem constant byte address 0x4 - core index']
  #allocation1 [shape = 'u32[144,128]{1,0:T(1,128)}', space=vmem, size = 0x12000, scoped, tag = 'internal scratch']
  %s0 = inlined_call_operand.vmem [shape: f32[16,20], index: 0, kind: input, shape index: {}]
  %s1 = inlined_call_operand.hbm [shape: f32[20,32], index: 1, kind: input, shape index: {}]
  %s2 = inlined_call_operand.hbm [shape: f32[1,32], index: 2, kind: input, shape index: {}]
  %s3 = inlined_call_operand.vmem [shape: f32[16,32], index: 3, kind: output, shape index: {}]
  %s4 = sld [smem:[#allocation0]]
  $region30: #{vae_forward.7} parent=0
    _
  %s6 = ssub.s32 1, %s4
  %s7 = scalar_select 0, %s6, %s4
  $region1: #{vae_forward.7} parent=0
    #allocation2 [shape = 'u8[12288]{0}', space=vmem, size = 0x3000, scoped, tag = 'input window, operand 1, single buffered']
    #allocation3 [shape = 's32[1]{0}', space=sflag, size = 0x4, scoped, tag = 'scoped memory for vae_forward.7']
    #allocation4 [shape = 'u8[512]{0}', space=vmem, size = 0x400, scoped, tag = 'input window, operand 2, single buffered']
    #allocation5 [shape = 's32[1]{0}', space=sflag, size = 0x4, scoped, tag = 'scoped memory for vae_forward.7']
    %8 = vsyncpa [#allocation3], 0
    %9 = vsyncpa [#allocation5], 0
    // Predicated region
    $region2: #{vae_forward.7} parent=1 // pred_check
      _
    $region3: #{vae_forward.7} parent=1 // pred_check_branch
      %11 = sbr.rel (0) target = $region5
    $region4: #{vae_forward.7} parent=1 // pred_region
      _
    $region5: #{vae_forward.7} parent=1 // pred_fallthru
      _
    // Predicated region
    $region6: #{vae_forward.7} parent=1 // pred_check
      _
    $region7: #{vae_forward.7} parent=1 // pred_check_branch
      %13 = sbr.rel (0) target = $region9
    $region8: #{vae_forward.7} parent=1 // pred_region
      %s15 = ssub.s32 384, 384
      %16 = vsyncadd [#allocation3], %s15
      %s17 = sshll.u32 [#allocation2], 4
      %s18 = int_to_ptr.vmem [resolvable:$true] %s17
      %23 = dma.hbm_to_vmem [thread:$0]  %s1, 384, %s18, [#allocation3], 128, 128, 8
    $region9: #{vae_forward.7} parent=1 // pred_fallthru
      _
    // Predicated region
    $region10: #{vae_forward.7} parent=1 // pred_check
      _
    $region11: #{vae_forward.7} parent=1 // pred_check_branch
      %25 = sbr.rel (0) target = $region13
    $region12: #{vae_forward.7} parent=1 // pred_region
      %s27 = ssub.s32 16, 16
      %28 = vsyncadd [#allocation5], %s27
      %s30 = sshll.u32 [#allocation4], 4
      %s31 = int_to_ptr.vmem [resolvable:$true] %s30
      %33 = dma.hbm_to_vmem [thread:$0]  %s2, 16, %s31, [#allocation5]
    $region13: #{vae_forward.7} parent=1 // pred_fallthru
      _
    // Predicated region
    $region14: #{vae_forward.7} parent=1 // pred_check
      _
    $region15: #{vae_forward.7} parent=1 // pred_check_branch
      %35 = sbr.rel (0) target = $region17
    $region16: #{vae_forward.7} parent=1 // pred_region
      %36 = dma.done [#allocation3], 384
    $region17: #{vae_forward.7} parent=1 // pred_fallthru
      _
    // Predicated region
    $region18: #{vae_forward.7} parent=1 // pred_check
      _
    $region19: #{vae_forward.7} parent=1 // pred_check_branch
      %38 = sbr.rel (0) target = $region21
    $region20: #{vae_forward.7} parent=1 // pred_region
      %39 = dma.done [#allocation5], 16
    $region21: #{vae_forward.7} parent=1 // pred_fallthru
      _
    %v40 = vld [vmem:[%s0] sm:$0xff]
    %v41 = vld [vmem:[%s0 + $0x8] sm:$0xff]
    %v42 = vld [vmem:[#allocation2] sm:$0xff]
    %v43 = vld [vmem:[#allocation2 + $0x8] sm:$0xff]
    %v44 = vld [vmem:[#allocation2 + $0x10] sm:$0xf]
    %v45 = vld [vmem:[#allocation4] sm:$0x1]
    %v47 = vlaneseq
    %v48 = vshrl.u32 %v47, 7
    %v49 = vsub.s32 0, %v48
    %v50 = vrot.slane %v45, %v49
    %vm52 = vcmask 162816
    %v54 = vsel %vm52, %v40, 0
    %v57 = vsel %vm52, %v41, 0
    %vm59 = vcmask 1043456
    %v61 = vsel %vm59, %v44, 0
    %63 = vmatprep.subr.mxu0 0.0
    %64 = vmatpush1.msra.mxu0 %v42
    %65 = vmatprep.subr.mxu0 0.0
    %66 = vmatpush1.msra.mxu0 %v43
    %67 = vmatprep.subr.mxu0 0.0
    %68 = vmatpush1.msra.mxu0 %v61
    %69 = vmatprep.subr.mxu0 0.0
    %70 = vmatpush1.msra.mxu0 0.0
    %71 = vmatprep.subr.mxu0 0.0
    %72 = vmatpush1.msra.mxu0 0.0
    %73 = vmatprep.subr.mxu0 0.0
    %74 = vmatpush1.msra.mxu0 0.0
    %75 = vmatprep.subr.mxu0 0.0
    %76 = vmatpush1.msra.mxu0 0.0
    %77 = vmatprep.subr.mxu0 0.0
    %78 = vmatpush1.msra.mxu0 0.0
    %79 = vmatprep.subr.mxu0 0.0
    %80 = vmatpush1.msra.mxu0 0.0
    %81 = vmatprep.subr.mxu0 0.0
    %82 = vmatpush1.msra.mxu0 0.0
    %83 = vmatprep.subr.mxu0 0.0
    %84 = vmatpush1.msra.mxu0 0.0
    %85 = vmatprep.subr.mxu0 0.0
    %86 = vmatpush1.msra.mxu0 0.0
    %87 = vmatprep.subr.mxu0 0.0
    %88 = vmatpush1.msra.mxu0 0.0
    %89 = vmatprep.subr.mxu0 0.0
    %90 = vmatpush1.msra.mxu0 0.0
    %91 = vmatprep.subr.mxu0 0.0
    %92 = vmatpush1.msra.mxu0 0.0
    %93 = vmatprep.subr.mxu0 0.0
    %94 = vmatpush1.msra.mxu0 0.0
    %95 = vmatprep.subr.mxu0 0.0
    %96 = vmatpush1.msra.mxu0 0.0
    %97 = vmatprep.subr.mxu0 0.0
    %98 = vmatpush1.msra.mxu0 0.0
    %99 = vmatprep.subr.mxu0 0.0
    %100 = vmatpush1.msra.mxu0 0.0
    %101 = vmatprep.subr.mxu0 0.0
    %102 = vmatpush1.msra.mxu0 0.0
    %103 = vmatprep.subr.mxu0 0.0
    %104 = vmatpush1.msra.mxu0 0.0
    %105 = vmatprep.subr.mxu0 0.0
    %106 = vmatpush1.msra.mxu0 0.0
    %107 = vmatprep.subr.mxu0 0.0
    %108 = vmatpush1.msra.mxu0 0.0
    %109 = vmatprep.subr.mxu0 0.0
    %110 = vmatpush1.msra.mxu0 0.0
    %111 = vmatprep.subr.mxu0 0.0
    %112 = vmatpush1.msra.mxu0 0.0
    %113 = vmatprep.subr.mxu0 0.0
    %114 = vmatpush1.msra.mxu0 0.0
    %115 = vmatprep.subr.mxu0 0.0
    %116 = vmatpush1.msra.mxu0 0.0
    %117 = vmatprep.subr.mxu0 0.0
    %118 = vmatpush1.msra.mxu0 0.0
    %119 = vmatprep.subr.mxu0 0.0
    %120 = vmatpush1.msra.mxu0 0.0
    %121 = vmatprep.subr.mxu0 0.0
    %122 = vmatpush1.msra.mxu0 0.0
    %123 = vmatprep.subr.mxu0 0.0
    %124 = vmatpush1.msra.mxu0 0.0
    %125 = vmatprep.subr.mxu0 0.0
    %126 = vmatpush1.msra.mxu0 0.0
    %127 = vmatprep.mubr.f32.mxu0 0.0
    %128 = vmatmul.mubr.f32.gmra.mrb[0].mxu0 %v54
    %v129 = vpop.f32.mrb[0].mxu0
    %v130 = vadd.f32 %v50, %v129
    %v131 = vpop.f32.mrb[0].mxu0
    %132 = vmatprep.mubr.f32.mxu0 0.0
    %133 = vmatmul.mubr.f32.gmra.mrb[0].mxu0 %v57
    %v134 = vpop.f32.mrb[0].mxu0
    %v135 = vadd.f32 %v50, %v134
    %v136 = vpop.f32.mrb[0].mxu0
    %137 = vdwg.mxu0
    %vm138 = vcmp.gt.f32.partialorder %v130, 0.0
    %vm139 = vcmp.gt.f32.partialorder %v135, 0.0
    %v140 = vmul.f32 %v130, 0.2
    %v141 = vmul.f32 %v135, 0.2
    %v142 = vsel %vm138, %v130, %v140
    %v143 = vsel %vm139, %v135, %v141
    %vm144 = vcmask 261120
    %145 = vst.msk [vmem:[%s3] sm:$0xff] %vm144, %v142
    %146 = vst.msk [vmem:[%s3 + $0x8] sm:$0xff] %vm144, %v143
    // Predicated region
    $region22: #{vae_forward.7} parent=1 // pred_check
      _
    $region23: #{vae_forward.7} parent=1 // pred_check_branch
      %148 = sbr.rel (0) target = $region25
    $region24: #{vae_forward.7} parent=1 // pred_region
      _
    $region25: #{vae_forward.7} parent=1 // pred_fallthru
      _
    // Predicated region
    $region26: #{vae_forward.7} parent=1 // pred_check
      _
    $region27: #{vae_forward.7} parent=1 // pred_check_branch
      %150 = sbr.rel (0) target = $region29
    $region28: #{vae_forward.7} parent=1 // pred_region
      _
    $region29: #{vae_forward.7} parent=1 // pred_fallthru
      _
    %151 = vsyncpa [#allocation3], 1
    %152 = vsyncpa [#allocation5], 1

// kernel: vae_forward.8
$region0: #{vae_forward.8}
  #allocation0 [shape = 'u32[]', space=smem, size = 0x4, offset = 0x4, fixed_abs, tag = 'smem constant byte address 0x4 - core index']
  #allocation1 [shape = 'u32[144,128]{1,0:T(1,128)}', space=vmem, size = 0x12000, scoped, tag = 'internal scratch']
  %s0 = inlined_call_operand.vmem [shape: f32[8,96], index: 0, kind: input, shape index: {}]
  %s1 = inlined_call_operand.vmem [shape: f32[96,64], index: 1, kind: input, shape index: {}]
  %s2 = inlined_call_operand.hbm [shape: f32[1,64], index: 2, kind: input, shape index: {}]
  %s3 = inlined_call_operand.vmem [shape: f32[8,64], index: 3, kind: output, shape index: {}]
  %s4 = sld [smem:[#allocation0]]
  $region26: #{vae_forward.8} parent=0
    _
  %s6 = ssub.s32 1, %s4
  %s7 = scalar_select 0, %s6, %s4
  $region1: #{vae_forward.8} parent=0
    #allocation2 [shape = 'u8[512]{0}', space=vmem, size = 0x400, scoped, tag = 'input window, operand 2, single buffered']
    #allocation3 [shape = 's32[1]{0}', space=sflag, size = 0x4, scoped, tag = 'scoped memory for vae_forward.8']
    %8 = vsyncpa [#allocation3], 0
    // Predicated region
    $region2: #{vae_forward.8} parent=1 // pred_check
      _
    $region3: #{vae_forward.8} parent=1 // pred_check_branch
      %10 = sbr.rel (0) target = $region5
    $region4: #{vae_forward.8} parent=1 // pred_region
      _
    $region5: #{vae_forward.8} parent=1 // pred_fallthru
      _
    // Predicated region
    $region6: #{vae_forward.8} parent=1 // pred_check
      _
    $region7: #{vae_forward.8} parent=1 // pred_check_branch
      %12 = sbr.rel (0) target = $region9
    $region8: #{vae_forward.8} parent=1 // pred_region
      _
    $region9: #{vae_forward.8} parent=1 // pred_fallthru
      _
    // Predicated region
    $region10: #{vae_forward.8} parent=1 // pred_check
      _
    $region11: #{vae_forward.8} parent=1 // pred_check_branch
      %14 = sbr.rel (0) target = $region13
    $region12: #{vae_forward.8} parent=1 // pred_region
      %s16 = ssub.s32 16, 16
      %17 = vsyncadd [#allocation3], %s16
      %s19 = sshll.u32 [#allocation2], 4
      %s20 = int_to_ptr.vmem [resolvable:$true] %s19
      %22 = dma.hbm_to_vmem [thread:$0]  %s2, 16, %s20, [#allocation3]
    $region13: #{vae_forward.8} parent=1 // pred_fallthru
      _
    // Predicated region
    $region14: #{vae_forward.8} parent=1 // pred_check
      _
    $region15: #{vae_forward.8} parent=1 // pred_check_branch
      %24 = sbr.rel (0) target = $region17
    $region16: #{vae_forward.8} parent=1 // pred_region
      %25 = dma.done [#allocation3], 16
    $region17: #{vae_forward.8} parent=1 // pred_fallthru
      _
    %v26 = vld [vmem:[%s0] sm:$0xff]
    %v27 = vld [vmem:[%s1] sm:$0xff]
    %v28 = vld [vmem:[%s1 + $0x8] sm:$0xff]
    %v29 = vld [vmem:[%s1 + $0x10] sm:$0xff]
    %v30 = vld [vmem:[%s1 + $0x18] sm:$0xff]
    %v31 = vld [vmem:[%s1 + $0x20] sm:$0xff]
    %v32 = vld [vmem:[%s1 + $0x28] sm:$0xff]
    %v33 = vld [vmem:[%s1 + $0x30] sm:$0xff]
    %v34 = vld [vmem:[%s1 + $0x38] sm:$0xff]
    %v35 = vld [vmem:[%s1 + $0x40] sm:$0xff]
    %v36 = vld [vmem:[%s1 + $0x48] sm:$0xff]
    %v37 = vld [vmem:[%s1 + $0x50] sm:$0xff]
    %v38 = vld [vmem:[%s1 + $0x58] sm:$0xff]
    %v39 = vld [vmem:[#allocation2] sm:$0x1]
    %v41 = vlaneseq
    %v42 = vshrl.u32 %v41, 7
    %v43 = vsub.s32 0, %v42
    %v44 = vrot.slane %v39, %v43
    %vm46 = vcmask 785408
    %v48 = vsel %vm46, %v26, 0
    %50 = vmatprep.subr.mxu0 0.0
    %51 = vmatpush1.msra.mxu0 %v27
    %52 = vmatprep.subr.mxu0 0.0
    %53 = vmatpush1.msra.mxu0 %v28
    %54 = vmatprep.subr.mxu0 0.0
    %55 = vmatpush1.msra.mxu0 %v29
    %56 = vmatprep.subr.mxu0 0.0
    %57 = vmatpush1.msra.mxu0 %v30
    %58 = vmatprep.subr.mxu0 0.0
    %59 = vmatpush1.msra.mxu0 %v31
    %60 = vmatprep.subr.mxu0 0.0
    %61 = vmatpush1.msra.mxu0 %v32
    %62 = vmatprep.subr.mxu0 0.0
    %63 = vmatpush1.msra.mxu0 %v33
    %64 = vmatprep.subr.mxu0 0.0
    %65 = vmatpush1.msra.mxu0 %v34
    %66 = vmatprep.subr.mxu0 0.0
    %67 = vmatpush1.msra.mxu0 %v35
    %68 = vmatprep.subr.mxu0 0.0
    %69 = vmatpush1.msra.mxu0 %v36
    %70 = vmatprep.subr.mxu0 0.0
    %71 = vmatpush1.msra.mxu0 %v37
    %72 = vmatprep.subr.mxu0 0.0
    %73 = vmatpush1.msra.mxu0 %v38
    %74 = vmatprep.subr.mxu0 0.0
    %75 = vmatpush1.msra.mxu0 0.0
    %76 = vmatprep.subr.mxu0 0.0
    %77 = vmatpush1.msra.mxu0 0.0
    %78 = vmatprep.subr.mxu0 0.0
    %79 = vmatpush1.msra.mxu0 0.0
    %80 = vmatprep.subr.mxu0 0.0
    %81 = vmatpush1.msra.mxu0 0.0
    %82 = vmatprep.subr.mxu0 0.0
    %83 = vmatpush1.msra.mxu0 0.0
    %84 = vmatprep.subr.mxu0 0.0
    %85 = vmatpush1.msra.mxu0 0.0
    %86 = vmatprep.subr.mxu0 0.0
    %87 = vmatpush1.msra.mxu0 0.0
    %88 = vmatprep.subr.mxu0 0.0
    %89 = vmatpush1.msra.mxu0 0.0
    %90 = vmatprep.subr.mxu0 0.0
    %91 = vmatpush1.msra.mxu0 0.0
    %92 = vmatprep.subr.mxu0 0.0
    %93 = vmatpush1.msra.mxu0 0.0
    %94 = vmatprep.subr.mxu0 0.0
    %95 = vmatpush1.msra.mxu0 0.0
    %96 = vmatprep.subr.mxu0 0.0
    %97 = vmatpush1.msra.mxu0 0.0
    %98 = vmatprep.subr.mxu0 0.0
    %99 = vmatpush1.msra.mxu0 0.0
    %100 = vmatprep.subr.mxu0 0.0
    %101 = vmatpush1.msra.mxu0 0.0
    %102 = vmatprep.subr.mxu0 0.0
    %103 = vmatpush1.msra.mxu0 0.0
    %104 = vmatprep.subr.mxu0 0.0
    %105 = vmatpush1.msra.mxu0 0.0
    %106 = vmatprep.subr.mxu0 0.0
    %107 = vmatpush1.msra.mxu0 0.0
    %108 = vmatprep.subr.mxu0 0.0
    %109 = vmatpush1.msra.mxu0 0.0
    %110 = vmatprep.subr.mxu0 0.0
    %111 = vmatpush1.msra.mxu0 0.0
    %112 = vmatprep.subr.mxu0 0.0
    %113 = vmatpush1.msra.mxu0 0.0
    %114 = vmatprep.mubr.f32.mxu0 0.0
    %115 = vmatmul.mubr.f32.gmra.mrb[0].mxu0 %v48
    %v116 = vpop.f32.mrb[0].mxu0
    %v117 = vadd.f32 %v44, %v116
    %v118 = vpop.f32.mrb[0].mxu0
    %119 = vdwg.mxu0
    %vm120 = vcmp.gt.f32.partialorder %v117, 0.0
    %v121 = vmul.f32 %v117, 0.2
    %v122 = vsel %vm120, %v117, %v121
    %vm123 = vcmask 523264
    %124 = vst.msk [vmem:[%s3] sm:$0xff] %vm123, %v122
    // Predicated region
    $region18: #{vae_forward.8} parent=1 // pred_check
      _
    $region19: #{vae_forward.8} parent=1 // pred_check_branch
      %126 = sbr.rel (0) target = $region21
    $region20: #{vae_forward.8} parent=1 // pred_region
      _
    $region21: #{vae_forward.8} parent=1 // pred_fallthru
      _
    // Predicated region
    $region22: #{vae_forward.8} parent=1 // pred_check
      _
    $region23: #{vae_forward.8} parent=1 // pred_check_branch
      %128 = sbr.rel (0) target = $region25
    $region24: #{vae_forward.8} parent=1 // pred_region
      _
    $region25: #{vae_forward.8} parent=1 // pred_fallthru
      _
    %129 = vsyncpa [#allocation3], 1

// kernel: vae_forward.11
$region0: #{vae_forward.11}
  #allocation0 [shape = 'u32[]', space=smem, size = 0x4, offset = 0x4, fixed_abs, tag = 'smem constant byte address 0x4 - core index']
  #allocation1 [shape = 'u32[144,128]{1,0:T(1,128)}', space=vmem, size = 0x12000, scoped, tag = 'internal scratch']
  %s0 = inlined_call_operand.vmem [shape: f32[8,384], index: 0, kind: input, shape index: {}]
  %s1 = inlined_call_operand.vmem [shape: f32[384,64], index: 1, kind: input, shape index: {}]
  %s2 = inlined_call_operand.vmem [shape: f32[1,64], index: 2, kind: input, shape index: {}]
  %s3 = inlined_call_operand.vmem [shape: f32[8,64], index: 3, kind: output, shape index: {}]
  %s4 = sld [smem:[#allocation0]]
  $region22: #{vae_forward.11} parent=0
    _
  %s6 = ssub.s32 1, %s4
  %s7 = scalar_select 0, %s6, %s4
  // Predicated region
  $region2: #{vae_forward.11} parent=0 // pred_check
    _
  $region3: #{vae_forward.11} parent=0 // pred_check_branch
    %9 = sbr.rel (0) target = $region5
  $region4: #{vae_forward.11} parent=0 // pred_region
    _
  $region5: #{vae_forward.11} parent=0 // pred_fallthru
    _
  // Predicated region
  $region6: #{vae_forward.11} parent=0 // pred_check
    _
  $region7: #{vae_forward.11} parent=0 // pred_check_branch
    %11 = sbr.rel (0) target = $region9
  $region8: #{vae_forward.11} parent=0 // pred_region
    _
  $region9: #{vae_forward.11} parent=0 // pred_fallthru
    _
  // Predicated region
  $region10: #{vae_forward.11} parent=0 // pred_check
    _
  $region11: #{vae_forward.11} parent=0 // pred_check_branch
    %13 = sbr.rel (0) target = $region13
  $region12: #{vae_forward.11} parent=0 // pred_region
    _
  $region13: #{vae_forward.11} parent=0 // pred_fallthru
    _
  %v14 = vld [vmem:[%s0] sm:$0xff]
  %v15 = vld [vmem:[%s0 + $0x8] sm:$0xff]
  %v16 = vld [vmem:[%s0 + $0x10] sm:$0xff]
  %v17 = vld [vmem:[%s1] sm:$0xff]
  %v18 = vld [vmem:[%s1 + $0x8] sm:$0xff]
  %v19 = vld [vmem:[%s1 + $0x10] sm:$0xff]
  %v20 = vld [vmem:[%s1 + $0x18] sm:$0xff]
  %v21 = vld [vmem:[%s1 + $0x20] sm:$0xff]
  %v22 = vld [vmem:[%s1 + $0x28] sm:$0xff]
  %v23 = vld [vmem:[%s1 + $0x30] sm:$0xff]
  %v24 = vld [vmem:[%s1 + $0x38] sm:$0xff]
  %v25 = vld [vmem:[%s1 + $0x40] sm:$0xff]
  %v26 = vld [vmem:[%s1 + $0x48] sm:$0xff]
  %v27 = vld [vmem:[%s1 + $0x50] sm:$0xff]
  %v28 = vld [vmem:[%s1 + $0x58] sm:$0xff]
  %v29 = vld [vmem:[%s1 + $0x60] sm:$0xff]
  %v30 = vld [vmem:[%s1 + $0x68] sm:$0xff]
  %v31 = vld [vmem:[%s1 + $0x70] sm:$0xff]
  %v32 = vld [vmem:[%s1 + $0x78] sm:$0xff]
  %v33 = vld [vmem:[%s1 + $0x80] sm:$0xff]
  %v34 = vld [vmem:[%s1 + $0x88] sm:$0xff]
  %v35 = vld [vmem:[%s1 + $0x90] sm:$0xff]
  %v36 = vld [vmem:[%s1 + $0x98] sm:$0xff]
  %v37 = vld [vmem:[%s1 + $0xa0] sm:$0xff]
  %v38 = vld [vmem:[%s1 + $0xa8] sm:$0xff]
  %v39 = vld [vmem:[%s1 + $0xb0] sm:$0xff]
  %v40 = vld [vmem:[%s1 + $0xb8] sm:$0xff]
  %v41 = vld [vmem:[%s1 + $0xc0] sm:$0xff]
  %v42 = vld [vmem:[%s1 + $0xc8] sm:$0xff]
  %v43 = vld [vmem:[%s1 + $0xd0] sm:$0xff]
  %v44 = vld [vmem:[%s1 + $0xd8] sm:$0xff]
  %v45 = vld [vmem:[%s1 + $0xe0] sm:$0xff]
  %v46 = vld [vmem:[%s1 + $0xe8] sm:$0xff]
  %v47 = vld [vmem:[%s1 + $0xf0] sm:$0xff]
  %v48 = vld [vmem:[%s1 + $0xf8] sm:$0xff]
  %v49 = vld [vmem:[%s1 + $0x100] sm:$0xff]
  %v50 = vld [vmem:[%s1 + $0x108] sm:$0xff]
  %v51 = vld [vmem:[%s1 + $0x110] sm:$0xff]
  %v52 = vld [vmem:[%s1 + $0x118] sm:$0xff]
  %v53 = vld [vmem:[%s1 + $0x120] sm:$0xff]
  %v54 = vld [vmem:[%s1 + $0x128] sm:$0xff]
  %v55 = vld [vmem:[%s1 + $0x130] sm:$0xff]
  %v56 = vld [vmem:[%s1 + $0x138] sm:$0xff]
  %v57 = vld [vmem:[%s1 + $0x140] sm:$0xff]
  %v58 = vld [vmem:[%s1 + $0x148] sm:$0xff]
  %v59 = vld [vmem:[%s1 + $0x150] sm:$0xff]
  %v60 = vld [vmem:[%s1 + $0x158] sm:$0xff]
  %v61 = vld [vmem:[%s1 + $0x160] sm:$0xff]
  %v62 = vld [vmem:[%s1 + $0x168] sm:$0xff]
  %v63 = vld [vmem:[%s1 + $0x170] sm:$0xff]
  %v64 = vld [vmem:[%s1 + $0x178] sm:$0xff]
  %v65 = vld [vmem:[%s2] sm:$0x1]
  %v67 = vlaneseq
  %v68 = vshrl.u32 %v67, 7
  %v69 = vsub.s32 0, %v68
  %v70 = vrot.slane %v65, %v69
  %72 = vmatprep.subr.mxu0 0.0
  %73 = vmatpush1.msra.mxu0 %v17
  %74 = vmatprep.subr.mxu0 0.0
  %75 = vmatpush1.msra.mxu0 %v18
  %76 = vmatprep.subr.mxu0 0.0
  %77 = vmatpush1.msra.mxu0 %v19
  %78 = vmatprep.subr.mxu0 0.0
  %79 = vmatpush1.msra.mxu0 %v20
  %80 = vmatprep.subr.mxu0 0.0
  %81 = vmatpush1.msra.mxu0 %v21
  %82 = vmatprep.subr.mxu0 0.0
  %83 = vmatpush1.msra.mxu0 %v22
  %84 = vmatprep.subr.mxu0 0.0
  %85 = vmatpush1.msra.mxu0 %v23
  %86 = vmatprep.subr.mxu0 0.0
  %87 = vmatpush1.msra.mxu0 %v24
  %88 = vmatprep.subr.mxu0 0.0
  %89 = vmatpush1.msra.mxu0 %v25
  %90 = vmatprep.subr.mxu0 0.0
  %91 = vmatpush1.msra.mxu0 %v26
  %92 = vmatprep.subr.mxu0 0.0
  %93 = vmatpush1.msra.mxu0 %v27
  %94 = vmatprep.subr.mxu0 0.0
  %95 = vmatpush1.msra.mxu0 %v28
  %96 = vmatprep.subr.mxu0 0.0
  %97 = vmatpush1.msra.mxu0 %v29
  %98 = vmatprep.subr.mxu0 0.0
  %99 = vmatpush1.msra.mxu0 %v30
  %100 = vmatprep.subr.mxu0 0.0
  %101 = vmatpush1.msra.mxu0 %v31
  %102 = vmatprep.subr.mxu0 0.0
  %103 = vmatpush1.msra.mxu0 %v32
  %104 = vmatprep.subr.mxu0 0.0
  %105 = vmatpush1.msra.mxu0 %v33
  %106 = vmatprep.subr.mxu0 0.0
  %107 = vmatpush1.msra.mxu0 %v34
  %108 = vmatprep.subr.mxu0 0.0
  %109 = vmatpush1.msra.mxu0 %v35
  %110 = vmatprep.subr.mxu0 0.0
  %111 = vmatpush1.msra.mxu0 %v36
  %112 = vmatprep.subr.mxu0 0.0
  %113 = vmatpush1.msra.mxu0 %v37
  %114 = vmatprep.subr.mxu0 0.0
  %115 = vmatpush1.msra.mxu0 %v38
  %116 = vmatprep.subr.mxu0 0.0
  %117 = vmatpush1.msra.mxu0 %v39
  %118 = vmatprep.subr.mxu0 0.0
  %119 = vmatpush1.msra.mxu0 %v40
  %120 = vmatprep.subr.mxu0 0.0
  %121 = vmatpush1.msra.mxu0 %v41
  %122 = vmatprep.subr.mxu0 0.0
  %123 = vmatpush1.msra.mxu0 %v42
  %124 = vmatprep.subr.mxu0 0.0
  %125 = vmatpush1.msra.mxu0 %v43
  %126 = vmatprep.subr.mxu0 0.0
  %127 = vmatpush1.msra.mxu0 %v44
  %128 = vmatprep.subr.mxu0 0.0
  %129 = vmatpush1.msra.mxu0 %v45
  %130 = vmatprep.subr.mxu0 0.0
  %131 = vmatpush1.msra.mxu0 %v46
  %132 = vmatprep.subr.mxu0 0.0
  %133 = vmatpush1.msra.mxu0 %v47
  %134 = vmatprep.subr.mxu0 0.0
  %135 = vmatpush1.msra.mxu0 %v48
  %136 = vmatprep.mubr.f32.mxu0 %v15
  %137 = vmatmul.mubr.f32.gmra.mrb[0].mxu0 %v14
  %v138 = vpop.f32.mrb[0].mxu0
  %v139 = vadd.f32 %v70, %v138
  %v140 = vpop.f32.mrb[0].mxu0
  %141 = vdwg.mxu0
  %142 = vmatprep.subr.mxu0 0.0
  %143 = vmatpush1.msra.mxu0 %v49
  %144 = vmatprep.subr.mxu0 0.0
  %145 = vmatpush1.msra.mxu0 %v50
  %146 = vmatprep.subr.mxu0 0.0
  %147 = vmatpush1.msra.mxu0 %v51
  %148 = vmatprep.subr.mxu0 0.0
  %149 = vmatpush1.msra.mxu0 %v52
  %150 = vmatprep.subr.mxu0 0.0
  %151 = vmatpush1.msra.mxu0 %v53
  %152 = vmatprep.subr.mxu0 0.0
  %153 = vmatpush1.msra.mxu0 %v54
  %154 = vmatprep.subr.mxu0 0.0
  %155 = vmatpush1.msra.mxu0 %v55
  %156 = vmatprep.subr.mxu0 0.0
  %157 = vmatpush1.msra.mxu0 %v56
  %158 = vmatprep.subr.mxu0 0.0
  %159 = vmatpush1.msra.mxu0 %v57
  %160 = vmatprep.subr.mxu0 0.0
  %161 = vmatpush1.msra.mxu0 %v58
  %162 = vmatprep.subr.mxu0 0.0
  %163 = vmatpush1.msra.mxu0 %v59
  %164 = vmatprep.subr.mxu0 0.0
  %165 = vmatpush1.msra.mxu0 %v60
  %166 = vmatprep.subr.mxu0 0.0
  %167 = vmatpush1.msra.mxu0 %v61
  %168 = vmatprep.subr.mxu0 0.0
  %169 = vmatpush1.msra.mxu0 %v62
  %170 = vmatprep.subr.mxu0 0.0
  %171 = vmatpush1.msra.mxu0 %v63
  %172 = vmatprep.subr.mxu0 0.0
  %173 = vmatpush1.msra.mxu0 %v64
  %174 = vmatprep.subr.mxu0 0.0
  %175 = vmatpush1.msra.mxu0 0.0
  %176 = vmatprep.subr.mxu0 0.0
  %177 = vmatpush1.msra.mxu0 0.0
  %178 = vmatprep.subr.mxu0 0.0
  %179 = vmatpush1.msra.mxu0 0.0
  %180 = vmatprep.subr.mxu0 0.0
  %181 = vmatpush1.msra.mxu0 0.0
  %182 = vmatprep.subr.mxu0 0.0
  %183 = vmatpush1.msra.mxu0 0.0
  %184 = vmatprep.subr.mxu0 0.0
  %185 = vmatpush1.msra.mxu0 0.0
  %186 = vmatprep.subr.mxu0 0.0
  %187 = vmatpush1.msra.mxu0 0.0
  %188 = vmatprep.subr.mxu0 0.0
  %189 = vmatpush1.msra.mxu0 0.0
  %190 = vmatprep.subr.mxu0 0.0
  %191 = vmatpush1.msra.mxu0 0.0
  %192 = vmatprep.subr.mxu0 0.0
  %193 = vmatpush1.msra.mxu0 0.0
  %194 = vmatprep.subr.mxu0 0.0
  %195 = vmatpush1.msra.mxu0 0.0
  %196 = vmatprep.subr.mxu0 0.0
  %197 = vmatpush1.msra.mxu0 0.0
  %198 = vmatprep.subr.mxu0 0.0
  %199 = vmatpush1.msra.mxu0 0.0
  %200 = vmatprep.subr.mxu0 0.0
  %201 = vmatpush1.msra.mxu0 0.0
  %202 = vmatprep.subr.mxu0 0.0
  %203 = vmatpush1.msra.mxu0 0.0
  %204 = vmatprep.subr.mxu0 0.0
  %205 = vmatpush1.msra.mxu0 0.0
  %206 = vmatprep.mubr.f32.mxu0 0.0
  %207 = vmatmul.mubr.f32.gmra.mrb[0].mxu0 %v16
  %v208 = vpop.f32.mrb[0].mxu0
  %v209 = vadd.f32 %v139, %v208
  %v210 = vpop.f32.mrb[0].mxu0
  %211 = vdwg.mxu0
  %vm212 = vcmask 523264
  %213 = vst.msk [vmem:[%s3] sm:$0xff] %vm212, %v209
  // Predicated region
  $region14: #{vae_forward.11} parent=0 // pred_check
    _
  $region15: #{vae_forward.11} parent=0 // pred_check_branch
    %215 = sbr.rel (0) target = $region17
  $region16: #{vae_forward.11} parent=0 // pred_region
    _
  $region17: #{vae_forward.11} parent=0 // pred_fallthru
    _
  // Predicated region
  $region18: #{vae_forward.11} parent=0 // pred_check
    _
  $region19: #{vae_forward.11} parent=0 // pred_check_branch
    %217 = sbr.rel (0) target = $region21
  $region20: #{vae_forward.11} parent=0 // pred_region
    _
  $region21: #{vae_forward.11} parent=0 // pred_fallthru
    _

// kernel: vae_forward.10
$region0: #{vae_forward.10}
  #allocation0 [shape = 'u32[]', space=smem, size = 0x4, offset = 0x4, fixed_abs, tag = 'smem constant byte address 0x4 - core index']
  #allocation1 [shape = 'u32[144,128]{1,0:T(1,128)}', space=vmem, size = 0x12000, scoped, tag = 'internal scratch']
  %s0 = inlined_call_operand.vmem [shape: f32[2,512], index: 0, kind: input, shape index: {}]
  %s1 = inlined_call_operand.hbm [shape: f32[2,32], index: 1, kind: input, shape index: {}]
  %s2 = inlined_call_operand.hbm [shape: f32[512,1024], index: 2, kind: input, shape index: {}]
  %s3 = inlined_call_operand.hbm [shape: f32[1,1024], index: 3, kind: input, shape index: {}]
  %s4 = inlined_call_operand.vmem [shape: f32[1024,64], index: 4, kind: input, shape index: {}]
  %s5 = inlined_call_operand.hbm [shape: f32[1,64], index: 5, kind: input, shape index: {}]
  %s6 = inlined_call_operand.hbm [shape: f32[32,512], index: 6, kind: input, shape index: {}]
  %s7 = inlined_call_operand.hbm [shape: f32[1,512], index: 7, kind: input, shape index: {}]
  %s8 = inlined_call_operand.hbm [shape: f32[1,512], index: 8, kind: input, shape index: {}]
  %s9 = inlined_call_operand.hbm [shape: f32[1,512], index: 9, kind: input, shape index: {}]
  %s10 = inlined_call_operand.vmem [shape: f32[32,16], index: 10, kind: input, shape index: {}]
  %s11 = inlined_call_operand.hbm [shape: f32[1,16], index: 11, kind: input, shape index: {}]
  %s12 = inlined_call_operand.vmem [shape: f32[16,4], index: 12, kind: input, shape index: {}]
  %s13 = inlined_call_operand.hbm [shape: f32[1,4], index: 13, kind: input, shape index: {}]
  %s14 = inlined_call_operand.vmem [shape: f32[4,2], index: 14, kind: input, shape index: {}]
  %s15 = inlined_call_operand.hbm [shape: f32[1,2], index: 15, kind: input, shape index: {}]
  %s16 = inlined_call_operand.hbm [shape: f32[2,32], index: 16, kind: output, shape index: {0}]
  %s17 = inlined_call_operand.hbm [shape: f32[2,32], index: 17, kind: output, shape index: {1}]
  %s18 = inlined_call_operand.hbm [shape: f32[2,32], index: 18, kind: output, shape index: {2}]
  %s19 = inlined_call_operand.vmem [shape: f32[2,512], index: 19, kind: output, shape index: {3}]
  %s20 = inlined_call_operand.hbm [shape: f32[2,2], index: 20, kind: output, shape index: {4}]
  %21 = xla_tuple %s16, %s17, %s18, %s19, %s20
  %s22 = sld [smem:[#allocation0]]
  $region150: #{vae_forward.10} parent=0
    _
  %s24 = ssub.s32 1, %s22
  %s25 = scalar_select 0, %s24, %s22
  $region1: #{vae_forward.10} parent=0
    #allocation2 [shape = 'u8[1024]{0}', space=vmem, size = 0x400, scoped, tag = 'input window, operand 1, single buffered']
    #allocation3 [shape = 's32[1]{0}', space=sflag, size = 0x4, scoped, tag = 'scoped memory for vae_forward.10']
    #allocation4 [shape = 's32[1]{0}', space=sflag, size = 0x4, scoped, tag = 'scoped memory for vae_forward.10']
    #allocation5 [shape = 'u8[2097152]{0}', space=vmem, size = 0x200000, scoped, tag = 'input window, operand 2, single buffered']
    #allocation6 [shape = 's32[1]{0}', space=sflag, size = 0x4, scoped, tag = 'scoped memory for vae_forward.10']
    #allocation7 [shape = 'u8[4096]{0}', space=vmem, size = 0x1000, scoped, tag = 'input window, operand 3, single buffered']
    #allocation8 [shape = 'u8[512]{0}', space=vmem, size = 0x400, scoped, tag = 'input window, operand 5, single buffered']
    #allocation9 [shape = 's32[1]{0}', space=sflag, size = 0x4, scoped, tag = 'scoped memory for vae_forward.10']
    #allocation10 [shape = 'u8[65536]{0}', space=vmem, size = 0x10000, scoped, tag = 'input window, operand 6, single buffered']
    #allocation11 [shape = 'u8[2048]{0}', space=vmem, size = 0x800, scoped, tag = 'input window, operand 7, single buffered']
    #allocation12 [shape = 's32[1]{0}', space=sflag, size = 0x4, scoped, tag = 'scoped memory for vae_forward.10']
    #allocation13 [shape = 'u8[2048]{0}', space=vmem, size = 0x800, scoped, tag = 'input window, operand 8, single buffered']
    #allocation14 [shape = 'u8[2048]{0}', space=vmem, size = 0x800, scoped, tag = 'input window, operand 9, single buffered']
    #allocation15 [shape = 's32[1]{0}', space=sflag, size = 0x4, scoped, tag = 'scoped memory for vae_forward.10']
    #allocation16 [shape = 'u8[512]{0}', space=vmem, size = 0x400, scoped, tag = 'input window, operand 11, single buffered']
    #allocation17 [shape = 'u8[512]{0}', space=vmem, size = 0x400, scoped, tag = 'input window, operand 13, single buffered']
    #allocation18 [shape = 's32[1]{0}', space=sflag, size = 0x4, scoped, tag = 'scoped memory for vae_forward.10']
    #allocation19 [shape = 'u8[512]{0}', space=vmem, size = 0x400, scoped, tag = 'input window, operand 15, single buffered']
    #allocation20 [shape = 'u8[1024]{0}', space=vmem, size = 0x400, scoped, tag = 'output window, operand 0, single buffered']
    #allocation21 [shape = 'u8[1024]{0}', space=vmem, size = 0x400, scoped, tag = 'output window, operand 1, single buffered']
    #allocation22 [shape = 's32[1]{0}', space=sflag, size = 0x4, scoped, tag = 'scoped memory for vae_forward.10']
    #allocation23 [shape = 'u8[1024]{0}', space=vmem, size = 0x400, scoped, tag = 'output window, operand 2, single buffered']
    #allocation24 [shape = 'u8[1024]{0}', space=vmem, size = 0x400, scoped, tag = 'output window, operand 4, single buffered']
    #allocation25 [shape = 's32[1]{0}', space=sflag, size = 0x4, scoped, tag = 'scoped memory for vae_forward.10']
    %26 = vsyncpa [#allocation3], 0
    %27 = vsyncpa [#allocation6], 0
    %28 = vsyncpa [#allocation9], 0
    %29 = vsyncpa [#allocation12], 0
    %30 = vsyncpa [#allocation15], 0
    %31 = vsyncpa [#allocation18], 0
    %32 = vsyncpa [#allocation4], 0
    %33 = vsyncpa [#allocation22], 0
    %34 = vsyncpa [#allocation25], 0
    // Predicated region
    $region2: #{vae_forward.10} parent=1 // pred_check
      _
    $region3: #{vae_forward.10} parent=1 // pred_check_branch
      %36 = sbr.rel (0) target = $region5
    $region4: #{vae_forward.10} parent=1 // pred_region
      _
    $region5: #{vae_forward.10} parent=1 // pred_fallthru
      _
    // Predicated region
    $region6: #{vae_forward.10} parent=1 // pred_check
      _
    $region7: #{vae_forward.10} parent=1 // pred_check_branch
      %38 = sbr.rel (0) target = $region9
    $region8: #{vae_forward.10} parent=1 // pred_region
      %s40 = ssub.s32 32, 32
      %41 = vsyncadd [#allocation3], %s40
      %s43 = sshll.u32 [#allocation2], 4
      %s44 = int_to_ptr.vmem [resolvable:$true] %s43
      %46 = dma.hbm_to_vmem [thread:$0]  %s1, 32, %s44, [#allocation3]
    $region9: #{vae_forward.10} parent=1 // pred_fallthru
      _
    // Predicated region
    $region10: #{vae_forward.10} parent=1 // pred_check
      _
    $region11: #{vae_forward.10} parent=1 // pred_check_branch
      %48 = sbr.rel (0) target = $region13
    $region12: #{vae_forward.10} parent=1 // pred_region
      %s50 = ssub.s32 65536, 65536
      %51 = vsyncadd [#allocation6], %s50
      %s52 = sshll.u32 [#allocation5], 4
      %s53 = int_to_ptr.vmem [resolvable:$true] %s52
      %58 = dma.hbm_to_vmem [thread:$0]  %s2, 65536, %s53, [#allocation6], 1024, 1024, 64
    $region13: #{vae_forward.10} parent=1 // pred_fallthru
      _
    // Predicated region
    $region14: #{vae_forward.10} parent=1 // pred_check
      _
    $region15: #{vae_forward.10} parent=1 // pred_check_branch
      %60 = sbr.rel (0) target = $region17
    $region16: #{vae_forward.10} parent=1 // pred_region
      %s62 = ssub.s32 128, 128
      %63 = vsyncadd [#allocation6], %s62
      %s65 = sshll.u32 [#allocation7], 4
      %s66 = int_to_ptr.vmem [resolvable:$true] %s65
      %68 = dma.hbm_to_vmem [thread:$0]  %s3, 128, %s66, [#allocation6]
    $region17: #{vae_forward.10} parent=1 // pred_fallthru
      _
    // Predicated region
    $region18: #{vae_forward.10} parent=1 // pred_check
      _
    $region19: #{vae_forward.10} parent=1 // pred_check_branch
      %70 = sbr.rel (0) target = $region21
    $region20: #{vae_forward.10} parent=1 // pred_region
      _
    $region21: #{vae_forward.10} parent=1 // pred_fallthru
      _
    // Predicated region
    $region22: #{vae_forward.10} parent=1 // pred_check
      _
    $region23: #{vae_forward.10} parent=1 // pred_check_branch
      %72 = sbr.rel (0) target = $region25
    $region24: #{vae_forward.10} parent=1 // pred_region
      %s74 = ssub.s32 16, 16
      %75 = vsyncadd [#allocation9], %s74
      %s77 = sshll.u32 [#allocation8], 4
      %s78 = int_to_ptr.vmem [resolvable:$true] %s77
      %80 = dma.hbm_to_vmem [thread:$0]  %s5, 16, %s78, [#allocation9]
    $region25: #{vae_forward.10} parent=1 // pred_fallthru
      _
    // Predicated region
    $region26: #{vae_forward.10} parent=1 // pred_check
      _
    $region27: #{vae_forward.10} parent=1 // pred_check_branch
      %82 = sbr.rel (0) target = $region29
    $region28: #{vae_forward.10} parent=1 // pred_region
      %s84 = ssub.s32 2048, 2048
      %85 = vsyncadd [#allocation9], %s84
      %s86 = sshll.u32 [#allocation10], 4
      %s87 = int_to_ptr.vmem [resolvable:$true] %s86
      %92 = dma.hbm_to_vmem [thread:$0]  %s6, 2048, %s87, [#allocation9], 512, 512, 32
    $region29: #{vae_forward.10} parent=1 // pred_fallthru
      _
    // Predicated region
    $region30: #{vae_forward.10} parent=1 // pred_check
      _
    $region31: #{vae_forward.10} parent=1 // pred_check_branch
      %94 = sbr.rel (0) target = $region33
    $region32: #{vae_forward.10} parent=1 // pred_region
      %s96 = ssub.s32 64, 64
      %97 = vsyncadd [#allocation12], %s96
      %s99 = sshll.u32 [#allocation11], 4
      %s100 = int_to_ptr.vmem [resolvable:$true] %s99
      %102 = dma.hbm_to_vmem [thread:$0]  %s7, 64, %s100, [#allocation12]
    $region33: #{vae_forward.10} parent=1 // pred_fallthru
      _
    // Predicated region
    $region34: #{vae_forward.10} parent=1 // pred_check
      _
    $region35: #{vae_forward.10} parent=1 // pred_check_branch
      %104 = sbr.rel (0) target = $region37
    $region36: #{vae_forward.10} parent=1 // pred_region
      %s106 = ssub.s32 64, 64
      %107 = vsyncadd [#allocation12], %s106
      %s109 = sshll.u32 [#allocation13], 4
      %s110 = int_to_ptr.vmem [resolvable:$true] %s109
      %112 = dma.hbm_to_vmem [thread:$0]  %s8, 64, %s110, [#allocation12]
    $region37: #{vae_forward.10} parent=1 // pred_fallthru
      _
    // Predicated region
    $region38: #{vae_forward.10} parent=1 // pred_check
      _
    $region39: #{vae_forward.10} parent=1 // pred_check_branch
      %114 = sbr.rel (0) target = $region41
    $region40: #{vae_forward.10} parent=1 // pred_region
      %s116 = ssub.s32 64, 64
      %117 = vsyncadd [#allocation15], %s116
      %s119 = sshll.u32 [#allocation14], 4
      %s120 = int_to_ptr.vmem [resolvable:$true] %s119
      %122 = dma.hbm_to_vmem [thread:$0]  %s9, 64, %s120, [#allocation15]
    $region41: #{vae_forward.10} parent=1 // pred_fallthru
      _
    // Predicated region
    $region42: #{vae_forward.10} parent=1 // pred_check
      _
    $region43: #{vae_forward.10} parent=1 // pred_check_branch
      %124 = sbr.rel (0) target = $region45
    $region44: #{vae_forward.10} parent=1 // pred_region
      _
    $region45: #{vae_forward.10} parent=1 // pred_fallthru
      _
    // Predicated region
    $region46: #{vae_forward.10} parent=1 // pred_check
      _
    $region47: #{vae_forward.10} parent=1 // pred_check_branch
      %126 = sbr.rel (0) target = $region49
    $region48: #{vae_forward.10} parent=1 // pred_region
      %s128 = ssub.s32 16, 16
      %129 = vsyncadd [#allocation15], %s128
      %s131 = sshll.u32 [#allocation16], 4
      %s132 = int_to_ptr.vmem [resolvable:$true] %s131
      %134 = dma.hbm_to_vmem [thread:$0]  %s11, 16, %s132, [#allocation15]
    $region49: #{vae_forward.10} parent=1 // pred_fallthru
      _
    // Predicated region
    $region50: #{vae_forward.10} parent=1 // pred_check
      _
    $region51: #{vae_forward.10} parent=1 // pred_check_branch
      %136 = sbr.rel (0) target = $region53
    $region52: #{vae_forward.10} parent=1 // pred_region
      _
    $region53: #{vae_forward.10} parent=1 // pred_fallthru
      _
    // Predicated region
    $region54: #{vae_forward.10} parent=1 // pred_check
      _
    $region55: #{vae_forward.10} parent=1 // pred_check_branch
      %138 = sbr.rel (0) target = $region57
    $region56: #{vae_forward.10} parent=1 // pred_region
      %s140 = ssub.s32 16, 16
      %141 = vsyncadd [#allocation18], %s140
      %s143 = sshll.u32 [#allocation17], 4
      %s144 = int_to_ptr.vmem [resolvable:$true] %s143
      %146 = dma.hbm_to_vmem [thread:$0]  %s13, 16, %s144, [#allocation18]
    $region57: #{vae_forward.10} parent=1 // pred_fallthru
      _
    // Predicated region
    $region58: #{vae_forward.10} parent=1 // pred_check
      _
    $region59: #{vae_forward.10} parent=1 // pred_check_branch
      %148 = sbr.rel (0) target = $region61
    $region60: #{vae_forward.10} parent=1 // pred_region
      _
    $region61: #{vae_forward.10} parent=1 // pred_fallthru
      _
    // Predicated region
    $region62: #{vae_forward.10} parent=1 // pred_check
      _
    $region63: #{vae_forward.10} parent=1 // pred_check_branch
      %150 = sbr.rel (0) target = $region65
    $region64: #{vae_forward.10} parent=1 // pred_region
      %s152 = ssub.s32 16, 16
      %153 = vsyncadd [#allocation18], %s152
      %s155 = sshll.u32 [#allocation19], 4
      %s156 = int_to_ptr.vmem [resolvable:$true] %s155
      %158 = dma.hbm_to_vmem [thread:$0]  %s15, 16, %s156, [#allocation18]
    $region65: #{vae_forward.10} parent=1 // pred_fallthru
      _
    // Predicated region
    $region66: #{vae_forward.10} parent=1 // pred_check
      _
    $region67: #{vae_forward.10} parent=1 // pred_check_branch
      %160 = sbr.rel (0) target = $region69
    $region68: #{vae_forward.10} parent=1 // pred_region
      %161 = dma.done [#allocation3], 32
    $region69: #{vae_forward.10} parent=1 // pred_fallthru
      _
    // Predicated region
    $region70: #{vae_forward.10} parent=1 // pred_check
      _
    $region71: #{vae_forward.10} parent=1 // pred_check_branch
      %163 = sbr.rel (0) target = $region73
    $region72: #{vae_forward.10} parent=1 // pred_region
      %164 = dma.done [#allocation6], 65536
    $region73: #{vae_forward.10} parent=1 // pred_fallthru
      _
    // Predicated region
    $region74: #{vae_forward.10} parent=1 // pred_check
      _
    $region75: #{vae_forward.10} parent=1 // pred_check_branch
      %166 = sbr.rel (0) target = $region77
    $region76: #{vae_forward.10} parent=1 // pred_region
      %167 = dma.done [#allocation6], 128
    $region77: #{vae_forward.10} parent=1 // pred_fallthru
      _
    // Predicated region
    $region78: #{vae_forward.10} parent=1 // pred_check
      _
    $region79: #{vae_forward.10} parent=1 // pred_check_branch
      %169 = sbr.rel (0) target = $region81
    $region80: #{vae_forward.10} parent=1 // pred_region
      %170 = dma.done [#allocation9], 16
    $region81: #{vae_forward.10} parent=1 // pred_fallthru
      _
    // Predicated region
    $region82: #{vae_forward.10} parent=1 // pred_check
      _
    $region83: #{vae_forward.10} parent=1 // pred_check_branch
      %172 = sbr.rel (0) target = $region85
    $region84: #{vae_forward.10} parent=1 // pred_region
      %173 = dma.done [#allocation9], 2048
    $region85: #{vae_forward.10} parent=1 // pred_fallthru
      _
    // Predicated region
    $region86: #{vae_forward.10} parent=1 // pred_check
      _
    $region87: #{vae_forward.10} parent=1 // pred_check_branch
      %175 = sbr.rel (0) target = $region89
    $region88: #{vae_forward.10} parent=1 // pred_region
      %176 = dma.done [#allocation12], 64
    $region89: #{vae_forward.10} parent=1 // pred_fallthru
      _
    // Predicated region
    $region90: #{vae_forward.10} parent=1 // pred_check
      _
    $region91: #{vae_forward.10} parent=1 // pred_check_branch
      %178 = sbr.rel (0) target = $region93
    $region92: #{vae_forward.10} parent=1 // pred_region
      %179 = dma.done [#allocation12], 64
    $region93: #{vae_forward.10} parent=1 // pred_fallthru
      _
    // Predicated region
    $region94: #{vae_forward.10} parent=1 // pred_check
      _
    $region95: #{vae_forward.10} parent=1 // pred_check_branch
      %181 = sbr.rel (0) target = $region97
    $region96: #{vae_forward.10} parent=1 // pred_region
      %182 = dma.done [#allocation15], 64
    $region97: #{vae_forward.10} parent=1 // pred_fallthru
      _
    // Predicated region
    $region98: #{vae_forward.10} parent=1 // pred_check
      _
    $region99: #{vae_forward.10} parent=1 // pred_check_branch
      %184 = sbr.rel (0) target = $region101
    $region100: #{vae_forward.10} parent=1 // pred_region
      %185 = dma.done [#allocation15], 16
    $region101: #{vae_forward.10} parent=1 // pred_fallthru
      _
    // Predicated region
    $region102: #{vae_forward.10} parent=1 // pred_check
      _
    $region103: #{vae_forward.10} parent=1 // pred_check_branch
      %187 = sbr.rel (0) target = $region105
    $region104: #{vae_forward.10} parent=1 // pred_region
      %188 = dma.done [#allocation18], 16
    $region105: #{vae_forward.10} parent=1 // pred_fallthru
      _
    // Predicated region
    $region106: #{vae_forward.10} parent=1 // pred_check
      _
    $region107: #{vae_forward.10} parent=1 // pred_check_branch
      %190 = sbr.rel (0) target = $region109
    $region108: #{vae_forward.10} parent=1 // pred_region
      %191 = dma.done [#allocation18], 16
    $region109: #{vae_forward.10} parent=1 // pred_fallthru
      _
    %v192 = vld [vmem:[%s0] sm:$0xff]
    %v193 = vld [vmem:[#allocation5] sm:$0xff]
    %v194 = vld [vmem:[#allocation5 + $0x8] sm:$0xff]
    %v195 = vld [vmem:[#allocation5 + $0x10] sm:$0xff]
    %v196 = vld [vmem:[#allocation5 + $0x18] sm:$0xff]
    %v197 = vld [vmem:[#allocation5 + $0x20] sm:$0xff]
    %v198 = vld [vmem:[#allocation5 + $0x28] sm:$0xff]
    %v199 = vld [vmem:[#allocation5 + $0x30] sm:$0xff]
    %v200 = vld [vmem:[#allocation5 + $0x38] sm:$0xff]
    %v201 = vld [vmem:[#allocation5 + $0x40] sm:$0xff]
    %v202 = vld [vmem:[#allocation5 + $0x48] sm:$0xff]
    %v203 = vld [vmem:[#allocation5 + $0x50] sm:$0xff]
    %v204 = vld [vmem:[#allocation5 + $0x58] sm:$0xff]
    %v205 = vld [vmem:[#allocation5 + $0x60] sm:$0xff]
    %v206 = vld [vmem:[#allocation5 + $0x68] sm:$0xff]
    %v207 = vld [vmem:[#allocation5 + $0x70] sm:$0xff]
    %v208 = vld [vmem:[#allocation5 + $0x78] sm:$0xff]
    %v209 = vld [vmem:[#allocation5 + $0x80] sm:$0xff]
    %v210 = vld [vmem:[#allocation5 + $0x88] sm:$0xff]
    %v211 = vld [vmem:[#allocation5 + $0x90] sm:$0xff]
    %v212 = vld [vmem:[#allocation5 + $0x98] sm:$0xff]
    %v213 = vld [vmem:[#allocation5 + $0xa0] sm:$0xff]
    %v214 = vld [vmem:[#allocation5 + $0xa8] sm:$0xff]
    %v215 = vld [vmem:[#allocation5 + $0xb0] sm:$0xff]
    %v216 = vld [vmem:[#allocation5 + $0xb8] sm:$0xff]
    %v217 = vld [vmem:[#allocation5 + $0xc0] sm:$0xff]
    %v218 = vld [vmem:[#allocation5 + $0xc8] sm:$0xff]
    %v219 = vld [vmem:[#allocation5 + $0xd0] sm:$0xff]
    %v220 = vld [vmem:[#allocation5 + $0xd8] sm:$0xff]
    %v221 = vld [vmem:[#allocation5 + $0xe0] sm:$0xff]
    %v222 = vld [vmem:[#allocation5 + $0xe8] sm:$0xff]
    %v223 = vld [vmem:[#allocation5 + $0xf0] sm:$0xff]
    %v224 = vld [vmem:[#allocation5 + $0xf8] sm:$0xff]
    %v225 = vld [vmem:[#allocation5 + $0x100] sm:$0xff]
    %v226 = vld [vmem:[#allocation5 + $0x108] sm:$0xff]
    %v227 = vld [vmem:[#allocation5 + $0x110] sm:$0xff]
    %v228 = vld [vmem:[#allocation5 + $0x118] sm:$0xff]
    %v229 = vld [vmem:[#allocation5 + $0x120] sm:$0xff]
    %v230 = vld [vmem:[#allocation5 + $0x128] sm:$0xff]
    %v231 = vld [vmem:[#allocation5 + $0x130] sm:$0xff]
    %v232 = vld [vmem:[#allocation5 + $0x138] sm:$0xff]
    %v233 = vld [vmem:[#allocation5 + $0x140] sm:$0xff]
    %v234 = vld [vmem:[#allocation5 + $0x148] sm:$0xff]
    %v235 = vld [vmem:[#allocation5 + $0x150] sm:$0xff]
    %v236 = vld [vmem:[#allocation5 + $0x158] sm:$0xff]
    %v237 = vld [vmem:[#allocation5 + $0x160] sm:$0xff]
    %v238 = vld [vmem:[#allocation5 + $0x168] sm:$0xff]
    %v239 = vld [vmem:[#allocation5 + $0x170] sm:$0xff]
    %v240 = vld [vmem:[#allocation5 + $0x178] sm:$0xff]
    %v241 = vld [vmem:[#allocation5 + $0x180] sm:$0xff]
    %v242 = vld [vmem:[#allocation5 + $0x188] sm:$0xff]
    %v243 = vld [vmem:[#allocation5 + $0x190] sm:$0xff]
    %v244 = vld [vmem:[#allocation5 + $0x198] sm:$0xff]
    %v245 = vld [vmem:[#allocation5 + $0x1a0] sm:$0xff]
    %v246 = vld [vmem:[#allocation5 + $0x1a8] sm:$0xff]
    %v247 = vld [vmem:[#allocation5 + $0x1b0] sm:$0xff]
    %v248 = vld [vmem:[#allocation5 + $0x1b8] sm:$0xff]
    %v249 = vld [vmem:[#allocation5 + $0x1c0] sm:$0xff]
    %v250 = vld [vmem:[#allocation5 + $0x1c8] sm:$0xff]
    %v251 = vld [vmem:[#allocation5 + $0x1d0] sm:$0xff]
    %v252 = vld [vmem:[#allocation5 + $0x1d8] sm:$0xff]
    %v253 = vld [vmem:[#allocation5 + $0x1e0] sm:$0xff]
    %v254 = vld [vmem:[#allocation5 + $0x1e8] sm:$0xff]
    %v255 = vld [vmem:[#allocation5 + $0x1f0] sm:$0xff]
    %v256 = vld [vmem:[#allocation5 + $0x1f8] sm:$0xff]
    %v257 = vld [vmem:[#allocation5 + $0x200] sm:$0xff]
    %v258 = vld [vmem:[#allocation5 + $0x208] sm:$0xff]
    %v259 = vld [vmem:[#allocation5 + $0x210] sm:$0xff]
    %v260 = vld [vmem:[#allocation5 + $0x218] sm:$0xff]
    %v261 = vld [vmem:[#allocation5 + $0x220] sm:$0xff]
    %v262 = vld [vmem:[#allocation5 + $0x228] sm:$0xff]
    %v263 = vld [vmem:[#allocation5 + $0x230] sm:$0xff]
    %v264 = vld [vmem:[#allocation5 + $0x238] sm:$0xff]
    %v265 = vld [vmem:[#allocation5 + $0x240] sm:$0xff]
    %v266 = vld [vmem:[#allocation5 + $0x248] sm:$0xff]
    %v267 = vld [vmem:[#allocation5 + $0x250] sm:$0xff]
    %v268 = vld [vmem:[#allocation5 + $0x258] sm:$0xff]
    %v269 = vld [vmem:[#allocation5 + $0x260] sm:$0xff]
    %v270 = vld [vmem:[#allocation5 + $0x268] sm:$0xff]
    %v271 = vld [vmem:[#allocation5 + $0x270] sm:$0xff]
    %v272 = vld [vmem:[#allocation5 + $0x278] sm:$0xff]
    %v273 = vld [vmem:[#allocation5 + $0x280] sm:$0xff]
    %v274 = vld [vmem:[#allocation5 + $0x288] sm:$0xff]
    %v275 = vld [vmem:[#allocation5 + $0x290] sm:$0xff]
    %v276 = vld [vmem:[#allocation5 + $0x298] sm:$0xff]
    %v277 = vld [vmem:[#allocation5 + $0x2a0] sm:$0xff]
    %v278 = vld [vmem:[#allocation5 + $0x2a8] sm:$0xff]
    %v279 = vld [vmem:[#allocation5 + $0x2b0] sm:$0xff]
    %v280 = vld [vmem:[#allocation5 + $0x2b8] sm:$0xff]
    %v281 = vld [vmem:[#allocation5 + $0x2c0] sm:$0xff]
    %v282 = vld [vmem:[#allocation5 + $0x2c8] sm:$0xff]
    %v283 = vld [vmem:[#allocation5 + $0x2d0] sm:$0xff]
    %v284 = vld [vmem:[#allocation5 + $0x2d8] sm:$0xff]
    %v285 = vld [vmem:[#allocation5 + $0x2e0] sm:$0xff]
    %v286 = vld [vmem:[#allocation5 + $0x2e8] sm:$0xff]
    %v287 = vld [vmem:[#allocation5 + $0x2f0] sm:$0xff]
    %v288 = vld [vmem:[#allocation5 + $0x2f8] sm:$0xff]
    %v289 = vld [vmem:[#allocation5 + $0x300] sm:$0xff]
    %v290 = vld [vmem:[#allocation5 + $0x308] sm:$0xff]
    %v291 = vld [vmem:[#allocation5 + $0x310] sm:$0xff]
    %v292 = vld [vmem:[#allocation5 + $0x318] sm:$0xff]
    %v293 = vld [vmem:[#allocation5 + $0x320] sm:$0xff]
    %v294 = vld [vmem:[#allocation5 + $0x328] sm:$0xff]
    %v295 = vld [vmem:[#allocation5 + $0x330] sm:$0xff]
    %v296 = vld [vmem:[#allocation5 + $0x338] sm:$0xff]
    %v297 = vld [vmem:[#allocation5 + $0x340] sm:$0xff]
    %v298 = vld [vmem:[#allocation5 + $0x348] sm:$0xff]
    %v299 = vld [vmem:[#allocation5 + $0x350] sm:$0xff]
    %v300 = vld [vmem:[#allocation5 + $0x358] sm:$0xff]
    %v301 = vld [vmem:[#allocation5 + $0x360] sm:$0xff]
    %v302 = vld [vmem:[#allocation5 + $0x368] sm:$0xff]
    %v303 = vld [vmem:[#allocation5 + $0x370] sm:$0xff]
    %v304 = vld [vmem:[#allocation5 + $0x378] sm:$0xff]
    %v305 = vld [vmem:[#allocation5 + $0x380] sm:$0xff]
    %v306 = vld [vmem:[#allocation5 + $0x388] sm:$0xff]
    %v307 = vld [vmem:[#allocation5 + $0x390] sm:$0xff]
    %v308 = vld [vmem:[#allocation5 + $0x398] sm:$0xff]
    %v309 = vld [vmem:[#allocation5 + $0x3a0] sm:$0xff]
    %v310 = vld [vmem:[#allocation5 + $0x3a8] sm:$0xff]
    %v311 = vld [vmem:[#allocation5 + $0x3b0] sm:$0xff]
    %v312 = vld [vmem:[#allocation5 + $0x3b8] sm:$0xff]
    %v313 = vld [vmem:[#allocation5 + $0x3c0] sm:$0xff]
    %v314 = vld [vmem:[#allocation5 + $0x3c8] sm:$0xff]
    %v315 = vld [vmem:[#allocation5 + $0x3d0] sm:$0xff]
    %v316 = vld [vmem:[#allocation5 + $0x3d8] sm:$0xff]
    %v317 = vld [vmem:[#allocation5 + $0x3e0] sm:$0xff]
    %v318 = vld [vmem:[#allocation5 + $0x3e8] sm:$0xff]
    %v319 = vld [vmem:[#allocation5 + $0x3f0] sm:$0xff]
    %v320 = vld [vmem:[#allocation5 + $0x3f8] sm:$0xff]
    %v321 = vld [vmem:[#allocation5 + $0x400] sm:$0xff]
    %v322 = vld [vmem:[#allocation5 + $0x408] sm:$0xff]
    %v323 = vld [vmem:[#allocation5 + $0x410] sm:$0xff]
    %v324 = vld [vmem:[#allocation5 + $0x418] sm:$0xff]
    %v325 = vld [vmem:[#allocation5 + $0x420] sm:$0xff]
    %v326 = vld [vmem:[#allocation5 + $0x428] sm:$0xff]
    %v327 = vld [vmem:[#allocation5 + $0x430] sm:$0xff]
    %v328 = vld [vmem:[#allocation5 + $0x438] sm:$0xff]
    %v329 = vld [vmem:[#allocation5 + $0x440] sm:$0xff]
    %v330 = vld [vmem:[#allocation5 + $0x448] sm:$0xff]
    %v331 = vld [vmem:[#allocation5 + $0x450] sm:$0xff]
    %v332 = vld [vmem:[#allocation5 + $0x458] sm:$0xff]
    %v333 = vld [vmem:[#allocation5 + $0x460] sm:$0xff]
    %v334 = vld [vmem:[#allocation5 + $0x468] sm:$0xff]
    %v335 = vld [vmem:[#allocation5 + $0x470] sm:$0xff]
    %v336 = vld [vmem:[#allocation5 + $0x478] sm:$0xff]
    %v337 = vld [vmem:[#allocation5 + $0x480] sm:$0xff]
    %v338 = vld [vmem:[#allocation5 + $0x488] sm:$0xff]
    %v339 = vld [vmem:[#allocation5 + $0x490] sm:$0xff]
    %v340 = vld [vmem:[#allocation5 + $0x498] sm:$0xff]
    %v341 = vld [vmem:[#allocation5 + $0x4a0] sm:$0xff]
    %v342 = vld [vmem:[#allocation5 + $0x4a8] sm:$0xff]
    %v343 = vld [vmem:[#allocation5 + $0x4b0] sm:$0xff]
    %v344 = vld [vmem:[#allocation5 + $0x4b8] sm:$0xff]
    %v345 = vld [vmem:[#allocation5 + $0x4c0] sm:$0xff]
    %v346 = vld [vmem:[#allocation5 + $0x4c8] sm:$0xff]
    %v347 = vld [vmem:[#allocation5 + $0x4d0] sm:$0xff]
    %v348 = vld [vmem:[#allocation5 + $0x4d8] sm:$0xff]
    %v349 = vld [vmem:[#allocation5 + $0x4e0] sm:$0xff]
    %v350 = vld [vmem:[#allocation5 + $0x4e8] sm:$0xff]
    %v351 = vld [vmem:[#allocation5 + $0x4f0] sm:$0xff]
    %v352 = vld [vmem:[#allocation5 + $0x4f8] sm:$0xff]
    %v353 = vld [vmem:[#allocation5 + $0x500] sm:$0xff]
    %v354 = vld [vmem:[#allocation5 + $0x508] sm:$0xff]
    %v355 = vld [vmem:[#allocation5 + $0x510] sm:$0xff]
    %v356 = vld [vmem:[#allocation5 + $0x518] sm:$0xff]
    %v357 = vld [vmem:[#allocation5 + $0x520] sm:$0xff]
    %v358 = vld [vmem:[#allocation5 + $0x528] sm:$0xff]
    %v359 = vld [vmem:[#allocation5 + $0x530] sm:$0xff]
    %v360 = vld [vmem:[#allocation5 + $0x538] sm:$0xff]
    %v361 = vld [vmem:[#allocation5 + $0x540] sm:$0xff]
    %v362 = vld [vmem:[#allocation5 + $0x548] sm:$0xff]
    %v363 = vld [vmem:[#allocation5 + $0x550] sm:$0xff]
    %v364 = vld [vmem:[#allocation5 + $0x558] sm:$0xff]
    %v365 = vld [vmem:[#allocation5 + $0x560] sm:$0xff]
    %v366 = vld [vmem:[#allocation5 + $0x568] sm:$0xff]
    %v367 = vld [vmem:[#allocation5 + $0x570] sm:$0xff]
    %v368 = vld [vmem:[#allocation5 + $0x578] sm:$0xff]
    %v369 = vld [vmem:[#allocation5 + $0x580] sm:$0xff]
    %v370 = vld [vmem:[#allocation5 + $0x588] sm:$0xff]
    %v371 = vld [vmem:[#allocation5 + $0x590] sm:$0xff]
    %v372 = vld [vmem:[#allocation5 + $0x598] sm:$0xff]
    %v373 = vld [vmem:[#allocation5 + $0x5a0] sm:$0xff]
    %v374 = vld [vmem:[#allocation5 + $0x5a8] sm:$0xff]
    %v375 = vld [vmem:[#allocation5 + $0x5b0] sm:$0xff]
    %v376 = vld [vmem:[#allocation5 + $0x5b8] sm:$0xff]
    %v377 = vld [vmem:[#allocation5 + $0x5c0] sm:$0xff]
    %v378 = vld [vmem:[#allocation5 + $0x5c8] sm:$0xff]
    %v379 = vld [vmem:[#allocation5 + $0x5d0] sm:$0xff]
    %v380 = vld [vmem:[#allocation5 + $0x5d8] sm:$0xff]
    %v381 = vld [vmem:[#allocation5 + $0x5e0] sm:$0xff]
    %v382 = vld [vmem:[#allocation5 + $0x5e8] sm:$0xff]
    %v383 = vld [vmem:[#allocation5 + $0x5f0] sm:$0xff]
    %v384 = vld [vmem:[#allocation5 + $0x5f8] sm:$0xff]
    %v385 = vld [vmem:[#allocation5 + $0x600] sm:$0xff]
    %v386 = vld [vmem:[#allocation5 + $0x608] sm:$0xff]
    %v387 = vld [vmem:[#allocation5 + $0x610] sm:$0xff]
    %v388 = vld [vmem:[#allocation5 + $0x618] sm:$0xff]
    %v389 = vld [vmem:[#allocation5 + $0x620] sm:$0xff]
    %v390 = vld [vmem:[#allocation5 + $0x628] sm:$0xff]
    %v391 = vld [vmem:[#allocation5 + $0x630] sm:$0xff]
    %v392 = vld [vmem:[#allocation5 + $0x638] sm:$0xff]
    %v393 = vld [vmem:[#allocation5 + $0x640] sm:$0xff]
    %v394 = vld [vmem:[#allocation5 + $0x648] sm:$0xff]
    %v395 = vld [vmem:[#allocation5 + $0x650] sm:$0xff]
    %v396 = vld [vmem:[#allocation5 + $0x658] sm:$0xff]
    %v397 = vld [vmem:[#allocation5 + $0x660] sm:$0xff]
    %v398 = vld [vmem:[#allocation5 + $0x668] sm:$0xff]
    %v399 = vld [vmem:[#allocation5 + $0x670] sm:$0xff]
    %v400 = vld [vmem:[#allocation5 + $0x678] sm:$0xff]
    %v401 = vld [vmem:[#allocation5 + $0x680] sm:$0xff]
    %v402 = vld [vmem:[#allocation5 + $0x688] sm:$0xff]
    %v403 = vld [vmem:[#allocation5 + $0x690] sm:$0xff]
    %v404 = vld [vmem:[#allocation5 + $0x698] sm:$0xff]
    %v405 = vld [vmem:[#allocation5 + $0x6a0] sm:$0xff]
    %v406 = vld [vmem:[#allocation5 + $0x6a8] sm:$0xff]
    %v407 = vld [vmem:[#allocation5 + $0x6b0] sm:$0xff]
    %v408 = vld [vmem:[#allocation5 + $0x6b8] sm:$0xff]
    %v409 = vld [vmem:[#allocation5 + $0x6c0] sm:$0xff]
    %v410 = vld [vmem:[#allocation5 + $0x6c8] sm:$0xff]
    %v411 = vld [vmem:[#allocation5 + $0x6d0] sm:$0xff]
    %v412 = vld [vmem:[#allocation5 + $0x6d8] sm:$0xff]
    %v413 = vld [vmem:[#allocation5 + $0x6e0] sm:$0xff]
    %v414 = vld [vmem:[#allocation5 + $0x6e8] sm:$0xff]
    %v415 = vld [vmem:[#allocation5 + $0x6f0] sm:$0xff]
    %v416 = vld [vmem:[#allocation5 + $0x6f8] sm:$0xff]
    %v417 = vld [vmem:[#allocation5 + $0x700] sm:$0xff]
    %v418 = vld [vmem:[#allocation5 + $0x708] sm:$0xff]
    %v419 = vld [vmem:[#allocation5 + $0x710] sm:$0xff]
    %v420 = vld [vmem:[#allocation5 + $0x718] sm:$0xff]
    %v421 = vld [vmem:[#allocation5 + $0x720] sm:$0xff]
    %v422 = vld [vmem:[#allocation5 + $0x728] sm:$0xff]
    %v423 = vld [vmem:[#allocation5 + $0x730] sm:$0xff]
    %v424 = vld [vmem:[#allocation5 + $0x738] sm:$0xff]
    %v425 = vld [vmem:[#allocation5 + $0x740] sm:$0xff]
    %v426 = vld [vmem:[#allocation5 + $0x748] sm:$0xff]
    %v427 = vld [vmem:[#allocation5 + $0x750] sm:$0xff]
    %v428 = vld [vmem:[#allocation5 + $0x758] sm:$0xff]
    %v429 = vld [vmem:[#allocation5 + $0x760] sm:$0xff]
    %v430 = vld [vmem:[#allocation5 + $0x768] sm:$0xff]
    %v431 = vld [vmem:[#allocation5 + $0x770] sm:$0xff]
    %v432 = vld [vmem:[#allocation5 + $0x778] sm:$0xff]
    %v433 = vld [vmem:[#allocation5 + $0x780] sm:$0xff]
    %v434 = vld [vmem:[#allocation5 + $0x788] sm:$0xff]
    %v435 = vld [vmem:[#allocation5 + $0x790] sm:$0xff]
    %v436 = vld [vmem:[#allocation5 + $0x798] sm:$0xff]
    %v437 = vld [vmem:[#allocation5 + $0x7a0] sm:$0xff]
    %v438 = vld [vmem:[#allocation5 + $0x7a8] sm:$0xff]
    %v439 = vld [vmem:[#allocation5 + $0x7b0] sm:$0xff]
    %v440 = vld [vmem:[#allocation5 + $0x7b8] sm:$0xff]
    %v441 = vld [vmem:[#allocation5 + $0x7c0] sm:$0xff]
    %v442 = vld [vmem:[#allocation5 + $0x7c8] sm:$0xff]
    %v443 = vld [vmem:[#allocation5 + $0x7d0] sm:$0xff]
    %v444 = vld [vmem:[#allocation5 + $0x7d8] sm:$0xff]
    %v445 = vld [vmem:[#allocation5 + $0x7e0] sm:$0xff]
    %v446 = vld [vmem:[#allocation5 + $0x7e8] sm:$0xff]
    %v447 = vld [vmem:[#allocation5 + $0x7f0] sm:$0xff]
    %v448 = vld [vmem:[#allocation5 + $0x7f8] sm:$0xff]
    %v449 = vld [vmem:[#allocation5 + $0x800] sm:$0xff]
    %v450 = vld [vmem:[#allocation5 + $0x808] sm:$0xff]
    %v451 = vld [vmem:[#allocation5 + $0x810] sm:$0xff]
    %v452 = vld [vmem:[#allocation5 + $0x818] sm:$0xff]
    %v453 = vld [vmem:[#allocation5 + $0x820] sm:$0xff]
    %v454 = vld [vmem:[#allocation5 + $0x828] sm:$0xff]
    %v455 = vld [vmem:[#allocation5 + $0x830] sm:$0xff]
    %v456 = vld [vmem:[#allocation5 + $0x838] sm:$0xff]
    %v457 = vld [vmem:[#allocation5 + $0x840] sm:$0xff]
    %v458 = vld [vmem:[#allocation5 + $0x848] sm:$0xff]
    %v459 = vld [vmem:[#allocation5 + $0x850] sm:$0xff]
    %v460 = vld [vmem:[#allocation5 + $0x858] sm:$0xff]
    %v461 = vld [vmem:[#allocation5 + $0x860] sm:$0xff]
    %v462 = vld [vmem:[#allocation5 + $0x868] sm:$0xff]
    %v463 = vld [vmem:[#allocation5 + $0x870] sm:$0xff]
    %v464 = vld [vmem:[#allocation5 + $0x878] sm:$0xff]
    %v465 = vld [vmem:[#allocation5 + $0x880] sm:$0xff]
    %v466 = vld [vmem:[#allocation5 + $0x888] sm:$0xff]
    %v467 = vld [vmem:[#allocation5 + $0x890] sm:$0xff]
    %v468 = vld [vmem:[#allocation5 + $0x898] sm:$0xff]
    %v469 = vld [vmem:[#allocation5 + $0x8a0] sm:$0xff]
    %v470 = vld [vmem:[#allocation5 + $0x8a8] sm:$0xff]
    %v471 = vld [vmem:[#allocation5 + $0x8b0] sm:$0xff]
    %v472 = vld [vmem:[#allocation5 + $0x8b8] sm:$0xff]
    %v473 = vld [vmem:[#allocation5 + $0x8c0] sm:$0xff]
    %v474 = vld [vmem:[#allocation5 + $0x8c8] sm:$0xff]
    %v475 = vld [vmem:[#allocation5 + $0x8d0] sm:$0xff]
    %v476 = vld [vmem:[#allocation5 + $0x8d8] sm:$0xff]
    %v477 = vld [vmem:[#allocation5 + $0x8e0] sm:$0xff]
    %v478 = vld [vmem:[#allocation5 + $0x8e8] sm:$0xff]
    %v479 = vld [vmem:[#allocation5 + $0x8f0] sm:$0xff]
    %v480 = vld [vmem:[#allocation5 + $0x8f8] sm:$0xff]
    %v481 = vld [vmem:[#allocation5 + $0x900] sm:$0xff]
    %v482 = vld [vmem:[#allocation5 + $0x908] sm:$0xff]
    %v483 = vld [vmem:[#allocation5 + $0x910] sm:$0xff]
    %v484 = vld [vmem:[#allocation5 + $0x918] sm:$0xff]
    %v485 = vld [vmem:[#allocation5 + $0x920] sm:$0xff]
    %v486 = vld [vmem:[#allocation5 + $0x928] sm:$0xff]
    %v487 = vld [vmem:[#allocation5 + $0x930] sm:$0xff]
    %v488 = vld [vmem:[#allocation5 + $0x938] sm:$0xff]
    %v489 = vld [vmem:[#allocation5 + $0x940] sm:$0xff]
    %v490 = vld [vmem:[#allocation5 + $0x948] sm:$0xff]
    %v491 = vld [vmem:[#allocation5 + $0x950] sm:$0xff]
    %v492 = vld [vmem:[#allocation5 + $0x958] sm:$0xff]
    %v493 = vld [vmem:[#allocation5 + $0x960] sm:$0xff]
    %v494 = vld [vmem:[#allocation5 + $0x968] sm:$0xff]
    %v495 = vld [vmem:[#allocation5 + $0x970] sm:$0xff]
    %v496 = vld [vmem:[#allocation5 + $0x978] sm:$0xff]
    %v497 = vld [vmem:[#allocation5 + $0x980] sm:$0xff]
    %v498 = vld [vmem:[#allocation5 + $0x988] sm:$0xff]
    %v499 = vld [vmem:[#allocation5 + $0x990] sm:$0xff]
    %v500 = vld [vmem:[#allocation5 + $0x998] sm:$0xff]
    %v501 = vld [vmem:[#allocation5 + $0x9a0] sm:$0xff]
    %v502 = vld [vmem:[#allocation5 + $0x9a8] sm:$0xff]
    %v503 = vld [vmem:[#allocation5 + $0x9b0] sm:$0xff]
    %v504 = vld [vmem:[#allocation5 + $0x9b8] sm:$0xff]
    %v505 = vld [vmem:[#allocation5 + $0x9c0] sm:$0xff]
    %v506 = vld [vmem:[#allocation5 + $0x9c8] sm:$0xff]
    %v507 = vld [vmem:[#allocation5 + $0x9d0] sm:$0xff]
    %v508 = vld [vmem:[#allocation5 + $0x9d8] sm:$0xff]
    %v509 = vld [vmem:[#allocation5 + $0x9e0] sm:$0xff]
    %v510 = vld [vmem:[#allocation5 + $0x9e8] sm:$0xff]
    %v511 = vld [vmem:[#allocation5 + $0x9f0] sm:$0xff]
    %v512 = vld [vmem:[#allocation5 + $0x9f8] sm:$0xff]
    %v513 = vld [vmem:[#allocation5 + $0xa00] sm:$0xff]
    %v514 = vld [vmem:[#allocation5 + $0xa08] sm:$0xff]
    %v515 = vld [vmem:[#allocation5 + $0xa10] sm:$0xff]
    %v516 = vld [vmem:[#allocation5 + $0xa18] sm:$0xff]
    %v517 = vld [vmem:[#allocation5 + $0xa20] sm:$0xff]
    %v518 = vld [vmem:[#allocation5 + $0xa28] sm:$0xff]
    %v519 = vld [vmem:[#allocation5 + $0xa30] sm:$0xff]
    %v520 = vld [vmem:[#allocation5 + $0xa38] sm:$0xff]
    %v521 = vld [vmem:[#allocation5 + $0xa40] sm:$0xff]
    %v522 = vld [vmem:[#allocation5 + $0xa48] sm:$0xff]
    %v523 = vld [vmem:[#allocation5 + $0xa50] sm:$0xff]
    %v524 = vld [vmem:[#allocation5 + $0xa58] sm:$0xff]
    %v525 = vld [vmem:[#allocation5 + $0xa60] sm:$0xff]
    %v526 = vld [vmem:[#allocation5 + $0xa68] sm:$0xff]
    %v527 = vld [vmem:[#allocation5 + $0xa70] sm:$0xff]
    %v528 = vld [vmem:[#allocation5 + $0xa78] sm:$0xff]
    %v529 = vld [vmem:[#allocation5 + $0xa80] sm:$0xff]
    %v530 = vld [vmem:[#allocation5 + $0xa88] sm:$0xff]
    %v531 = vld [vmem:[#allocation5 + $0xa90] sm:$0xff]
    %v532 = vld [vmem:[#allocation5 + $0xa98] sm:$0xff]
    %v533 = vld [vmem:[#allocation5 + $0xaa0] sm:$0xff]
    %v534 = vld [vmem:[#allocation5 + $0xaa8] sm:$0xff]
    %v535 = vld [vmem:[#allocation5 + $0xab0] sm:$0xff]
    %v536 = vld [vmem:[#allocation5 + $0xab8] sm:$0xff]
    %v537 = vld [vmem:[#allocation5 + $0xac0] sm:$0xff]
    %v538 = vld [vmem:[#allocation5 + $0xac8] sm:$0xff]
    %v539 = vld [vmem:[#allocation5 + $0xad0] sm:$0xff]
    %v540 = vld [vmem:[#allocation5 + $0xad8] sm:$0xff]
    %v541 = vld [vmem:[#allocation5 + $0xae0] sm:$0xff]
    %v542 = vld [vmem:[#allocation5 + $0xae8] sm:$0xff]
    %v543 = vld [vmem:[#allocation5 + $0xaf0] sm:$0xff]
    %v544 = vld [vmem:[#allocation5 + $0xaf8] sm:$0xff]
    %v545 = vld [vmem:[#allocation5 + $0xb00] sm:$0xff]
    %v546 = vld [vmem:[#allocation5 + $0xb08] sm:$0xff]
    %v547 = vld [vmem:[#allocation5 + $0xb10] sm:$0xff]
    %v548 = vld [vmem:[#allocation5 + $0xb18] sm:$0xff]
    %v549 = vld [vmem:[#allocation5 + $0xb20] sm:$0xff]
    %v550 = vld [vmem:[#allocation5 + $0xb28] sm:$0xff]
    %v551 = vld [vmem:[#allocation5 + $0xb30] sm:$0xff]
    %v552 = vld [vmem:[#allocation5 + $0xb38] sm:$0xff]
    %v553 = vld [vmem:[#allocation5 + $0xb40] sm:$0xff]
    %v554 = vld [vmem:[#allocation5 + $0xb48] sm:$0xff]
    %v555 = vld [vmem:[#allocation5 + $0xb50] sm:$0xff]
    %v556 = vld [vmem:[#allocation5 + $0xb58] sm:$0xff]
    %v557 = vld [vmem:[#allocation5 + $0xb60] sm:$0xff]
    %v558 = vld [vmem:[#allocation5 + $0xb68] sm:$0xff]
    %v559 = vld [vmem:[#allocation5 + $0xb70] sm:$0xff]
    %v560 = vld [vmem:[#allocation5 + $0xb78] sm:$0xff]
    %v561 = vld [vmem:[#allocation5 + $0xb80] sm:$0xff]
    %v562 = vld [vmem:[#allocation5 + $0xb88] sm:$0xff]
    %v563 = vld [vmem:[#allocation5 + $0xb90] sm:$0xff]
    %v564 = vld [vmem:[#allocation5 + $0xb98] sm:$0xff]
    %v565 = vld [vmem:[#allocation5 + $0xba0] sm:$0xff]
    %v566 = vld [vmem:[#allocation5 + $0xba8] sm:$0xff]
    %v567 = vld [vmem:[#allocation5 + $0xbb0] sm:$0xff]
    %v568 = vld [vmem:[#allocation5 + $0xbb8] sm:$0xff]
    %v569 = vld [vmem:[#allocation5 + $0xbc0] sm:$0xff]
    %v570 = vld [vmem:[#allocation5 + $0xbc8] sm:$0xff]
    %v571 = vld [vmem:[#allocation5 + $0xbd0] sm:$0xff]
    %v572 = vld [vmem:[#allocation5 + $0xbd8] sm:$0xff]
    %v573 = vld [vmem:[#allocation5 + $0xbe0] sm:$0xff]
    %v574 = vld [vmem:[#allocation5 + $0xbe8] sm:$0xff]
    %v575 = vld [vmem:[#allocation5 + $0xbf0] sm:$0xff]
    %v576 = vld [vmem:[#allocation5 + $0xbf8] sm:$0xff]
    %v577 = vld [vmem:[#allocation5 + $0xc00] sm:$0xff]
    %v578 = vld [vmem:[#allocation5 + $0xc08] sm:$0xff]
    %v579 = vld [vmem:[#allocation5 + $0xc10] sm:$0xff]
    %v580 = vld [vmem:[#allocation5 + $0xc18] sm:$0xff]
    %v581 = vld [vmem:[#allocation5 + $0xc20] sm:$0xff]
    %v582 = vld [vmem:[#allocation5 + $0xc28] sm:$0xff]
    %v583 = vld [vmem:[#allocation5 + $0xc30] sm:$0xff]
    %v584 = vld [vmem:[#allocation5 + $0xc38] sm:$0xff]
    %v585 = vld [vmem:[#allocation5 + $0xc40] sm:$0xff]
    %v586 = vld [vmem:[#allocation5 + $0xc48] sm:$0xff]
    %v587 = vld [vmem:[#allocation5 + $0xc50] sm:$0xff]
    %v588 = vld [vmem:[#allocation5 + $0xc58] sm:$0xff]
    %v589 = vld [vmem:[#allocation5 + $0xc60] sm:$0xff]
    %v590 = vld [vmem:[#allocation5 + $0xc68] sm:$0xff]
    %v591 = vld [vmem:[#allocation5 + $0xc70] sm:$0xff]
    %v592 = vld [vmem:[#allocation5 + $0xc78] sm:$0xff]
    %v593 = vld [vmem:[#allocation5 + $0xc80] sm:$0xff]
    %v594 = vld [vmem:[#allocation5 + $0xc88] sm:$0xff]
    %v595 = vld [vmem:[#allocation5 + $0xc90] sm:$0xff]
    %v596 = vld [vmem:[#allocation5 + $0xc98] sm:$0xff]
    %v597 = vld [vmem:[#allocation5 + $0xca0] sm:$0xff]
    %v598 = vld [vmem:[#allocation5 + $0xca8] sm:$0xff]
    %v599 = vld [vmem:[#allocation5 + $0xcb0] sm:$0xff]
    %v600 = vld [vmem:[#allocation5 + $0xcb8] sm:$0xff]
    %v601 = vld [vmem:[#allocation5 + $0xcc0] sm:$0xff]
    %v602 = vld [vmem:[#allocation5 + $0xcc8] sm:$0xff]
    %v603 = vld [vmem:[#allocation5 + $0xcd0] sm:$0xff]
    %v604 = vld [vmem:[#allocation5 + $0xcd8] sm:$0xff]
    %v605 = vld [vmem:[#allocation5 + $0xce0] sm:$0xff]
    %v606 = vld [vmem:[#allocation5 + $0xce8] sm:$0xff]
    %v607 = vld [vmem:[#allocation5 + $0xcf0] sm:$0xff]
    %v608 = vld [vmem:[#allocation5 + $0xcf8] sm:$0xff]
    %v609 = vld [vmem:[#allocation5 + $0xd00] sm:$0xff]
    %v610 = vld [vmem:[#allocation5 + $0xd08] sm:$0xff]
    %v611 = vld [vmem:[#allocation5 + $0xd10] sm:$0xff]
    %v612 = vld [vmem:[#allocation5 + $0xd18] sm:$0xff]
    %v613 = vld [vmem:[#allocation5 + $0xd20] sm:$0xff]
    %v614 = vld [vmem:[#allocation5 + $0xd28] sm:$0xff]
    %v615 = vld [vmem:[#allocation5 + $0xd30] sm:$0xff]
    %v616 = vld [vmem:[#allocation5 + $0xd38] sm:$0xff]
    %v617 = vld [vmem:[#allocation5 + $0xd40] sm:$0xff]
    %v618 = vld [vmem:[#allocation5 + $0xd48] sm:$0xff]
    %v619 = vld [vmem:[#allocation5 + $0xd50] sm:$0xff]
    %v620 = vld [vmem:[#allocation5 + $0xd58] sm:$0xff]
    %v621 = vld [vmem:[#allocation5 + $0xd60] sm:$0xff]
    %v622 = vld [vmem:[#allocation5 + $0xd68] sm:$0xff]
    %v623 = vld [vmem:[#allocation5 + $0xd70] sm:$0xff]
    %v624 = vld [vmem:[#allocation5 + $0xd78] sm:$0xff]
    %v625 = vld [vmem:[#allocation5 + $0xd80] sm:$0xff]
    %v626 = vld [vmem:[#allocation5 + $0xd88] sm:$0xff]
    %v627 = vld [vmem:[#allocation5 + $0xd90] sm:$0xff]
    %v628 = vld [vmem:[#allocation5 + $0xd98] sm:$0xff]
    %v629 = vld [vmem:[#allocation5 + $0xda0] sm:$0xff]
    %v630 = vld [vmem:[#allocation5 + $0xda8] sm:$0xff]
    %v631 = vld [vmem:[#allocation5 + $0xdb0] sm:$0xff]
    %v632 = vld [vmem:[#allocation5 + $0xdb8] sm:$0xff]
    %v633 = vld [vmem:[#allocation5 + $0xdc0] sm:$0xff]
    %v634 = vld [vmem:[#allocation5 + $0xdc8] sm:$0xff]
    %v635 = vld [vmem:[#allocation5 + $0xdd0] sm:$0xff]
    %v636 = vld [vmem:[#allocation5 + $0xdd8] sm:$0xff]
    %v637 = vld [vmem:[#allocation5 + $0xde0] sm:$0xff]
    %v638 = vld [vmem:[#allocation5 + $0xde8] sm:$0xff]
    %v639 = vld [vmem:[#allocation5 + $0xdf0] sm:$0xff]
    %v640 = vld [vmem:[#allocation5 + $0xdf8] sm:$0xff]
    %v641 = vld [vmem:[#allocation5 + $0xe00] sm:$0xff]
    %v642 = vld [vmem:[#allocation5 + $0xe08] sm:$0xff]
    %v643 = vld [vmem:[#allocation5 + $0xe10] sm:$0xff]
    %v644 = vld [vmem:[#allocation5 + $0xe18] sm:$0xff]
    %v645 = vld [vmem:[#allocation5 + $0xe20] sm:$0xff]
    %v646 = vld [vmem:[#allocation5 + $0xe28] sm:$0xff]
    %v647 = vld [vmem:[#allocation5 + $0xe30] sm:$0xff]
    %v648 = vld [vmem:[#allocation5 + $0xe38] sm:$0xff]
    %v649 = vld [vmem:[#allocation5 + $0xe40] sm:$0xff]
    %v650 = vld [vmem:[#allocation5 + $0xe48] sm:$0xff]
    %v651 = vld [vmem:[#allocation5 + $0xe50] sm:$0xff]
    %v652 = vld [vmem:[#allocation5 + $0xe58] sm:$0xff]
    %v653 = vld [vmem:[#allocation5 + $0xe60] sm:$0xff]
    %v654 = vld [vmem:[#allocation5 + $0xe68] sm:$0xff]
    %v655 = vld [vmem:[#allocation5 + $0xe70] sm:$0xff]
    %v656 = vld [vmem:[#allocation5 + $0xe78] sm:$0xff]
    %v657 = vld [vmem:[#allocation5 + $0xe80] sm:$0xff]
    %v658 = vld [vmem:[#allocation5 + $0xe88] sm:$0xff]
    %v659 = vld [vmem:[#allocation5 + $0xe90] sm:$0xff]
    %v660 = vld [vmem:[#allocation5 + $0xe98] sm:$0xff]
    %v661 = vld [vmem:[#allocation5 + $0xea0] sm:$0xff]
    %v662 = vld [vmem:[#allocation5 + $0xea8] sm:$0xff]
    %v663 = vld [vmem:[#allocation5 + $0xeb0] sm:$0xff]
    %v664 = vld [vmem:[#allocation5 + $0xeb8] sm:$0xff]
    %v665 = vld [vmem:[#allocation5 + $0xec0] sm:$0xff]
    %v666 = vld [vmem:[#allocation5 + $0xec8] sm:$0xff]
    %v667 = vld [vmem:[#allocation5 + $0xed0] sm:$0xff]
    %v668 = vld [vmem:[#allocation5 + $0xed8] sm:$0xff]
    %v669 = vld [vmem:[#allocation5 + $0xee0] sm:$0xff]
    %v670 = vld [vmem:[#allocation5 + $0xee8] sm:$0xff]
    %v671 = vld [vmem:[#allocation5 + $0xef0] sm:$0xff]
    %v672 = vld [vmem:[#allocation5 + $0xef8] sm:$0xff]
    %v673 = vld [vmem:[#allocation5 + $0xf00] sm:$0xff]
    %v674 = vld [vmem:[#allocation5 + $0xf08] sm:$0xff]
    %v675 = vld [vmem:[#allocation5 + $0xf10] sm:$0xff]
    %v676 = vld [vmem:[#allocation5 + $0xf18] sm:$0xff]
    %v677 = vld [vmem:[#allocation5 + $0xf20] sm:$0xff]
    %v678 = vld [vmem:[#allocation5 + $0xf28] sm:$0xff]
    %v679 = vld [vmem:[#allocation5 + $0xf30] sm:$0xff]
    %v680 = vld [vmem:[#allocation5 + $0xf38] sm:$0xff]
    %v681 = vld [vmem:[#allocation5 + $0xf40] sm:$0xff]
    %v682 = vld [vmem:[#allocation5 + $0xf48] sm:$0xff]
    %v683 = vld [vmem:[#allocation5 + $0xf50] sm:$0xff]
    %v684 = vld [vmem:[#allocation5 + $0xf58] sm:$0xff]
    %v685 = vld [vmem:[#allocation5 + $0xf60] sm:$0xff]
    %v686 = vld [vmem:[#allocation5 + $0xf68] sm:$0xff]
    %v687 = vld [vmem:[#allocation5 + $0xf70] sm:$0xff]
    %v688 = vld [vmem:[#allocation5 + $0xf78] sm:$0xff]
    %v689 = vld [vmem:[#allocation5 + $0xf80] sm:$0xff]
    %v690 = vld [vmem:[#allocation5 + $0xf88] sm:$0xff]
    %v691 = vld [vmem:[#allocation5 + $0xf90] sm:$0xff]
    %v692 = vld [vmem:[#allocation5 + $0xf98] sm:$0xff]
    %v693 = vld [vmem:[#allocation5 + $0xfa0] sm:$0xff]
    %v694 = vld [vmem:[#allocation5 + $0xfa8] sm:$0xff]
    %v695 = vld [vmem:[#allocation5 + $0xfb0] sm:$0xff]
    %v696 = vld [vmem:[#allocation5 + $0xfb8] sm:$0xff]
    %v697 = vld [vmem:[#allocation5 + $0xfc0] sm:$0xff]
    %v698 = vld [vmem:[#allocation5 + $0xfc8] sm:$0xff]
    %v699 = vld [vmem:[#allocation5 + $0xfd0] sm:$0xff]
    %v700 = vld [vmem:[#allocation5 + $0xfd8] sm:$0xff]
    %v701 = vld [vmem:[#allocation5 + $0xfe0] sm:$0xff]
    %v702 = vld [vmem:[#allocation5 + $0xfe8] sm:$0xff]
    %v703 = vld [vmem:[#allocation5 + $0xff0] sm:$0xff]
    %v704 = vld [vmem:[#allocation5 + $0xff8] sm:$0xff]
    %v705 = vld [vmem:[#allocation7] sm:$0xff]
    %v707 = vlaneseq
    %v708 = vshrl.u32 %v707, 7
    %v709 = vsub.s32 0, %v708
    %v710 = vrot.slane %v705, %v709
    %v711 = vlaneseq
    %v712 = vshrl.u32 %v711, 7
    %v713 = vsub.s32 1, %v712
    %v714 = vrot.slane %v705, %v713
    %v715 = vlaneseq
    %v716 = vshrl.u32 %v715, 7
    %v717 = vsub.s32 2, %v716
    %v718 = vrot.slane %v705, %v717
    %v719 = vlaneseq
    %v720 = vshrl.u32 %v719, 7
    %v721 = vsub.s32 3, %v720
    %v722 = vrot.slane %v705, %v721
    %v723 = vlaneseq
    %v724 = vshrl.u32 %v723, 7
    %v725 = vsub.s32 4, %v724
    %v726 = vrot.slane %v705, %v725
    %v727 = vlaneseq
    %v728 = vshrl.u32 %v727, 7
    %v729 = vsub.s32 5, %v728
    %v730 = vrot.slane %v705, %v729
    %v731 = vlaneseq
    %v732 = vshrl.u32 %v731, 7
    %v733 = vsub.s32 6, %v732
    %v734 = vrot.slane %v705, %v733
    %v735 = vlaneseq
    %v736 = vshrl.u32 %v735, 7
    %v737 = vsub.s32 7, %v736
    %v738 = vrot.slane %v705, %v737
    %v748 = vcombine.high %v192, %v192
    %v750 = vunpack.c.l.s4 1983009808
    %v751 = vunpack.c.0.s8 %v750
    %v752 = vlaneseq
    %v753 = vshrl.u32 %v752, 7
    %v754 = vsub.s32 %v751, %v753
    %v755 = vrot.slane %v192, %v754
    %v757 = vunpack.c.l.s4 1983009808
    %v758 = vunpack.c.0.s8 %v757
    %v759 = vlaneseq
    %v760 = vshrl.u32 %v759, 7
    %v761 = vsub.s32 %v758, %v760
    %v762 = vrot.slane %v748, %v761
    %v763 = vcombine.high %v755, %v755
    %v764 = vcombine.high %v762, %v762
    %769 = vmatprep.subr.mxu0 %v194
    %770 = vmatpush1.msra.mxu0 %v193
    %771 = vmatprep.subr.mxu0 %v202
    %772 = vmatpush1.msra.mxu0 %v201
    %773 = vmatprep.subr.mxu0 %v210
    %774 = vmatpush1.msra.mxu0 %v209
    %775 = vmatprep.subr.mxu0 %v218
    %776 = vmatpush1.msra.mxu0 %v217
    %777 = vmatprep.subr.mxu0 %v226
    %778 = vmatpush1.msra.mxu0 %v225
    %779 = vmatprep.subr.mxu0 %v234
    %780 = vmatpush1.msra.mxu0 %v233
    %781 = vmatprep.subr.mxu0 %v242
    %782 = vmatpush1.msra.mxu0 %v241
    %783 = vmatprep.subr.mxu0 %v250
    %784 = vmatpush1.msra.mxu0 %v249
    %785 = vmatprep.subr.mxu0 %v258
    %786 = vmatpush1.msra.mxu0 %v257
    %787 = vmatprep.subr.mxu0 %v266
    %788 = vmatpush1.msra.mxu0 %v265
    %789 = vmatprep.subr.mxu0 %v274
    %790 = vmatpush1.msra.mxu0 %v273
    %791 = vmatprep.subr.mxu0 %v282
    %792 = vmatpush1.msra.mxu0 %v281
    %793 = vmatprep.subr.mxu0 %v290
    %794 = vmatpush1.msra.mxu0 %v289
    %795 = vmatprep.subr.mxu0 %v298
    %796 = vmatpush1.msra.mxu0 %v297
    %797 = vmatprep.subr.mxu0 %v306
    %798 = vmatpush1.msra.mxu0 %v305
    %799 = vmatprep.subr.mxu0 %v314
    %800 = vmatpush1.msra.mxu0 %v313
    %801 = vmatprep.subr.mxu0 %v322
    %802 = vmatpush1.msra.mxu0 %v321
    %803 = vmatprep.subr.mxu0 %v330
    %804 = vmatpush1.msra.mxu0 %v329
    %805 = vmatprep.subr.mxu0 %v338
    %806 = vmatpush1.msra.mxu0 %v337
    %807 = vmatprep.subr.mxu0 %v346
    %808 = vmatpush1.msra.mxu0 %v345
    %809 = vmatprep.subr.mxu0 %v354
    %810 = vmatpush1.msra.mxu0 %v353
    %811 = vmatprep.subr.mxu0 %v362
    %812 = vmatpush1.msra.mxu0 %v361
    %813 = vmatprep.subr.mxu0 %v370
    %814 = vmatpush1.msra.mxu0 %v369
    %815 = vmatprep.subr.mxu0 %v378
    %816 = vmatpush1.msra.mxu0 %v377
    %817 = vmatprep.subr.mxu0 %v386
    %818 = vmatpush1.msra.mxu0 %v385
    %819 = vmatprep.subr.mxu0 %v394
    %820 = vmatpush1.msra.mxu0 %v393
    %821 = vmatprep.subr.mxu0 %v402
    %822 = vmatpush1.msra.mxu0 %v401
    %823 = vmatprep.subr.mxu0 %v410
    %824 = vmatpush1.msra.mxu0 %v409
    %825 = vmatprep.subr.mxu0 %v418
    %826 = vmatpush1.msra.mxu0 %v417
    %827 = vmatprep.subr.mxu0 %v426
    %828 = vmatpush1.msra.mxu0 %v425
    %829 = vmatprep.subr.mxu0 %v434
    %830 = vmatpush1.msra.mxu0 %v433
    %831 = vmatprep.subr.mxu0 %v442
    %832 = vmatpush1.msra.mxu0 %v441
    %833 = vmatprep.mubr.f32.mxu0 %v763
    %834 = vmatmul.mubr.f32.gmra.mrb[0].mxu0 %v755
    %v835 = vpop.f32.mrb[0].mxu0
    %v836 = vadd.f32 %v710, %v835
    %v837 = vpop.f32.mrb[0].mxu0
    %v838 = vadd.f32 %v714, %v837
    %839 = vdwg.mxu0
    %840 = vmatprep.subr.mxu0 %v450
    %841 = vmatpush1.msra.mxu0 %v449
    %842 = vmatprep.subr.mxu0 %v458
    %843 = vmatpush1.msra.mxu0 %v457
    %844 = vmatprep.subr.mxu0 %v466
    %845 = vmatpush1.msra.mxu0 %v465
    %846 = vmatprep.subr.mxu0 %v474
    %847 = vmatpush1.msra.mxu0 %v473
    %848 = vmatprep.subr.mxu0 %v482
    %849 = vmatpush1.msra.mxu0 %v481
    %850 = vmatprep.subr.mxu0 %v490
    %851 = vmatpush1.msra.mxu0 %v489
    %852 = vmatprep.subr.mxu0 %v498
    %853 = vmatpush1.msra.mxu0 %v497
    %854 = vmatprep.subr.mxu0 %v506
    %855 = vmatpush1.msra.mxu0 %v505
    %856 = vmatprep.subr.mxu0 %v514
    %857 = vmatpush1.msra.mxu0 %v513
    %858 = vmatprep.subr.mxu0 %v522
    %859 = vmatpush1.msra.mxu0 %v521
    %860 = vmatprep.subr.mxu0 %v530
    %861 = vmatpush1.msra.mxu0 %v529
    %862 = vmatprep.subr.mxu0 %v538
    %863 = vmatpush1.msra.mxu0 %v537
    %864 = vmatprep.subr.mxu0 %v546
    %865 = vmatpush1.msra.mxu0 %v545
    %866 = vmatprep.subr.mxu0 %v554
    %867 = vmatpush1.msra.mxu0 %v553
    %868 = vmatprep.subr.mxu0 %v562
    %869 = vmatpush1.msra.mxu0 %v561
    %870 = vmatprep.subr.mxu0 %v570
    %871 = vmatpush1.msra.mxu0 %v569
    %872 = vmatprep.subr.mxu0 %v578
    %873 = vmatpush1.msra.mxu0 %v577
    %874 = vmatprep.subr.mxu0 %v586
    %875 = vmatpush1.msra.mxu0 %v585
    %876 = vmatprep.subr.mxu0 %v594
    %877 = vmatpush1.msra.mxu0 %v593
    %878 = vmatprep.subr.mxu0 %v602
    %879 = vmatpush1.msra.mxu0 %v601
    %880 = vmatprep.subr.mxu0 %v610
    %881 = vmatpush1.msra.mxu0 %v609
    %882 = vmatprep.subr.mxu0 %v618
    %883 = vmatpush1.msra.mxu0 %v617
    %884 = vmatprep.subr.mxu0 %v626
    %885 = vmatpush1.msra.mxu0 %v625
    %886 = vmatprep.subr.mxu0 %v634
    %887 = vmatpush1.msra.mxu0 %v633
    %888 = vmatprep.subr.mxu0 %v642
    %889 = vmatpush1.msra.mxu0 %v641
    %890 = vmatprep.subr.mxu0 %v650
    %891 = vmatpush1.msra.mxu0 %v649
    %892 = vmatprep.subr.mxu0 %v658
    %893 = vmatpush1.msra.mxu0 %v657
    %894 = vmatprep.subr.mxu0 %v666
    %895 = vmatpush1.msra.mxu0 %v665
    %896 = vmatprep.subr.mxu0 %v674
    %897 = vmatpush1.msra.mxu0 %v673
    %898 = vmatprep.subr.mxu0 %v682
    %899 = vmatpush1.msra.mxu0 %v681
    %900 = vmatprep.subr.mxu0 %v690
    %901 = vmatpush1.msra.mxu0 %v689
    %902 = vmatprep.subr.mxu0 %v698
    %903 = vmatpush1.msra.mxu0 %v697
    %904 = vmatprep.mubr.f32.mxu0 %v764
    %905 = vmatmul.mubr.f32.gmra.mrb[0].mxu0 %v762
    %v906 = vpop.f32.mrb[0].mxu0
    %v907 = vadd.f32 %v836, %v906
    %v908 = vpop.f32.mrb[0].mxu0
    %v909 = vadd.f32 %v838, %v908
    %910 = vdwg.mxu0
    %911 = vmatprep.subr.mxu0 %v196
    %912 = vmatpush1.msra.mxu0 %v195
    %913 = vmatprep.subr.mxu0 %v204
    %914 = vmatpush1.msra.mxu0 %v203
    %915 = vmatprep.subr.mxu0 %v212
    %916 = vmatpush1.msra.mxu0 %v211
    %917 = vmatprep.subr.mxu0 %v220
    %918 = vmatpush1.msra.mxu0 %v219
    %919 = vmatprep.subr.mxu0 %v228
    %920 = vmatpush1.msra.mxu0 %v227
    %921 = vmatprep.subr.mxu0 %v236
    %922 = vmatpush1.msra.mxu0 %v235
    %923 = vmatprep.subr.mxu0 %v244
    %924 = vmatpush1.msra.mxu0 %v243
    %925 = vmatprep.subr.mxu0 %v252
    %926 = vmatpush1.msra.mxu0 %v251
    %927 = vmatprep.subr.mxu0 %v260
    %928 = vmatpush1.msra.mxu0 %v259
    %929 = vmatprep.subr.mxu0 %v268
    %930 = vmatpush1.msra.mxu0 %v267
    %931 = vmatprep.subr.mxu0 %v276
    %932 = vmatpush1.msra.mxu0 %v275
    %933 = vmatprep.subr.mxu0 %v284
    %934 = vmatpush1.msra.mxu0 %v283
    %935 = vmatprep.subr.mxu0 %v292
    %936 = vmatpush1.msra.mxu0 %v291
    %937 = vmatprep.subr.mxu0 %v300
    %938 = vmatpush1.msra.mxu0 %v299
    %939 = vmatprep.subr.mxu0 %v308
    %940 = vmatpush1.msra.mxu0 %v307
    %941 = vmatprep.subr.mxu0 %v316
    %942 = vmatpush1.msra.mxu0 %v315
    %943 = vmatprep.subr.mxu0 %v324
    %944 = vmatpush1.msra.mxu0 %v323
    %945 = vmatprep.subr.mxu0 %v332
    %946 = vmatpush1.msra.mxu0 %v331
    %947 = vmatprep.subr.mxu0 %v340
    %948 = vmatpush1.msra.mxu0 %v339
    %949 = vmatprep.subr.mxu0 %v348
    %950 = vmatpush1.msra.mxu0 %v347
    %951 = vmatprep.subr.mxu0 %v356
    %952 = vmatpush1.msra.mxu0 %v355
    %953 = vmatprep.subr.mxu0 %v364
    %954 = vmatpush1.msra.mxu0 %v363
    %955 = vmatprep.subr.mxu0 %v372
    %956 = vmatpush1.msra.mxu0 %v371
    %957 = vmatprep.subr.mxu0 %v380
    %958 = vmatpush1.msra.mxu0 %v379
    %959 = vmatprep.subr.mxu0 %v388
    %960 = vmatpush1.msra.mxu0 %v387
    %961 = vmatprep.subr.mxu0 %v396
    %962 = vmatpush1.msra.mxu0 %v395
    %963 = vmatprep.subr.mxu0 %v404
    %964 = vmatpush1.msra.mxu0 %v403
    %965 = vmatprep.subr.mxu0 %v412
    %966 = vmatpush1.msra.mxu0 %v411
    %967 = vmatprep.subr.mxu0 %v420
    %968 = vmatpush1.msra.mxu0 %v419
    %969 = vmatprep.subr.mxu0 %v428
    %970 = vmatpush1.msra.mxu0 %v427
    %971 = vmatprep.subr.mxu0 %v436
    %972 = vmatpush1.msra.mxu0 %v435
    %973 = vmatprep.subr.mxu0 %v444
    %974 = vmatpush1.msra.mxu0 %v443
    %975 = vmatprep.mubr.f32.mxu0 %v763
    %976 = vmatmul.mubr.f32.gmra.mrb[0].mxu0 %v755
    %v977 = vpop.f32.mrb[0].mxu0
    %v978 = vadd.f32 %v718, %v977
    %v979 = vpop.f32.mrb[0].mxu0
    %v980 = vadd.f32 %v722, %v979
    %981 = vdwg.mxu0
    %982 = vmatprep.subr.mxu0 %v452
    %983 = vmatpush1.msra.mxu0 %v451
    %984 = vmatprep.subr.mxu0 %v460
    %985 = vmatpush1.msra.mxu0 %v459
    %986 = vmatprep.subr.mxu0 %v468
    %987 = vmatpush1.msra.mxu0 %v467
    %988 = vmatprep.subr.mxu0 %v476
    %989 = vmatpush1.msra.mxu0 %v475
    %990 = vmatprep.subr.mxu0 %v484
    %991 = vmatpush1.msra.mxu0 %v483
    %992 = vmatprep.subr.mxu0 %v492
    %993 = vmatpush1.msra.mxu0 %v491
    %994 = vmatprep.subr.mxu0 %v500
    %995 = vmatpush1.msra.mxu0 %v499
    %996 = vmatprep.subr.mxu0 %v508
    %997 = vmatpush1.msra.mxu0 %v507
    %998 = vmatprep.subr.mxu0 %v516
    %999 = vmatpush1.msra.mxu0 %v515
    %1000 = vmatprep.subr.mxu0 %v524
    %1001 = vmatpush1.msra.mxu0 %v523
    %1002 = vmatprep.subr.mxu0 %v532
    %1003 = vmatpush1.msra.mxu0 %v531
    %1004 = vmatprep.subr.mxu0 %v540
    %1005 = vmatpush1.msra.mxu0 %v539
    %1006 = vmatprep.subr.mxu0 %v548
    %1007 = vmatpush1.msra.mxu0 %v547
    %1008 = vmatprep.subr.mxu0 %v556
    %1009 = vmatpush1.msra.mxu0 %v555
    %1010 = vmatprep.subr.mxu0 %v564
    %1011 = vmatpush1.msra.mxu0 %v563
    %1012 = vmatprep.subr.mxu0 %v572
    %1013 = vmatpush1.msra.mxu0 %v571
    %1014 = vmatprep.subr.mxu0 %v580
    %1015 = vmatpush1.msra.mxu0 %v579
    %1016 = vmatprep.subr.mxu0 %v588
    %1017 = vmatpush1.msra.mxu0 %v587
    %1018 = vmatprep.subr.mxu0 %v596
    %1019 = vmatpush1.msra.mxu0 %v595
    %1020 = vmatprep.subr.mxu0 %v604
    %1021 = vmatpush1.msra.mxu0 %v603
    %1022 = vmatprep.subr.mxu0 %v612
    %1023 = vmatpush1.msra.mxu0 %v611
    %1024 = vmatprep.subr.mxu0 %v620
    %1025 = vmatpush1.msra.mxu0 %v619
    %1026 = vmatprep.subr.mxu0 %v628
    %1027 = vmatpush1.msra.mxu0 %v627
    %1028 = vmatprep.subr.mxu0 %v636
    %1029 = vmatpush1.msra.mxu0 %v635
    %1030 = vmatprep.subr.mxu0 %v644
    %1031 = vmatpush1.msra.mxu0 %v643
    %1032 = vmatprep.subr.mxu0 %v652
    %1033 = vmatpush1.msra.mxu0 %v651
    %1034 = vmatprep.subr.mxu0 %v660
    %1035 = vmatpush1.msra.mxu0 %v659
    %1036 = vmatprep.subr.mxu0 %v668
    %1037 = vmatpush1.msra.mxu0 %v667
    %1038 = vmatprep.subr.mxu0 %v676
    %1039 = vmatpush1.msra.mxu0 %v675
    %1040 = vmatprep.subr.mxu0 %v684
    %1041 = vmatpush1.msra.mxu0 %v683
    %1042 = vmatprep.subr.mxu0 %v692
    %1043 = vmatpush1.msra.mxu0 %v691
    %1044 = vmatprep.subr.mxu0 %v700
    %1045 = vmatpush1.msra.mxu0 %v699
    %1046 = vmatprep.mubr.f32.mxu0 %v764
    %1047 = vmatmul.mubr.f32.gmra.mrb[0].mxu0 %v762
    %v1048 = vpop.f32.mrb[0].mxu0
    %v1049 = vadd.f32 %v978, %v1048
    %v1050 = vpop.f32.mrb[0].mxu0
    %v1051 = vadd.f32 %v980, %v1050
    %1052 = vdwg.mxu0
    %1053 = vmatprep.subr.mxu0 %v198
    %1054 = vmatpush1.msra.mxu0 %v197
    %1055 = vmatprep.subr.mxu0 %v206
    %1056 = vmatpush1.msra.mxu0 %v205
    %1057 = vmatprep.subr.mxu0 %v214
    %1058 = vmatpush1.msra.mxu0 %v213
    %1059 = vmatprep.subr.mxu0 %v222
    %1060 = vmatpush1.msra.mxu0 %v221
    %1061 = vmatprep.subr.mxu0 %v230
    %1062 = vmatpush1.msra.mxu0 %v229
    %1063 = vmatprep.subr.mxu0 %v238
    %1064 = vmatpush1.msra.mxu0 %v237
    %1065 = vmatprep.subr.mxu0 %v246
    %1066 = vmatpush1.msra.mxu0 %v245
    %1067 = vmatprep.subr.mxu0 %v254
    %1068 = vmatpush1.msra.mxu0 %v253
    %1069 = vmatprep.subr.mxu0 %v262
    %1070 = vmatpush1.msra.mxu0 %v261
    %1071 = vmatprep.subr.mxu0 %v270
    %1072 = vmatpush1.msra.mxu0 %v269
    %1073 = vmatprep.subr.mxu0 %v278
    %1074 = vmatpush1.msra.mxu0 %v277
    %1075 = vmatprep.subr.mxu0 %v286
    %1076 = vmatpush1.msra.mxu0 %v285
    %1077 = vmatprep.subr.mxu0 %v294
    %1078 = vmatpush1.msra.mxu0 %v293
    %1079 = vmatprep.subr.mxu0 %v302
    %1080 = vmatpush1.msra.mxu0 %v301
    %1081 = vmatprep.subr.mxu0 %v310
    %1082 = vmatpush1.msra.mxu0 %v309
    %1083 = vmatprep.subr.mxu0 %v318
    %1084 = vmatpush1.msra.mxu0 %v317
    %1085 = vmatprep.subr.mxu0 %v326
    %1086 = vmatpush1.msra.mxu0 %v325
    %1087 = vmatprep.subr.mxu0 %v334
    %1088 = vmatpush1.msra.mxu0 %v333
    %1089 = vmatprep.subr.mxu0 %v342
    %1090 = vmatpush1.msra.mxu0 %v341
    %1091 = vmatprep.subr.mxu0 %v350
    %1092 = vmatpush1.msra.mxu0 %v349
    %1093 = vmatprep.subr.mxu0 %v358
    %1094 = vmatpush1.msra.mxu0 %v357
    %1095 = vmatprep.subr.mxu0 %v366
    %1096 = vmatpush1.msra.mxu0 %v365
    %1097 = vmatprep.subr.mxu0 %v374
    %1098 = vmatpush1.msra.mxu0 %v373
    %1099 = vmatprep.subr.mxu0 %v382
    %1100 = vmatpush1.msra.mxu0 %v381
    %1101 = vmatprep.subr.mxu0 %v390
    %1102 = vmatpush1.msra.mxu0 %v389
    %1103 = vmatprep.subr.mxu0 %v398
    %1104 = vmatpush1.msra.mxu0 %v397
    %1105 = vmatprep.subr.mxu0 %v406
    %1106 = vmatpush1.msra.mxu0 %v405
    %1107 = vmatprep.subr.mxu0 %v414
    %1108 = vmatpush1.msra.mxu0 %v413
    %1109 = vmatprep.subr.mxu0 %v422
    %1110 = vmatpush1.msra.mxu0 %v421
    %1111 = vmatprep.subr.mxu0 %v430
    %1112 = vmatpush1.msra.mxu0 %v429
    %1113 = vmatprep.subr.mxu0 %v438
    %1114 = vmatpush1.msra.mxu0 %v437
    %1115 = vmatprep.subr.mxu0 %v446
    %1116 = vmatpush1.msra.mxu0 %v445
    %1117 = vmatprep.mubr.f32.mxu0 %v763
    %1118 = vmatmul.mubr.f32.gmra.mrb[0].mxu0 %v755
    %v1119 = vpop.f32.mrb[0].mxu0
    %v1120 = vadd.f32 %v726, %v1119
    %v1121 = vpop.f32.mrb[0].mxu0
    %v1122 = vadd.f32 %v730, %v1121
    %1123 = vdwg.mxu0
    %1124 = vmatprep.subr.mxu0 %v454
    %1125 = vmatpush1.msra.mxu0 %v453
    %1126 = vmatprep.subr.mxu0 %v462
    %1127 = vmatpush1.msra.mxu0 %v461
    %1128 = vmatprep.subr.mxu0 %v470
    %1129 = vmatpush1.msra.mxu0 %v469
    %1130 = vmatprep.subr.mxu0 %v478
    %1131 = vmatpush1.msra.mxu0 %v477
    %1132 = vmatprep.subr.mxu0 %v486
    %1133 = vmatpush1.msra.mxu0 %v485
    %1134 = vmatprep.subr.mxu0 %v494
    %1135 = vmatpush1.msra.mxu0 %v493
    %1136 = vmatprep.subr.mxu0 %v502
    %1137 = vmatpush1.msra.mxu0 %v501
    %1138 = vmatprep.subr.mxu0 %v510
    %1139 = vmatpush1.msra.mxu0 %v509
    %1140 = vmatprep.subr.mxu0 %v518
    %1141 = vmatpush1.msra.mxu0 %v517
    %1142 = vmatprep.subr.mxu0 %v526
    %1143 = vmatpush1.msra.mxu0 %v525
    %1144 = vmatprep.subr.mxu0 %v534
    %1145 = vmatpush1.msra.mxu0 %v533
    %1146 = vmatprep.subr.mxu0 %v542
    %1147 = vmatpush1.msra.mxu0 %v541
    %1148 = vmatprep.subr.mxu0 %v550
    %1149 = vmatpush1.msra.mxu0 %v549
    %1150 = vmatprep.subr.mxu0 %v558
    %1151 = vmatpush1.msra.mxu0 %v557
    %1152 = vmatprep.subr.mxu0 %v566
    %1153 = vmatpush1.msra.mxu0 %v565
    %1154 = vmatprep.subr.mxu0 %v574
    %1155 = vmatpush1.msra.mxu0 %v573
    %1156 = vmatprep.subr.mxu0 %v582
    %1157 = vmatpush1.msra.mxu0 %v581
    %1158 = vmatprep.subr.mxu0 %v590
    %1159 = vmatpush1.msra.mxu0 %v589
    %1160 = vmatprep.subr.mxu0 %v598
    %1161 = vmatpush1.msra.mxu0 %v597
    %1162 = vmatprep.subr.mxu0 %v606
    %1163 = vmatpush1.msra.mxu0 %v605
    %1164 = vmatprep.subr.mxu0 %v614
    %1165 = vmatpush1.msra.mxu0 %v613
    %1166 = vmatprep.subr.mxu0 %v622
    %1167 = vmatpush1.msra.mxu0 %v621
    %1168 = vmatprep.subr.mxu0 %v630
    %1169 = vmatpush1.msra.mxu0 %v629
    %1170 = vmatprep.subr.mxu0 %v638
    %1171 = vmatpush1.msra.mxu0 %v637
    %1172 = vmatprep.subr.mxu0 %v646
    %1173 = vmatpush1.msra.mxu0 %v645
    %1174 = vmatprep.subr.mxu0 %v654
    %1175 = vmatpush1.msra.mxu0 %v653
    %1176 = vmatprep.subr.mxu0 %v662
    %1177 = vmatpush1.msra.mxu0 %v661
    %1178 = vmatprep.subr.mxu0 %v670
    %1179 = vmatpush1.msra.mxu0 %v669
    %1180 = vmatprep.subr.mxu0 %v678
    %1181 = vmatpush1.msra.mxu0 %v677
    %1182 = vmatprep.subr.mxu0 %v686
    %1183 = vmatpush1.msra.mxu0 %v685
    %1184 = vmatprep.subr.mxu0 %v694
    %1185 = vmatpush1.msra.mxu0 %v693
    %1186 = vmatprep.subr.mxu0 %v702
    %1187 = vmatpush1.msra.mxu0 %v701
    %1188 = vmatprep.mubr.f32.mxu0 %v764
    %1189 = vmatmul.mubr.f32.gmra.mrb[0].mxu0 %v762
    %v1190 = vpop.f32.mrb[0].mxu0
    %v1191 = vadd.f32 %v1120, %v1190
    %v1192 = vpop.f32.mrb[0].mxu0
    %v1193 = vadd.f32 %v1122, %v1192
    %1194 = vdwg.mxu0
    %1195 = vmatprep.subr.mxu0 %v200
    %1196 = vmatpush1.msra.mxu0 %v199
    %1197 = vmatprep.subr.mxu0 %v208
    %1198 = vmatpush1.msra.mxu0 %v207
    %1199 = vmatprep.subr.mxu0 %v216
    %1200 = vmatpush1.msra.mxu0 %v215
    %1201 = vmatprep.subr.mxu0 %v224
    %1202 = vmatpush1.msra.mxu0 %v223
    %1203 = vmatprep.subr.mxu0 %v232
    %1204 = vmatpush1.msra.mxu0 %v231
    %1205 = vmatprep.subr.mxu0 %v240
    %1206 = vmatpush1.msra.mxu0 %v239
    %1207 = vmatprep.subr.mxu0 %v248
    %1208 = vmatpush1.msra.mxu0 %v247
    %1209 = vmatprep.subr.mxu0 %v256
    %1210 = vmatpush1.msra.mxu0 %v255
    %1211 = vmatprep.subr.mxu0 %v264
    %1212 = vmatpush1.msra.mxu0 %v263
    %1213 = vmatprep.subr.mxu0 %v272
    %1214 = vmatpush1.msra.mxu0 %v271
    %1215 = vmatprep.subr.mxu0 %v280
    %1216 = vmatpush1.msra.mxu0 %v279
    %1217 = vmatprep.subr.mxu0 %v288
    %1218 = vmatpush1.msra.mxu0 %v287
    %1219 = vmatprep.subr.mxu0 %v296
    %1220 = vmatpush1.msra.mxu0 %v295
    %1221 = vmatprep.subr.mxu0 %v304
    %1222 = vmatpush1.msra.mxu0 %v303
    %1223 = vmatprep.subr.mxu0 %v312
    %1224 = vmatpush1.msra.mxu0 %v311
    %1225 = vmatprep.subr.mxu0 %v320
    %1226 = vmatpush1.msra.mxu0 %v319
    %1227 = vmatprep.subr.mxu0 %v328
    %1228 = vmatpush1.msra.mxu0 %v327
    %1229 = vmatprep.subr.mxu0 %v336
    %1230 = vmatpush1.msra.mxu0 %v335
    %1231 = vmatprep.subr.mxu0 %v344
    %1232 = vmatpush1.msra.mxu0 %v343
    %1233 = vmatprep.subr.mxu0 %v352
    %1234 = vmatpush1.msra.mxu0 %v351
    %1235 = vmatprep.subr.mxu0 %v360
    %1236 = vmatpush1.msra.mxu0 %v359
    %1237 = vmatprep.subr.mxu0 %v368
    %1238 = vmatpush1.msra.mxu0 %v367
    %1239 = vmatprep.subr.mxu0 %v376
    %1240 = vmatpush1.msra.mxu0 %v375
    %1241 = vmatprep.subr.mxu0 %v384
    %1242 = vmatpush1.msra.mxu0 %v383
    %1243 = vmatprep.subr.mxu0 %v392
    %1244 = vmatpush1.msra.mxu0 %v391
    %1245 = vmatprep.subr.mxu0 %v400
    %1246 = vmatpush1.msra.mxu0 %v399
    %1247 = vmatprep.subr.mxu0 %v408
    %1248 = vmatpush1.msra.mxu0 %v407
    %1249 = vmatprep.subr.mxu0 %v416
    %1250 = vmatpush1.msra.mxu0 %v415
    %1251 = vmatprep.subr.mxu0 %v424
    %1252 = vmatpush1.msra.mxu0 %v423
    %1253 = vmatprep.subr.mxu0 %v432
    %1254 = vmatpush1.msra.mxu0 %v431
    %1255 = vmatprep.subr.mxu0 %v440
    %1256 = vmatpush1.msra.mxu0 %v439
    %1257 = vmatprep.subr.mxu0 %v448
    %1258 = vmatpush1.msra.mxu0 %v447
    %1259 = vmatprep.mubr.f32.mxu0 %v763
    %1260 = vmatmul.mubr.f32.gmra.mrb[0].mxu0 %v755
    %v1261 = vpop.f32.mrb[0].mxu0
    %v1262 = vadd.f32 %v734, %v1261
    %v1263 = vpop.f32.mrb[0].mxu0
    %v1264 = vadd.f32 %v738, %v1263
    %1265 = vdwg.mxu0
    %1266 = vmatprep.subr.mxu0 %v456
    %1267 = vmatpush1.msra.mxu0 %v455
    %1268 = vmatprep.subr.mxu0 %v464
    %1269 = vmatpush1.msra.mxu0 %v463
    %1270 = vmatprep.subr.mxu0 %v472
    %1271 = vmatpush1.msra.mxu0 %v471
    %1272 = vmatprep.subr.mxu0 %v480
    %1273 = vmatpush1.msra.mxu0 %v479
    %1274 = vmatprep.subr.mxu0 %v488
    %1275 = vmatpush1.msra.mxu0 %v487
    %1276 = vmatprep.subr.mxu0 %v496
    %1277 = vmatpush1.msra.mxu0 %v495
    %1278 = vmatprep.subr.mxu0 %v504
    %1279 = vmatpush1.msra.mxu0 %v503
    %1280 = vmatprep.subr.mxu0 %v512
    %1281 = vmatpush1.msra.mxu0 %v511
    %1282 = vmatprep.subr.mxu0 %v520
    %1283 = vmatpush1.msra.mxu0 %v519
    %1284 = vmatprep.subr.mxu0 %v528
    %1285 = vmatpush1.msra.mxu0 %v527
    %1286 = vmatprep.subr.mxu0 %v536
    %1287 = vmatpush1.msra.mxu0 %v535
    %1288 = vmatprep.subr.mxu0 %v544
    %1289 = vmatpush1.msra.mxu0 %v543
    %1290 = vmatprep.subr.mxu0 %v552
    %1291 = vmatpush1.msra.mxu0 %v551
    %1292 = vmatprep.subr.mxu0 %v560
    %1293 = vmatpush1.msra.mxu0 %v559
    %1294 = vmatprep.subr.mxu0 %v568
    %1295 = vmatpush1.msra.mxu0 %v567
    %1296 = vmatprep.subr.mxu0 %v576
    %1297 = vmatpush1.msra.mxu0 %v575
    %1298 = vmatprep.subr.mxu0 %v584
    %1299 = vmatpush1.msra.mxu0 %v583
    %1300 = vmatprep.subr.mxu0 %v592
    %1301 = vmatpush1.msra.mxu0 %v591
    %1302 = vmatprep.subr.mxu0 %v600
    %1303 = vmatpush1.msra.mxu0 %v599
    %1304 = vmatprep.subr.mxu0 %v608
    %1305 = vmatpush1.msra.mxu0 %v607
    %1306 = vmatprep.subr.mxu0 %v616
    %1307 = vmatpush1.msra.mxu0 %v615
    %1308 = vmatprep.subr.mxu0 %v624
    %1309 = vmatpush1.msra.mxu0 %v623
    %1310 = vmatprep.subr.mxu0 %v632
    %1311 = vmatpush1.msra.mxu0 %v631
    %1312 = vmatprep.subr.mxu0 %v640
    %1313 = vmatpush1.msra.mxu0 %v639
    %1314 = vmatprep.subr.mxu0 %v648
    %1315 = vmatpush1.msra.mxu0 %v647
    %1316 = vmatprep.subr.mxu0 %v656
    %1317 = vmatpush1.msra.mxu0 %v655
    %1318 = vmatprep.subr.mxu0 %v664
    %1319 = vmatpush1.msra.mxu0 %v663
    %1320 = vmatprep.subr.mxu0 %v672
    %1321 = vmatpush1.msra.mxu0 %v671
    %1322 = vmatprep.subr.mxu0 %v680
    %1323 = vmatpush1.msra.mxu0 %v679
    %1324 = vmatprep.subr.mxu0 %v688
    %1325 = vmatpush1.msra.mxu0 %v687
    %1326 = vmatprep.subr.mxu0 %v696
    %1327 = vmatpush1.msra.mxu0 %v695
    %1328 = vmatprep.subr.mxu0 %v704
    %1329 = vmatpush1.msra.mxu0 %v703
    %1330 = vmatprep.mubr.f32.mxu0 %v764
    %1331 = vmatmul.mubr.f32.gmra.mrb[0].mxu0 %v762
    %v1332 = vpop.f32.mrb[0].mxu0
    %v1333 = vadd.f32 %v1262, %v1332
    %v1334 = vpop.f32.mrb[0].mxu0
    %v1335 = vadd.f32 %v1264, %v1334
    %1336 = vdwg.mxu0
    %v1337 = vxor.u32 %v907, 2147483648
    %v1338 = vxor.u32 %v909, 2147483648
    %v1339 = vxor.u32 %v1049, 2147483648
    %v1340 = vxor.u32 %v1051, 2147483648
    %v1341 = vxor.u32 %v1191, 2147483648
    %v1342 = vxor.u32 %v1193, 2147483648
    %v1343 = vxor.u32 %v1333, 2147483648
    %v1344 = vxor.u32 %v1335, 2147483648
    %v1345 = vmul.f32 %v1337, 1.442695
    %v1346 = vpow.pop %v1345
    %v1347 = vmul.f32 %v1338, 1.442695
    %v1348 = vpow.pop %v1347
    %v1349 = vmul.f32 %v1339, 1.442695
    %v1350 = vpow.pop %v1349
    %v1351 = vmul.f32 %v1340, 1.442695
    %v1352 = vpow.pop %v1351
    %v1353 = vmul.f32 %v1341, 1.442695
    %v1354 = vpow.pop %v1353
    %v1355 = vmul.f32 %v1342, 1.442695
    %v1356 = vpow.pop %v1355
    %v1357 = vmul.f32 %v1343, 1.442695
    %v1358 = vpow.pop %v1357
    %v1359 = vmul.f32 %v1344, 1.442695
    %v1360 = vpow.pop %v1359
    %v1361 = vadd.f32 %v1346, 1.0
    %v1362 = vadd.f32 %v1348, 1.0
    %v1363 = vadd.f32 %v1350, 1.0
    %v1364 = vadd.f32 %v1352, 1.0
    %v1365 = vadd.f32 %v1354, 1.0
    %v1366 = vadd.f32 %v1356, 1.0
    %v1367 = vadd.f32 %v1358, 1.0
    %v1368 = vadd.f32 %v1360, 1.0
    %v1369 = vrcp.pop %v1361
    %v1370 = vmul.f32 1.0, %v1369
    %v1371 = vrcp.pop %v1362
    %v1372 = vmul.f32 1.0, %v1371
    %v1373 = vrcp.pop %v1363
    %v1374 = vmul.f32 1.0, %v1373
    %v1375 = vrcp.pop %v1364
    %v1376 = vmul.f32 1.0, %v1375
    %v1377 = vrcp.pop %v1365
    %v1378 = vmul.f32 1.0, %v1377
    %v1379 = vrcp.pop %v1366
    %v1380 = vmul.f32 1.0, %v1379
    %v1381 = vrcp.pop %v1367
    %v1382 = vmul.f32 1.0, %v1381
    %v1383 = vrcp.pop %v1368
    %v1384 = vmul.f32 1.0, %v1383
    %v1385 = vld [vmem:[%s4] sm:$0xff]
    %v1386 = vld [vmem:[%s4 + $0x8] sm:$0xff]
    %v1387 = vld [vmem:[%s4 + $0x10] sm:$0xff]
    %v1388 = vld [vmem:[%s4 + $0x18] sm:$0xff]
    %v1389 = vld [vmem:[%s4 + $0x20] sm:$0xff]
    %v1390 = vld [vmem:[%s4 + $0x28] sm:$0xff]
    %v1391 = vld [vmem:[%s4 + $0x30] sm:$0xff]
    %v1392 = vld [vmem:[%s4 + $0x38] sm:$0xff]
    %v1393 = vld [vmem:[%s4 + $0x40] sm:$0xff]
    %v1394 = vld [vmem:[%s4 + $0x48] sm:$0xff]
    %v1395 = vld [vmem:[%s4 + $0x50] sm:$0xff]
    %v1396 = vld [vmem:[%s4 + $0x58] sm:$0xff]
    %v1397 = vld [vmem:[%s4 + $0x60] sm:$0xff]
    %v1398 = vld [vmem:[%s4 + $0x68] sm:$0xff]
    %v1399 = vld [vmem:[%s4 + $0x70] sm:$0xff]
    %v1400 = vld [vmem:[%s4 + $0x78] sm:$0xff]
    %v1401 = vld [vmem:[%s4 + $0x80] sm:$0xff]
    %v1402 = vld [vmem:[%s4 + $0x88] sm:$0xff]
    %v1403 = vld [vmem:[%s4 + $0x90] sm:$0xff]
    %v1404 = vld [vmem:[%s4 + $0x98] sm:$0xff]
    %v1405 = vld [vmem:[%s4 + $0xa0] sm:$0xff]
    %v1406 = vld [vmem:[%s4 + $0xa8] sm:$0xff]
    %v1407 = vld [vmem:[%s4 + $0xb0] sm:$0xff]
    %v1408 = vld [vmem:[%s4 + $0xb8] sm:$0xff]
    %v1409 = vld [vmem:[%s4 + $0xc0] sm:$0xff]
    %v1410 = vld [vmem:[%s4 + $0xc8] sm:$0xff]
    %v1411 = vld [vmem:[%s4 + $0xd0] sm:$0xff]
    %v1412 = vld [vmem:[%s4 + $0xd8] sm:$0xff]
    %v1413 = vld [vmem:[%s4 + $0xe0] sm:$0xff]
    %v1414 = vld [vmem:[%s4 + $0xe8] sm:$0xff]
    %v1415 = vld [vmem:[%s4 + $0xf0] sm:$0xff]
    %v1416 = vld [vmem:[%s4 + $0xf8] sm:$0xff]
    %v1417 = vld [vmem:[%s4 + $0x100] sm:$0xff]
    %v1418 = vld [vmem:[%s4 + $0x108] sm:$0xff]
    %v1419 = vld [vmem:[%s4 + $0x110] sm:$0xff]
    %v1420 = vld [vmem:[%s4 + $0x118] sm:$0xff]
    %v1421 = vld [vmem:[%s4 + $0x120] sm:$0xff]
    %v1422 = vld [vmem:[%s4 + $0x128] sm:$0xff]
    %v1423 = vld [vmem:[%s4 + $0x130] sm:$0xff]
    %v1424 = vld [vmem:[%s4 + $0x138] sm:$0xff]
    %v1425 = vld [vmem:[%s4 + $0x140] sm:$0xff]
    %v1426 = vld [vmem:[%s4 + $0x148] sm:$0xff]
    %v1427 = vld [vmem:[%s4 + $0x150] sm:$0xff]
    %v1428 = vld [vmem:[%s4 + $0x158] sm:$0xff]
    %v1429 = vld [vmem:[%s4 + $0x160] sm:$0xff]
    %v1430 = vld [vmem:[%s4 + $0x168] sm:$0xff]
    %v1431 = vld [vmem:[%s4 + $0x170] sm:$0xff]
    %v1432 = vld [vmem:[%s4 + $0x178] sm:$0xff]
    %v1433 = vld [vmem:[%s4 + $0x180] sm:$0xff]
    %v1434 = vld [vmem:[%s4 + $0x188] sm:$0xff]
    %v1435 = vld [vmem:[%s4 + $0x190] sm:$0xff]
    %v1436 = vld [vmem:[%s4 + $0x198] sm:$0xff]
    %v1437 = vld [vmem:[%s4 + $0x1a0] sm:$0xff]
    %v1438 = vld [vmem:[%s4 + $0x1a8] sm:$0xff]
    %v1439 = vld [vmem:[%s4 + $0x1b0] sm:$0xff]
    %v1440 = vld [vmem:[%s4 + $0x1b8] sm:$0xff]
    %v1441 = vld [vmem:[%s4 + $0x1c0] sm:$0xff]
    %v1442 = vld [vmem:[%s4 + $0x1c8] sm:$0xff]
    %v1443 = vld [vmem:[%s4 + $0x1d0] sm:$0xff]
    %v1444 = vld [vmem:[%s4 + $0x1d8] sm:$0xff]
    %v1445 = vld [vmem:[%s4 + $0x1e0] sm:$0xff]
    %v1446 = vld [vmem:[%s4 + $0x1e8] sm:$0xff]
    %v1447 = vld [vmem:[%s4 + $0x1f0] sm:$0xff]
    %v1448 = vld [vmem:[%s4 + $0x1f8] sm:$0xff]
    %v1449 = vld [vmem:[%s4 + $0x200] sm:$0xff]
    %v1450 = vld [vmem:[%s4 + $0x208] sm:$0xff]
    %v1451 = vld [vmem:[%s4 + $0x210] sm:$0xff]
    %v1452 = vld [vmem:[%s4 + $0x218] sm:$0xff]
    %v1453 = vld [vmem:[%s4 + $0x220] sm:$0xff]
    %v1454 = vld [vmem:[%s4 + $0x228] sm:$0xff]
    %v1455 = vld [vmem:[%s4 + $0x230] sm:$0xff]
    %v1456 = vld [vmem:[%s4 + $0x238] sm:$0xff]
    %v1457 = vld [vmem:[%s4 + $0x240] sm:$0xff]
    %v1458 = vld [vmem:[%s4 + $0x248] sm:$0xff]
    %v1459 = vld [vmem:[%s4 + $0x250] sm:$0xff]
    %v1460 = vld [vmem:[%s4 + $0x258] sm:$0xff]
    %v1461 = vld [vmem:[%s4 + $0x260] sm:$0xff]
    %v1462 = vld [vmem:[%s4 + $0x268] sm:$0xff]
    %v1463 = vld [vmem:[%s4 + $0x270] sm:$0xff]
    %v1464 = vld [vmem:[%s4 + $0x278] sm:$0xff]
    %v1465 = vld [vmem:[%s4 + $0x280] sm:$0xff]
    %v1466 = vld [vmem:[%s4 + $0x288] sm:$0xff]
    %v1467 = vld [vmem:[%s4 + $0x290] sm:$0xff]
    %v1468 = vld [vmem:[%s4 + $0x298] sm:$0xff]
    %v1469 = vld [vmem:[%s4 + $0x2a0] sm:$0xff]
    %v1470 = vld [vmem:[%s4 + $0x2a8] sm:$0xff]
    %v1471 = vld [vmem:[%s4 + $0x2b0] sm:$0xff]
    %v1472 = vld [vmem:[%s4 + $0x2b8] sm:$0xff]
    %v1473 = vld [vmem:[%s4 + $0x2c0] sm:$0xff]
    %v1474 = vld [vmem:[%s4 + $0x2c8] sm:$0xff]
    %v1475 = vld [vmem:[%s4 + $0x2d0] sm:$0xff]
    %v1476 = vld [vmem:[%s4 + $0x2d8] sm:$0xff]
    %v1477 = vld [vmem:[%s4 + $0x2e0] sm:$0xff]
    %v1478 = vld [vmem:[%s4 + $0x2e8] sm:$0xff]
    %v1479 = vld [vmem:[%s4 + $0x2f0] sm:$0xff]
    %v1480 = vld [vmem:[%s4 + $0x2f8] sm:$0xff]
    %v1481 = vld [vmem:[%s4 + $0x300] sm:$0xff]
    %v1482 = vld [vmem:[%s4 + $0x308] sm:$0xff]
    %v1483 = vld [vmem:[%s4 + $0x310] sm:$0xff]
    %v1484 = vld [vmem:[%s4 + $0x318] sm:$0xff]
    %v1485 = vld [vmem:[%s4 + $0x320] sm:$0xff]
    %v1486 = vld [vmem:[%s4 + $0x328] sm:$0xff]
    %v1487 = vld [vmem:[%s4 + $0x330] sm:$0xff]
    %v1488 = vld [vmem:[%s4 + $0x338] sm:$0xff]
    %v1489 = vld [vmem:[%s4 + $0x340] sm:$0xff]
    %v1490 = vld [vmem:[%s4 + $0x348] sm:$0xff]
    %v1491 = vld [vmem:[%s4 + $0x350] sm:$0xff]
    %v1492 = vld [vmem:[%s4 + $0x358] sm:$0xff]
    %v1493 = vld [vmem:[%s4 + $0x360] sm:$0xff]
    %v1494 = vld [vmem:[%s4 + $0x368] sm:$0xff]
    %v1495 = vld [vmem:[%s4 + $0x370] sm:$0xff]
    %v1496 = vld [vmem:[%s4 + $0x378] sm:$0xff]
    %v1497 = vld [vmem:[%s4 + $0x380] sm:$0xff]
    %v1498 = vld [vmem:[%s4 + $0x388] sm:$0xff]
    %v1499 = vld [vmem:[%s4 + $0x390] sm:$0xff]
    %v1500 = vld [vmem:[%s4 + $0x398] sm:$0xff]
    %v1501 = vld [vmem:[%s4 + $0x3a0] sm:$0xff]
    %v1502 = vld [vmem:[%s4 + $0x3a8] sm:$0xff]
    %v1503 = vld [vmem:[%s4 + $0x3b0] sm:$0xff]
    %v1504 = vld [vmem:[%s4 + $0x3b8] sm:$0xff]
    %v1505 = vld [vmem:[%s4 + $0x3c0] sm:$0xff]
    %v1506 = vld [vmem:[%s4 + $0x3c8] sm:$0xff]
    %v1507 = vld [vmem:[%s4 + $0x3d0] sm:$0xff]
    %v1508 = vld [vmem:[%s4 + $0x3d8] sm:$0xff]
    %v1509 = vld [vmem:[%s4 + $0x3e0] sm:$0xff]
    %v1510 = vld [vmem:[%s4 + $0x3e8] sm:$0xff]
    %v1511 = vld [vmem:[%s4 + $0x3f0] sm:$0xff]
    %v1512 = vld [vmem:[%s4 + $0x3f8] sm:$0xff]
    %v1513 = vld [vmem:[#allocation8] sm:$0x1]
    %v1515 = vlaneseq
    %v1516 = vshrl.u32 %v1515, 7
    %v1517 = vsub.s32 0, %v1516
    %v1518 = vrot.slane %v1513, %v1517
    %1520 = vmatprep.subr.mxu0 0.0
    %1521 = vmatpush1.msra.mxu0 %v1385
    %1522 = vmatprep.subr.mxu0 0.0
    %1523 = vmatpush1.msra.mxu0 %v1386
    %1524 = vmatprep.subr.mxu0 0.0
    %1525 = vmatpush1.msra.mxu0 %v1387
    %1526 = vmatprep.subr.mxu0 0.0
    %1527 = vmatpush1.msra.mxu0 %v1388
    %1528 = vmatprep.subr.mxu0 0.0
    %1529 = vmatpush1.msra.mxu0 %v1389
    %1530 = vmatprep.subr.mxu0 0.0
    %1531 = vmatpush1.msra.mxu0 %v1390
    %1532 = vmatprep.subr.mxu0 0.0
    %1533 = vmatpush1.msra.mxu0 %v1391
    %1534 = vmatprep.subr.mxu0 0.0
    %1535 = vmatpush1.msra.mxu0 %v1392
    %1536 = vmatprep.subr.mxu0 0.0
    %1537 = vmatpush1.msra.mxu0 %v1393
    %1538 = vmatprep.subr.mxu0 0.0
    %1539 = vmatpush1.msra.mxu0 %v1394
    %1540 = vmatprep.subr.mxu0 0.0
    %1541 = vmatpush1.msra.mxu0 %v1395
    %1542 = vmatprep.subr.mxu0 0.0
    %1543 = vmatpush1.msra.mxu0 %v1396
    %1544 = vmatprep.subr.mxu0 0.0
    %1545 = vmatpush1.msra.mxu0 %v1397
    %1546 = vmatprep.subr.mxu0 0.0
    %1547 = vmatpush1.msra.mxu0 %v1398
    %1548 = vmatprep.subr.mxu0 0.0
    %1549 = vmatpush1.msra.mxu0 %v1399
    %1550 = vmatprep.subr.mxu0 0.0
    %1551 = vmatpush1.msra.mxu0 %v1400
    %1552 = vmatprep.subr.mxu0 0.0
    %1553 = vmatpush1.msra.mxu0 %v1401
    %1554 = vmatprep.subr.mxu0 0.0
    %1555 = vmatpush1.msra.mxu0 %v1402
    %1556 = vmatprep.subr.mxu0 0.0
    %1557 = vmatpush1.msra.mxu0 %v1403
    %1558 = vmatprep.subr.mxu0 0.0
    %1559 = vmatpush1.msra.mxu0 %v1404
    %1560 = vmatprep.subr.mxu0 0.0
    %1561 = vmatpush1.msra.mxu0 %v1405
    %1562 = vmatprep.subr.mxu0 0.0
    %1563 = vmatpush1.msra.mxu0 %v1406
    %1564 = vmatprep.subr.mxu0 0.0
    %1565 = vmatpush1.msra.mxu0 %v1407
    %1566 = vmatprep.subr.mxu0 0.0
    %1567 = vmatpush1.msra.mxu0 %v1408
    %1568 = vmatprep.subr.mxu0 0.0
    %1569 = vmatpush1.msra.mxu0 %v1409
    %1570 = vmatprep.subr.mxu0 0.0
    %1571 = vmatpush1.msra.mxu0 %v1410
    %1572 = vmatprep.subr.mxu0 0.0
    %1573 = vmatpush1.msra.mxu0 %v1411
    %1574 = vmatprep.subr.mxu0 0.0
    %1575 = vmatpush1.msra.mxu0 %v1412
    %1576 = vmatprep.subr.mxu0 0.0
    %1577 = vmatpush1.msra.mxu0 %v1413
    %1578 = vmatprep.subr.mxu0 0.0
    %1579 = vmatpush1.msra.mxu0 %v1414
    %1580 = vmatprep.subr.mxu0 0.0
    %1581 = vmatpush1.msra.mxu0 %v1415
    %1582 = vmatprep.subr.mxu0 0.0
    %1583 = vmatpush1.msra.mxu0 %v1416
    %1584 = vmatprep.mubr.f32.mxu0 %v1372
    %1585 = vmatmul.mubr.f32.gmra.mrb[0].mxu0 %v1370
    %v1586 = vpop.f32.mrb[0].mxu0
    %v1587 = vadd.f32 %v1518, %v1586
    %v1588 = vpop.f32.mrb[0].mxu0
    %1589 = vdwg.mxu0
    %1590 = vmatprep.subr.mxu0 0.0
    %1591 = vmatpush1.msra.mxu0 %v1417
    %1592 = vmatprep.subr.mxu0 0.0
    %1593 = vmatpush1.msra.mxu0 %v1418
    %1594 = vmatprep.subr.mxu0 0.0
    %1595 = vmatpush1.msra.mxu0 %v1419
    %1596 = vmatprep.subr.mxu0 0.0
    %1597 = vmatpush1.msra.mxu0 %v1420
    %1598 = vmatprep.subr.mxu0 0.0
    %1599 = vmatpush1.msra.mxu0 %v1421
    %1600 = vmatprep.subr.mxu0 0.0
    %1601 = vmatpush1.msra.mxu0 %v1422
    %1602 = vmatprep.subr.mxu0 0.0
    %1603 = vmatpush1.msra.mxu0 %v1423
    %1604 = vmatprep.subr.mxu0 0.0
    %1605 = vmatpush1.msra.mxu0 %v1424
    %1606 = vmatprep.subr.mxu0 0.0
    %1607 = vmatpush1.msra.mxu0 %v1425
    %1608 = vmatprep.subr.mxu0 0.0
    %1609 = vmatpush1.msra.mxu0 %v1426
    %1610 = vmatprep.subr.mxu0 0.0
    %1611 = vmatpush1.msra.mxu0 %v1427
    %1612 = vmatprep.subr.mxu0 0.0
    %1613 = vmatpush1.msra.mxu0 %v1428
    %1614 = vmatprep.subr.mxu0 0.0
    %1615 = vmatpush1.msra.mxu0 %v1429
    %1616 = vmatprep.subr.mxu0 0.0
    %1617 = vmatpush1.msra.mxu0 %v1430
    %1618 = vmatprep.subr.mxu0 0.0
    %1619 = vmatpush1.msra.mxu0 %v1431
    %1620 = vmatprep.subr.mxu0 0.0
    %1621 = vmatpush1.msra.mxu0 %v1432
    %1622 = vmatprep.subr.mxu0 0.0
    %1623 = vmatpush1.msra.mxu0 %v1433
    %1624 = vmatprep.subr.mxu0 0.0
    %1625 = vmatpush1.msra.mxu0 %v1434
    %1626 = vmatprep.subr.mxu0 0.0
    %1627 = vmatpush1.msra.mxu0 %v1435
    %1628 = vmatprep.subr.mxu0 0.0
    %1629 = vmatpush1.msra.mxu0 %v1436
    %1630 = vmatprep.subr.mxu0 0.0
    %1631 = vmatpush1.msra.mxu0 %v1437
    %1632 = vmatprep.subr.mxu0 0.0
    %1633 = vmatpush1.msra.mxu0 %v1438
    %1634 = vmatprep.subr.mxu0 0.0
    %1635 = vmatpush1.msra.mxu0 %v1439
    %1636 = vmatprep.subr.mxu0 0.0
    %1637 = vmatpush1.msra.mxu0 %v1440
    %1638 = vmatprep.subr.mxu0 0.0
    %1639 = vmatpush1.msra.mxu0 %v1441
    %1640 = vmatprep.subr.mxu0 0.0
    %1641 = vmatpush1.msra.mxu0 %v1442
    %1642 = vmatprep.subr.mxu0 0.0
    %1643 = vmatpush1.msra.mxu0 %v1443
    %1644 = vmatprep.subr.mxu0 0.0
    %1645 = vmatpush1.msra.mxu0 %v1444
    %1646 = vmatprep.subr.mxu0 0.0
    %1647 = vmatpush1.msra.mxu0 %v1445
    %1648 = vmatprep.subr.mxu0 0.0
    %1649 = vmatpush1.msra.mxu0 %v1446
    %1650 = vmatprep.subr.mxu0 0.0
    %1651 = vmatpush1.msra.mxu0 %v1447
    %1652 = vmatprep.subr.mxu0 0.0
    %1653 = vmatpush1.msra.mxu0 %v1448
    %1654 = vmatprep.mubr.f32.mxu0 %v1376
    %1655 = vmatmul.mubr.f32.gmra.mrb[0].mxu0 %v1374
    %v1656 = vpop.f32.mrb[0].mxu0
    %v1657 = vadd.f32 %v1587, %v1656
    %v1658 = vpop.f32.mrb[0].mxu0
    %1659 = vdwg.mxu0
    %1660 = vmatprep.subr.mxu0 0.0
    %1661 = vmatpush1.msra.mxu0 %v1449
    %1662 = vmatprep.subr.mxu0 0.0
    %1663 = vmatpush1.msra.mxu0 %v1450
    %1664 = vmatprep.subr.mxu0 0.0
    %1665 = vmatpush1.msra.mxu0 %v1451
    %1666 = vmatprep.subr.mxu0 0.0
    %1667 = vmatpush1.msra.mxu0 %v1452
    %1668 = vmatprep.subr.mxu0 0.0
    %1669 = vmatpush1.msra.mxu0 %v1453
    %1670 = vmatprep.subr.mxu0 0.0
    %1671 = vmatpush1.msra.mxu0 %v1454
    %1672 = vmatprep.subr.mxu0 0.0
    %1673 = vmatpush1.msra.mxu0 %v1455
    %1674 = vmatprep.subr.mxu0 0.0
    %1675 = vmatpush1.msra.mxu0 %v1456
    %1676 = vmatprep.subr.mxu0 0.0
    %1677 = vmatpush1.msra.mxu0 %v1457
    %1678 = vmatprep.subr.mxu0 0.0
    %1679 = vmatpush1.msra.mxu0 %v1458
    %1680 = vmatprep.subr.mxu0 0.0
    %1681 = vmatpush1.msra.mxu0 %v1459
    %1682 = vmatprep.subr.mxu0 0.0
    %1683 = vmatpush1.msra.mxu0 %v1460
    %1684 = vmatprep.subr.mxu0 0.0
    %1685 = vmatpush1.msra.mxu0 %v1461
    %1686 = vmatprep.subr.mxu0 0.0
    %1687 = vmatpush1.msra.mxu0 %v1462
    %1688 = vmatprep.subr.mxu0 0.0
    %1689 = vmatpush1.msra.mxu0 %v1463
    %1690 = vmatprep.subr.mxu0 0.0
    %1691 = vmatpush1.msra.mxu0 %v1464
    %1692 = vmatprep.subr.mxu0 0.0
    %1693 = vmatpush1.msra.mxu0 %v1465
    %1694 = vmatprep.subr.mxu0 0.0
    %1695 = vmatpush1.msra.mxu0 %v1466
    %1696 = vmatprep.subr.mxu0 0.0
    %1697 = vmatpush1.msra.mxu0 %v1467
    %1698 = vmatprep.subr.mxu0 0.0
    %1699 = vmatpush1.msra.mxu0 %v1468
    %1700 = vmatprep.subr.mxu0 0.0
    %1701 = vmatpush1.msra.mxu0 %v1469
    %1702 = vmatprep.subr.mxu0 0.0
    %1703 = vmatpush1.msra.mxu0 %v1470
    %1704 = vmatprep.subr.mxu0 0.0
    %1705 = vmatpush1.msra.mxu0 %v1471
    %1706 = vmatprep.subr.mxu0 0.0
    %1707 = vmatpush1.msra.mxu0 %v1472
    %1708 = vmatprep.subr.mxu0 0.0
    %1709 = vmatpush1.msra.mxu0 %v1473
    %1710 = vmatprep.subr.mxu0 0.0
    %1711 = vmatpush1.msra.mxu0 %v1474
    %1712 = vmatprep.subr.mxu0 0.0
    %1713 = vmatpush1.msra.mxu0 %v1475
    %1714 = vmatprep.subr.mxu0 0.0
    %1715 = vmatpush1.msra.mxu0 %v1476
    %1716 = vmatprep.subr.mxu0 0.0
    %1717 = vmatpush1.msra.mxu0 %v1477
    %1718 = vmatprep.subr.mxu0 0.0
    %1719 = vmatpush1.msra.mxu0 %v1478
    %1720 = vmatprep.subr.mxu0 0.0
    %1721 = vmatpush1.msra.mxu0 %v1479
    %1722 = vmatprep.subr.mxu0 0.0
    %1723 = vmatpush1.msra.mxu0 %v1480
    %1724 = vmatprep.mubr.f32.mxu0 %v1380
    %1725 = vmatmul.mubr.f32.gmra.mrb[0].mxu0 %v1378
    %v1726 = vpop.f32.mrb[0].mxu0
    %v1727 = vadd.f32 %v1657, %v1726
    %v1728 = vpop.f32.mrb[0].mxu0
    %1729 = vdwg.mxu0
    %1730 = vmatprep.subr.mxu0 0.0
    %1731 = vmatpush1.msra.mxu0 %v1481
    %1732 = vmatprep.subr.mxu0 0.0
    %1733 = vmatpush1.msra.mxu0 %v1482
    %1734 = vmatprep.subr.mxu0 0.0
    %1735 = vmatpush1.msra.mxu0 %v1483
    %1736 = vmatprep.subr.mxu0 0.0
    %1737 = vmatpush1.msra.mxu0 %v1484
    %1738 = vmatprep.subr.mxu0 0.0
    %1739 = vmatpush1.msra.mxu0 %v1485
    %1740 = vmatprep.subr.mxu0 0.0
    %1741 = vmatpush1.msra.mxu0 %v1486
    %1742 = vmatprep.subr.mxu0 0.0
    %1743 = vmatpush1.msra.mxu0 %v1487
    %1744 = vmatprep.subr.mxu0 0.0
    %1745 = vmatpush1.msra.mxu0 %v1488
    %1746 = vmatprep.subr.mxu0 0.0
    %1747 = vmatpush1.msra.mxu0 %v1489
    %1748 = vmatprep.subr.mxu0 0.0
    %1749 = vmatpush1.msra.mxu0 %v1490
    %1750 = vmatprep.subr.mxu0 0.0
    %1751 = vmatpush1.msra.mxu0 %v1491
    %1752 = vmatprep.subr.mxu0 0.0
    %1753 = vmatpush1.msra.mxu0 %v1492
    %1754 = vmatprep.subr.mxu0 0.0
    %1755 = vmatpush1.msra.mxu0 %v1493
    %1756 = vmatprep.subr.mxu0 0.0
    %1757 = vmatpush1.msra.mxu0 %v1494
    %1758 = vmatprep.subr.mxu0 0.0
    %1759 = vmatpush1.msra.mxu0 %v1495
    %1760 = vmatprep.subr.mxu0 0.0
    %1761 = vmatpush1.msra.mxu0 %v1496
    %1762 = vmatprep.subr.mxu0 0.0
    %1763 = vmatpush1.msra.mxu0 %v1497
    %1764 = vmatprep.subr.mxu0 0.0
    %1765 = vmatpush1.msra.mxu0 %v1498
    %1766 = vmatprep.subr.mxu0 0.0
    %1767 = vmatpush1.msra.mxu0 %v1499
    %1768 = vmatprep.subr.mxu0 0.0
    %1769 = vmatpush1.msra.mxu0 %v1500
    %1770 = vmatprep.subr.mxu0 0.0
    %1771 = vmatpush1.msra.mxu0 %v1501
    %1772 = vmatprep.subr.mxu0 0.0
    %1773 = vmatpush1.msra.mxu0 %v1502
    %1774 = vmatprep.subr.mxu0 0.0
    %1775 = vmatpush1.msra.mxu0 %v1503
    %1776 = vmatprep.subr.mxu0 0.0
    %1777 = vmatpush1.msra.mxu0 %v1504
    %1778 = vmatprep.subr.mxu0 0.0
    %1779 = vmatpush1.msra.mxu0 %v1505
    %1780 = vmatprep.subr.mxu0 0.0
    %1781 = vmatpush1.msra.mxu0 %v1506
    %1782 = vmatprep.subr.mxu0 0.0
    %1783 = vmatpush1.msra.mxu0 %v1507
    %1784 = vmatprep.subr.mxu0 0.0
    %1785 = vmatpush1.msra.mxu0 %v1508
    %1786 = vmatprep.subr.mxu0 0.0
    %1787 = vmatpush1.msra.mxu0 %v1509
    %1788 = vmatprep.subr.mxu0 0.0
    %1789 = vmatpush1.msra.mxu0 %v1510
    %1790 = vmatprep.subr.mxu0 0.0
    %1791 = vmatpush1.msra.mxu0 %v1511
    %1792 = vmatprep.subr.mxu0 0.0
    %1793 = vmatpush1.msra.mxu0 %v1512
    %1794 = vmatprep.mubr.f32.mxu0 %v1384
    %1795 = vmatmul.mubr.f32.gmra.mrb[0].mxu0 %v1382
    %v1796 = vpop.f32.mrb[0].mxu0
    %v1797 = vadd.f32 %v1727, %v1796
    %v1798 = vpop.f32.mrb[0].mxu0
    %1799 = vdwg.mxu0
    %v1800 = vld [vmem:[#allocation2] sm:$0x3]
    %v1801 = vmul.f32 %v1797, 0.5
    %v1802 = vmul.f32 %v1801, 1.442695
    %v1803 = vpow.pop %v1802
    %1805 = vrot.lane.b32.xlu0 %v1803, 96
    %v1806 = vpop.permute.xlu0 %1805
    %v1808 = vmul.f32 %v1800, %v1806
    %v1809 = vadd.f32 %v1808, %v1797
    %v1810 = vld [vmem:[#allocation10] sm:$0xff]
    %v1811 = vld [vmem:[#allocation10 + $0x8] sm:$0xff]
    %v1812 = vld [vmem:[#allocation10 + $0x10] sm:$0xff]
    %v1813 = vld [vmem:[#allocation10 + $0x18] sm:$0xff]
    %v1814 = vld [vmem:[#allocation10 + $0x20] sm:$0xff]
    %v1815 = vld [vmem:[#allocation10 + $0x28] sm:$0xff]
    %v1816 = vld [vmem:[#allocation10 + $0x30] sm:$0xff]
    %v1817 = vld [vmem:[#allocation10 + $0x38] sm:$0xff]
    %v1818 = vld [vmem:[#allocation10 + $0x40] sm:$0xff]
    %v1819 = vld [vmem:[#allocation10 + $0x48] sm:$0xff]
    %v1820 = vld [vmem:[#allocation10 + $0x50] sm:$0xff]
    %v1821 = vld [vmem:[#allocation10 + $0x58] sm:$0xff]
    %v1822 = vld [vmem:[#allocation10 + $0x60] sm:$0xff]
    %v1823 = vld [vmem:[#allocation10 + $0x68] sm:$0xff]
    %v1824 = vld [vmem:[#allocation10 + $0x70] sm:$0xff]
    %v1825 = vld [vmem:[#allocation10 + $0x78] sm:$0xff]
    %v1826 = vld [vmem:[#allocation11] sm:$0xf]
    %v1828 = vlaneseq
    %v1829 = vshrl.u32 %v1828, 7
    %v1830 = vsub.s32 0, %v1829
    %v1831 = vrot.slane %v1826, %v1830
    %v1832 = vlaneseq
    %v1833 = vshrl.u32 %v1832, 7
    %v1834 = vsub.s32 1, %v1833
    %v1835 = vrot.slane %v1826, %v1834
    %v1836 = vlaneseq
    %v1837 = vshrl.u32 %v1836, 7
    %v1838 = vsub.s32 2, %v1837
    %v1839 = vrot.slane %v1826, %v1838
    %v1840 = vlaneseq
    %v1841 = vshrl.u32 %v1840, 7
    %v1842 = vsub.s32 3, %v1841
    %v1843 = vrot.slane %v1826, %v1842
    %vm1848 = vcmask 261120
    %v1850 = vsel %vm1848, %v1809, 0
    %1852 = vmatprep.subr.mxu0 %v1811
    %1853 = vmatpush1.msra.mxu0 %v1810
    %1854 = vmatprep.subr.mxu0 %v1815
    %1855 = vmatpush1.msra.mxu0 %v1814
    %1856 = vmatprep.subr.mxu0 %v1819
    %1857 = vmatpush1.msra.mxu0 %v1818
    %1858 = vmatprep.subr.mxu0 %v1823
    %1859 = vmatpush1.msra.mxu0 %v1822
    %1860 = vmatprep.subr.mxu0 0.0
    %1861 = vmatpush1.msra.mxu0 0.0
    %1862 = vmatprep.subr.mxu0 0.0
    %1863 = vmatpush1.msra.mxu0 0.0
    %1864 = vmatprep.subr.mxu0 0.0
    %1865 = vmatpush1.msra.mxu0 0.0
    %1866 = vmatprep.subr.mxu0 0.0
    %1867 = vmatpush1.msra.mxu0 0.0
    %1868 = vmatprep.subr.mxu0 0.0
    %1869 = vmatpush1.msra.mxu0 0.0
    %1870 = vmatprep.subr.mxu0 0.0
    %1871 = vmatpush1.msra.mxu0 0.0
    %1872 = vmatprep.subr.mxu0 0.0
    %1873 = vmatpush1.msra.mxu0 0.0
    %1874 = vmatprep.subr.mxu0 0.0
    %1875 = vmatpush1.msra.mxu0 0.0
    %1876 = vmatprep.subr.mxu0 0.0
    %1877 = vmatpush1.msra.mxu0 0.0
    %1878 = vmatprep.subr.mxu0 0.0
    %1879 = vmatpush1.msra.mxu0 0.0
    %1880 = vmatprep.subr.mxu0 0.0
    %1881 = vmatpush1.msra.mxu0 0.0
    %1882 = vmatprep.subr.mxu0 0.0
    %1883 = vmatpush1.msra.mxu0 0.0
    %1884 = vmatprep.subr.mxu0 0.0
    %1885 = vmatpush1.msra.mxu0 0.0
    %1886 = vmatprep.subr.mxu0 0.0
    %1887 = vmatpush1.msra.mxu0 0.0
    %1888 = vmatprep.subr.mxu0 0.0
    %1889 = vmatpush1.msra.mxu0 0.0
    %1890 = vmatprep.subr.mxu0 0.0
    %1891 = vmatpush1.msra.mxu0 0.0
    %1892 = vmatprep.subr.mxu0 0.0
    %1893 = vmatpush1.msra.mxu0 0.0
    %1894 = vmatprep.subr.mxu0 0.0
    %1895 = vmatpush1.msra.mxu0 0.0
    %1896 = vmatprep.subr.mxu0 0.0
    %1897 = vmatpush1.msra.mxu0 0.0
    %1898 = vmatprep.subr.mxu0 0.0
    %1899 = vmatpush1.msra.mxu0 0.0
    %1900 = vmatprep.subr.mxu0 0.0
    %1901 = vmatpush1.msra.mxu0 0.0
    %1902 = vmatprep.subr.mxu0 0.0
    %1903 = vmatpush1.msra.mxu0 0.0
    %1904 = vmatprep.subr.mxu0 0.0
    %1905 = vmatpush1.msra.mxu0 0.0
    %1906 = vmatprep.subr.mxu0 0.0
    %1907 = vmatpush1.msra.mxu0 0.0
    %1908 = vmatprep.subr.mxu0 0.0
    %1909 = vmatpush1.msra.mxu0 0.0
    %1910 = vmatprep.subr.mxu0 0.0
    %1911 = vmatpush1.msra.mxu0 0.0
    %1912 = vmatprep.subr.mxu0 0.0
    %1913 = vmatpush1.msra.mxu0 0.0
    %1914 = vmatprep.subr.mxu0 0.0
    %1915 = vmatpush1.msra.mxu0 0.0
    %1916 = vmatprep.mubr.f32.mxu0 0.0
    %1917 = vmatmul.mubr.f32.gmra.mrb[0].mxu0 %v1850
    %v1918 = vpop.f32.mrb[0].mxu0
    %v1919 = vadd.f32 %v1831, %v1918
    %v1920 = vpop.f32.mrb[0].mxu0
    %v1921 = vadd.f32 %v1835, %v1920
    %1922 = vdwg.mxu0
    %1923 = vmatprep.subr.mxu0 %v1813
    %1924 = vmatpush1.msra.mxu0 %v1812
    %1925 = vmatprep.subr.mxu0 %v1817
    %1926 = vmatpush1.msra.mxu0 %v1816
    %1927 = vmatprep.subr.mxu0 %v1821
    %1928 = vmatpush1.msra.mxu0 %v1820
    %1929 = vmatprep.subr.mxu0 %v1825
    %1930 = vmatpush1.msra.mxu0 %v1824
    %1931 = vmatprep.subr.mxu0 0.0
    %1932 = vmatpush1.msra.mxu0 0.0
    %1933 = vmatprep.subr.mxu0 0.0
    %1934 = vmatpush1.msra.mxu0 0.0
    %1935 = vmatprep.subr.mxu0 0.0
    %1936 = vmatpush1.msra.mxu0 0.0
    %1937 = vmatprep.subr.mxu0 0.0
    %1938 = vmatpush1.msra.mxu0 0.0
    %1939 = vmatprep.subr.mxu0 0.0
    %1940 = vmatpush1.msra.mxu0 0.0
    %1941 = vmatprep.subr.mxu0 0.0
    %1942 = vmatpush1.msra.mxu0 0.0
    %1943 = vmatprep.subr.mxu0 0.0
    %1944 = vmatpush1.msra.mxu0 0.0
    %1945 = vmatprep.subr.mxu0 0.0
    %1946 = vmatpush1.msra.mxu0 0.0
    %1947 = vmatprep.subr.mxu0 0.0
    %1948 = vmatpush1.msra.mxu0 0.0
    %1949 = vmatprep.subr.mxu0 0.0
    %1950 = vmatpush1.msra.mxu0 0.0
    %1951 = vmatprep.subr.mxu0 0.0
    %1952 = vmatpush1.msra.mxu0 0.0
    %1953 = vmatprep.subr.mxu0 0.0
    %1954 = vmatpush1.msra.mxu0 0.0
    %1955 = vmatprep.subr.mxu0 0.0
    %1956 = vmatpush1.msra.mxu0 0.0
    %1957 = vmatprep.subr.mxu0 0.0
    %1958 = vmatpush1.msra.mxu0 0.0
    %1959 = vmatprep.subr.mxu0 0.0
    %1960 = vmatpush1.msra.mxu0 0.0
    %1961 = vmatprep.subr.mxu0 0.0
    %1962 = vmatpush1.msra.mxu0 0.0
    %1963 = vmatprep.subr.mxu0 0.0
    %1964 = vmatpush1.msra.mxu0 0.0
    %1965 = vmatprep.subr.mxu0 0.0
    %1966 = vmatpush1.msra.mxu0 0.0
    %1967 = vmatprep.subr.mxu0 0.0
    %1968 = vmatpush1.msra.mxu0 0.0
    %1969 = vmatprep.subr.mxu0 0.0
    %1970 = vmatpush1.msra.mxu0 0.0
    %1971 = vmatprep.subr.mxu0 0.0
    %1972 = vmatpush1.msra.mxu0 0.0
    %1973 = vmatprep.subr.mxu0 0.0
    %1974 = vmatpush1.msra.mxu0 0.0
    %1975 = vmatprep.subr.mxu0 0.0
    %1976 = vmatpush1.msra.mxu0 0.0
    %1977 = vmatprep.subr.mxu0 0.0
    %1978 = vmatpush1.msra.mxu0 0.0
    %1979 = vmatprep.subr.mxu0 0.0
    %1980 = vmatpush1.msra.mxu0 0.0
    %1981 = vmatprep.subr.mxu0 0.0
    %1982 = vmatpush1.msra.mxu0 0.0
    %1983 = vmatprep.subr.mxu0 0.0
    %1984 = vmatpush1.msra.mxu0 0.0
    %1985 = vmatprep.subr.mxu0 0.0
    %1986 = vmatpush1.msra.mxu0 0.0
    %1987 = vmatprep.mubr.f32.mxu0 0.0
    %1988 = vmatmul.mubr.f32.gmra.mrb[0].mxu0 %v1850
    %v1989 = vpop.f32.mrb[0].mxu0
    %v1990 = vadd.f32 %v1839, %v1989
    %v1991 = vpop.f32.mrb[0].mxu0
    %v1992 = vadd.f32 %v1843, %v1991
    %1993 = vdwg.mxu0
    %v1994 = vmax.f32 %v1919, 0.0
    %v1995 = vmax.f32 %v1921, 0.0
    %v1996 = vmax.f32 %v1990, 0.0
    %v1997 = vmax.f32 %v1992, 0.0
    %v1998 = vld [vmem:[#allocation13] sm:$0xf]
    %v2000 = vlaneseq
    %v2001 = vshrl.u32 %v2000, 7
    %v2002 = vsub.s32 0, %v2001
    %v2003 = vrot.slane %v1998, %v2002
    %v2004 = vlaneseq
    %v2005 = vshrl.u32 %v2004, 7
    %v2006 = vsub.s32 1, %v2005
    %v2007 = vrot.slane %v1998, %v2006
    %v2008 = vlaneseq
    %v2009 = vshrl.u32 %v2008, 7
    %v2010 = vsub.s32 2, %v2009
    %v2011 = vrot.slane %v1998, %v2010
    %v2012 = vlaneseq
    %v2013 = vshrl.u32 %v2012, 7
    %v2014 = vsub.s32 3, %v2013
    %v2015 = vrot.slane %v1998, %v2014
    %v2020 = vmul.f32 %v1994, %v2003
    %v2021 = vmul.f32 %v1995, %v2007
    %v2022 = vmul.f32 %v1996, %v2011
    %v2023 = vmul.f32 %v1997, %v2015
    %v2024 = vld [vmem:[#allocation14] sm:$0xf]
    %v2026 = vlaneseq
    %v2027 = vshrl.u32 %v2026, 7
    %v2028 = vsub.s32 0, %v2027
    %v2029 = vrot.slane %v2024, %v2028
    %v2030 = vlaneseq
    %v2031 = vshrl.u32 %v2030, 7
    %v2032 = vsub.s32 1, %v2031
    %v2033 = vrot.slane %v2024, %v2032
    %v2034 = vlaneseq
    %v2035 = vshrl.u32 %v2034, 7
    %v2036 = vsub.s32 2, %v2035
    %v2037 = vrot.slane %v2024, %v2036
    %v2038 = vlaneseq
    %v2039 = vshrl.u32 %v2038, 7
    %v2040 = vsub.s32 3, %v2039
    %v2041 = vrot.slane %v2024, %v2040
    %v2046 = vadd.f32 %v2020, %v2029
    %v2047 = vadd.f32 %v2021, %v2033
    %v2048 = vadd.f32 %v2022, %v2037
    %v2049 = vadd.f32 %v2023, %v2041
    %v2050 = vmax.f32 %v1797, 0.0
    %v2051 = vld [vmem:[%s10] sm:$0xff]
    %v2052 = vld [vmem:[%s10 + $0x8] sm:$0xff]
    %v2053 = vld [vmem:[%s10 + $0x10] sm:$0xff]
    %v2054 = vld [vmem:[%s10 + $0x18] sm:$0xff]
    %v2055 = vld [vmem:[#allocation16] sm:$0x1]
    %v2057 = vlaneseq
    %v2058 = vshrl.u32 %v2057, 7
    %v2059 = vsub.s32 0, %v2058
    %v2060 = vrot.slane %v2055, %v2059
    %v2063 = vsel %vm1848, %v2050, 0
    %2065 = vmatprep.subr.mxu0 0.0
    %2066 = vmatpush1.msra.mxu0 %v2051
    %2067 = vmatprep.subr.mxu0 0.0
    %2068 = vmatpush1.msra.mxu0 %v2052
    %2069 = vmatprep.subr.mxu0 0.0
    %2070 = vmatpush1.msra.mxu0 %v2053
    %2071 = vmatprep.subr.mxu0 0.0
    %2072 = vmatpush1.msra.mxu0 %v2054
    %2073 = vmatprep.subr.mxu0 0.0
    %2074 = vmatpush1.msra.mxu0 0.0
    %2075 = vmatprep.subr.mxu0 0.0
    %2076 = vmatpush1.msra.mxu0 0.0
    %2077 = vmatprep.subr.mxu0 0.0
    %2078 = vmatpush1.msra.mxu0 0.0
    %2079 = vmatprep.subr.mxu0 0.0
    %2080 = vmatpush1.msra.mxu0 0.0
    %2081 = vmatprep.subr.mxu0 0.0
    %2082 = vmatpush1.msra.mxu0 0.0
    %2083 = vmatprep.subr.mxu0 0.0
    %2084 = vmatpush1.msra.mxu0 0.0
    %2085 = vmatprep.subr.mxu0 0.0
    %2086 = vmatpush1.msra.mxu0 0.0
    %2087 = vmatprep.subr.mxu0 0.0
    %2088 = vmatpush1.msra.mxu0 0.0
    %2089 = vmatprep.subr.mxu0 0.0
    %2090 = vmatpush1.msra.mxu0 0.0
    %2091 = vmatprep.subr.mxu0 0.0
    %2092 = vmatpush1.msra.mxu0 0.0
    %2093 = vmatprep.subr.mxu0 0.0
    %2094 = vmatpush1.msra.mxu0 0.0
    %2095 = vmatprep.subr.mxu0 0.0
    %2096 = vmatpush1.msra.mxu0 0.0
    %2097 = vmatprep.subr.mxu0 0.0
    %2098 = vmatpush1.msra.mxu0 0.0
    %2099 = vmatprep.subr.mxu0 0.0
    %2100 = vmatpush1.msra.mxu0 0.0
    %2101 = vmatprep.subr.mxu0 0.0
    %2102 = vmatpush1.msra.mxu0 0.0
    %2103 = vmatprep.subr.mxu0 0.0
    %2104 = vmatpush1.msra.mxu0 0.0
    %2105 = vmatprep.subr.mxu0 0.0
    %2106 = vmatpush1.msra.mxu0 0.0
    %2107 = vmatprep.subr.mxu0 0.0
    %2108 = vmatpush1.msra.mxu0 0.0
    %2109 = vmatprep.subr.mxu0 0.0
    %2110 = vmatpush1.msra.mxu0 0.0
    %2111 = vmatprep.subr.mxu0 0.0
    %2112 = vmatpush1.msra.mxu0 0.0
    %2113 = vmatprep.subr.mxu0 0.0
    %2114 = vmatpush1.msra.mxu0 0.0
    %2115 = vmatprep.subr.mxu0 0.0
    %2116 = vmatpush1.msra.mxu0 0.0
    %2117 = vmatprep.subr.mxu0 0.0
    %2118 = vmatpush1.msra.mxu0 0.0
    %2119 = vmatprep.subr.mxu0 0.0
    %2120 = vmatpush1.msra.mxu0 0.0
    %2121 = vmatprep.subr.mxu0 0.0
    %2122 = vmatpush1.msra.mxu0 0.0
    %2123 = vmatprep.subr.mxu0 0.0
    %2124 = vmatpush1.msra.mxu0 0.0
    %2125 = vmatprep.subr.mxu0 0.0
    %2126 = vmatpush1.msra.mxu0 0.0
    %2127 = vmatprep.subr.mxu0 0.0
    %2128 = vmatpush1.msra.mxu0 0.0
    %2129 = vmatprep.mubr.f32.mxu0 0.0
    %2130 = vmatmul.mubr.f32.gmra.mrb[0].mxu0 %v2063
    %v2131 = vpop.f32.mrb[0].mxu0
    %v2132 = vadd.f32 %v2060, %v2131
    %v2133 = vpop.f32.mrb[0].mxu0
    %2134 = vdwg.mxu0
    %v2135 = vmax.f32 %v2132, 0.0
    %v2136 = vld [vmem:[%s12] sm:$0xff]
    %v2137 = vld [vmem:[%s12 + $0x8] sm:$0xff]
    %v2138 = vld [vmem:[#allocation17] sm:$0x1]
    %v2140 = vlaneseq
    %v2141 = vshrl.u32 %v2140, 7
    %v2142 = vsub.s32 0, %v2141
    %v2143 = vrot.slane %v2138, %v2142
    %vm2145 = vcmask 130048
    %v2147 = vsel %vm2145, %v2135, 0
    %2149 = vmatprep.subr.mxu0 0.0
    %2150 = vmatpush1.msra.mxu0 %v2136
    %2151 = vmatprep.subr.mxu0 0.0
    %2152 = vmatpush1.msra.mxu0 %v2137
    %2153 = vmatprep.subr.mxu0 0.0
    %2154 = vmatpush1.msra.mxu0 0.0
    %2155 = vmatprep.subr.mxu0 0.0
    %2156 = vmatpush1.msra.mxu0 0.0
    %2157 = vmatprep.subr.mxu0 0.0
    %2158 = vmatpush1.msra.mxu0 0.0
    %2159 = vmatprep.subr.mxu0 0.0
    %2160 = vmatpush1.msra.mxu0 0.0
    %2161 = vmatprep.subr.mxu0 0.0
    %2162 = vmatpush1.msra.mxu0 0.0
    %2163 = vmatprep.subr.mxu0 0.0
    %2164 = vmatpush1.msra.mxu0 0.0
    %2165 = vmatprep.subr.mxu0 0.0
    %2166 = vmatpush1.msra.mxu0 0.0
    %2167 = vmatprep.subr.mxu0 0.0
    %2168 = vmatpush1.msra.mxu0 0.0
    %2169 = vmatprep.subr.mxu0 0.0
    %2170 = vmatpush1.msra.mxu0 0.0
    %2171 = vmatprep.subr.mxu0 0.0
    %2172 = vmatpush1.msra.mxu0 0.0
    %2173 = vmatprep.subr.mxu0 0.0
    %2174 = vmatpush1.msra.mxu0 0.0
    %2175 = vmatprep.subr.mxu0 0.0
    %2176 = vmatpush1.msra.mxu0 0.0
    %2177 = vmatprep.subr.mxu0 0.0
    %2178 = vmatpush1.msra.mxu0 0.0
    %2179 = vmatprep.subr.mxu0 0.0
    %2180 = vmatpush1.msra.mxu0 0.0
    %2181 = vmatprep.subr.mxu0 0.0
    %2182 = vmatpush1.msra.mxu0 0.0
    %2183 = vmatprep.subr.mxu0 0.0
    %2184 = vmatpush1.msra.mxu0 0.0
    %2185 = vmatprep.subr.mxu0 0.0
    %2186 = vmatpush1.msra.mxu0 0.0
    %2187 = vmatprep.subr.mxu0 0.0
    %2188 = vmatpush1.msra.mxu0 0.0
    %2189 = vmatprep.subr.mxu0 0.0
    %2190 = vmatpush1.msra.mxu0 0.0
    %2191 = vmatprep.subr.mxu0 0.0
    %2192 = vmatpush1.msra.mxu0 0.0
    %2193 = vmatprep.subr.mxu0 0.0
    %2194 = vmatpush1.msra.mxu0 0.0
    %2195 = vmatprep.subr.mxu0 0.0
    %2196 = vmatpush1.msra.mxu0 0.0
    %2197 = vmatprep.subr.mxu0 0.0
    %2198 = vmatpush1.msra.mxu0 0.0
    %2199 = vmatprep.subr.mxu0 0.0
    %2200 = vmatpush1.msra.mxu0 0.0
    %2201 = vmatprep.subr.mxu0 0.0
    %2202 = vmatpush1.msra.mxu0 0.0
    %2203 = vmatprep.subr.mxu0 0.0
    %2204 = vmatpush1.msra.mxu0 0.0
    %2205 = vmatprep.subr.mxu0 0.0
    %2206 = vmatpush1.msra.mxu0 0.0
    %2207 = vmatprep.subr.mxu0 0.0
    %2208 = vmatpush1.msra.mxu0 0.0
    %2209 = vmatprep.subr.mxu0 0.0
    %2210 = vmatpush1.msra.mxu0 0.0
    %2211 = vmatprep.subr.mxu0 0.0
    %2212 = vmatpush1.msra.mxu0 0.0
    %2213 = vmatprep.mubr.f32.mxu0 0.0
    %2214 = vmatmul.mubr.f32.gmra.mrb[0].mxu0 %v2147
    %v2215 = vpop.f32.mrb[0].mxu0
    %v2216 = vadd.f32 %v2143, %v2215
    %v2217 = vpop.f32.mrb[0].mxu0
    %2218 = vdwg.mxu0
    %v2219 = vmax.f32 %v2216, 0.0
    %v2220 = vld [vmem:[%s14] sm:$0xf]
    %v2221 = vld [vmem:[#allocation19] sm:$0x1]
    %v2223 = vlaneseq
    %v2224 = vshrl.u32 %v2223, 7
    %v2225 = vsub.s32 0, %v2224
    %v2226 = vrot.slane %v2221, %v2225
    %vm2228 = vcmask 31744
    %v2230 = vsel %vm2228, %v2219, 0
    %vm2232 = vcmask 1043456
    %v2234 = vsel %vm2232, %v2220, 0
    %2236 = vmatprep.subr.mxu0 0.0
    %2237 = vmatpush1.msra.mxu0 %v2234
    %2238 = vmatprep.subr.mxu0 0.0
    %2239 = vmatpush1.msra.mxu0 0.0
    %2240 = vmatprep.subr.mxu0 0.0
    %2241 = vmatpush1.msra.mxu0 0.0
    %2242 = vmatprep.subr.mxu0 0.0
    %2243 = vmatpush1.msra.mxu0 0.0
    %2244 = vmatprep.subr.mxu0 0.0
    %2245 = vmatpush1.msra.mxu0 0.0
    %2246 = vmatprep.subr.mxu0 0.0
    %2247 = vmatpush1.msra.mxu0 0.0
    %2248 = vmatprep.subr.mxu0 0.0
    %2249 = vmatpush1.msra.mxu0 0.0
    %2250 = vmatprep.subr.mxu0 0.0
    %2251 = vmatpush1.msra.mxu0 0.0
    %2252 = vmatprep.subr.mxu0 0.0
    %2253 = vmatpush1.msra.mxu0 0.0
    %2254 = vmatprep.subr.mxu0 0.0
    %2255 = vmatpush1.msra.mxu0 0.0
    %2256 = vmatprep.subr.mxu0 0.0
    %2257 = vmatpush1.msra.mxu0 0.0
    %2258 = vmatprep.subr.mxu0 0.0
    %2259 = vmatpush1.msra.mxu0 0.0
    %2260 = vmatprep.subr.mxu0 0.0
    %2261 = vmatpush1.msra.mxu0 0.0
    %2262 = vmatprep.subr.mxu0 0.0
    %2263 = vmatpush1.msra.mxu0 0.0
    %2264 = vmatprep.subr.mxu0 0.0
    %2265 = vmatpush1.msra.mxu0 0.0
    %2266 = vmatprep.subr.mxu0 0.0
    %2267 = vmatpush1.msra.mxu0 0.0
    %2268 = vmatprep.subr.mxu0 0.0
    %2269 = vmatpush1.msra.mxu0 0.0
    %2270 = vmatprep.subr.mxu0 0.0
    %2271 = vmatpush1.msra.mxu0 0.0
    %2272 = vmatprep.subr.mxu0 0.0
    %2273 = vmatpush1.msra.mxu0 0.0
    %2274 = vmatprep.subr.mxu0 0.0
    %2275 = vmatpush1.msra.mxu0 0.0
    %2276 = vmatprep.subr.mxu0 0.0
    %2277 = vmatpush1.msra.mxu0 0.0
    %2278 = vmatprep.subr.mxu0 0.0
    %2279 = vmatpush1.msra.mxu0 0.0
    %2280 = vmatprep.subr.mxu0 0.0
    %2281 = vmatpush1.msra.mxu0 0.0
    %2282 = vmatprep.subr.mxu0 0.0
    %2283 = vmatpush1.msra.mxu0 0.0
    %2284 = vmatprep.subr.mxu0 0.0
    %2285 = vmatpush1.msra.mxu0 0.0
    %2286 = vmatprep.subr.mxu0 0.0
    %2287 = vmatpush1.msra.mxu0 0.0
    %2288 = vmatprep.subr.mxu0 0.0
    %2289 = vmatpush1.msra.mxu0 0.0
    %2290 = vmatprep.subr.mxu0 0.0
    %2291 = vmatpush1.msra.mxu0 0.0
    %2292 = vmatprep.subr.mxu0 0.0
    %2293 = vmatpush1.msra.mxu0 0.0
    %2294 = vmatprep.subr.mxu0 0.0
    %2295 = vmatpush1.msra.mxu0 0.0
    %2296 = vmatprep.subr.mxu0 0.0
    %2297 = vmatpush1.msra.mxu0 0.0
    %2298 = vmatprep.subr.mxu0 0.0
    %2299 = vmatpush1.msra.mxu0 0.0
    %2300 = vmatprep.mubr.f32.mxu0 0.0
    %2301 = vmatmul.mubr.f32.gmra.mrb[0].mxu0 %v2230
    %v2302 = vpop.f32.mrb[0].mxu0
    %v2303 = vadd.f32 %v2226, %v2302
    %v2304 = vpop.f32.mrb[0].mxu0
    %2305 = vdwg.mxu0
    %v2306 = vxor.u32 %v2303, 2147483648
    %v2307 = vmul.f32 %v2306, 1.442695
    %v2308 = vpow.pop %v2307
    %v2309 = vadd.f32 %v2308, 1.0
    %v2310 = vrcp.pop %v2309
    %v2311 = vmul.f32 1.0, %v2310
    %vm2312 = vcmask 254976
    %2313 = vst.msk [vmem:[#allocation20] sm:$0x3] %vm2312, %v1797
    %2315 = vrot.lane.b32.xlu0 %v1797, 96
    %v2316 = vpop.permute.xlu0 %2315
    %2318 = vst.msk [vmem:[#allocation21] sm:$0x3] %vm2312, %v2316
    %2319 = vst.msk [vmem:[#allocation23] sm:$0x3] %vm2312, %v1809
    %v2324 = vcombine.low %v2046, %v2047
    %v2325 = vcombine.low %v2048, %v2049
    %v2327 = vunpack.c.l.s4 1983009808
    %v2328 = vunpack.c.0.s8 %v2327
    %v2329 = vlaneseq
    %v2330 = vshrl.u32 %v2329, 7
    %v2331 = vsub.s32 %v2328, %v2330
    %v2332 = vrot.slane %v2324, %v2331
    %v2334 = vunpack.c.l.s4 1983009808
    %v2335 = vunpack.c.0.s8 %v2334
    %v2336 = vlaneseq
    %v2337 = vshrl.u32 %v2336, 7
    %v2338 = vsub.s32 %v2335, %v2337
    %v2339 = vrot.slane %v2325, %v2338
    %v2340 = vcombine.low %v2332, %v2339
    %2342 = vst [vmem:[%s19] sm:$0xff] %v2340
    %vm2343 = vcmask 9216
    %2344 = vst.msk [vmem:[#allocation24] sm:$0x3] %vm2343, %v2311
    // Predicated region
    $region110: #{vae_forward.10} parent=1 // pred_check
      _
    $region111: #{vae_forward.10} parent=1 // pred_check_branch
      %2346 = sbr.rel (0) target = $region113
    $region112: #{vae_forward.10} parent=1 // pred_region
      %s2348 = ssub.s32 32, 32
      %2349 = vsyncadd [#allocation4], %s2348
      %s2351 = sshll.u32 [#allocation20], 4
      %s2352 = int_to_ptr.vmem [resolvable:$true] %s2351
      %2354 = dma.vmem_to_hbm [thread:$0]  %s2352, 32, %s16, [#allocation4]
    $region113: #{vae_forward.10} parent=1 // pred_fallthru
      _
    // Predicated region
    $region114: #{vae_forward.10} parent=1 // pred_check
      _
    $region115: #{vae_forward.10} parent=1 // pred_check_branch
      %2356 = sbr.rel (0) target = $region117
    $region116: #{vae_forward.10} parent=1 // pred_region
      %s2358 = ssub.s32 32, 32
      %2359 = vsyncadd [#allocation22], %s2358
      %s2361 = sshll.u32 [#allocation21], 4
      %s2362 = int_to_ptr.vmem [resolvable:$true] %s2361
      %2364 = dma.vmem_to_hbm [thread:$0]  %s2362, 32, %s17, [#allocation22]
    $region117: #{vae_forward.10} parent=1 // pred_fallthru
      _
    // Predicated region
    $region118: #{vae_forward.10} parent=1 // pred_check
      _
    $region119: #{vae_forward.10} parent=1 // pred_check_branch
      %2366 = sbr.rel (0) target = $region121
    $region120: #{vae_forward.10} parent=1 // pred_region
      %s2368 = ssub.s32 32, 32
      %2369 = vsyncadd [#allocation22], %s2368
      %s2371 = sshll.u32 [#allocation23], 4
      %s2372 = int_to_ptr.vmem [resolvable:$true] %s2371
      %2374 = dma.vmem_to_hbm [thread:$0]  %s2372, 32, %s18, [#allocation22]
    $region121: #{vae_forward.10} parent=1 // pred_fallthru
      _
    // Predicated region
    $region122: #{vae_forward.10} parent=1 // pred_check
      _
    $region123: #{vae_forward.10} parent=1 // pred_check_branch
      %2376 = sbr.rel (0) target = $region125
    $region124: #{vae_forward.10} parent=1 // pred_region
      _
    $region125: #{vae_forward.10} parent=1 // pred_fallthru
      _
    // Predicated region
    $region126: #{vae_forward.10} parent=1 // pred_check
      _
    $region127: #{vae_forward.10} parent=1 // pred_check_branch
      %2378 = sbr.rel (0) target = $region129
    $region128: #{vae_forward.10} parent=1 // pred_region
      %s2380 = ssub.s32 32, 32
      %2381 = vsyncadd [#allocation25], %s2380
      %s2383 = sshll.u32 [#allocation24], 4
      %s2384 = int_to_ptr.vmem [resolvable:$true] %s2383
      %2386 = dma.vmem_to_hbm [thread:$0]  %s2384, 32, %s20, [#allocation25]
    $region129: #{vae_forward.10} parent=1 // pred_fallthru
      _
    // Predicated region
    $region130: #{vae_forward.10} parent=1 // pred_check
      _
    $region131: #{vae_forward.10} parent=1 // pred_check_branch
      %2388 = sbr.rel (0) target = $region133
    $region132: #{vae_forward.10} parent=1 // pred_region
      %2389 = dma.done [#allocation4], 32
    $region133: #{vae_forward.10} parent=1 // pred_fallthru
      _
    // Predicated region
    $region134: #{vae_forward.10} parent=1 // pred_check
      _
    $region135: #{vae_forward.10} parent=1 // pred_check_branch
      %2391 = sbr.rel (0) target = $region137
    $region136: #{vae_forward.10} parent=1 // pred_region
      %2392 = dma.done [#allocation22], 32
    $region137: #{vae_forward.10} parent=1 // pred_fallthru
      _
    // Predicated region
    $region138: #{vae_forward.10} parent=1 // pred_check
      _
    $region139: #{vae_forward.10} parent=1 // pred_check_branch
      %2394 = sbr.rel (0) target = $region141
    $region140: #{vae_forward.10} parent=1 // pred_region
      %2395 = dma.done [#allocation22], 32
    $region141: #{vae_forward.10} parent=1 // pred_fallthru
      _
    // Predicated region
    $region142: #{vae_forward.10} parent=1 // pred_check
      _
    $region143: #{vae_forward.10} parent=1 // pred_check_branch
      %2397 = sbr.rel (0) target = $region145
    $region144: #{vae_forward.10} parent=1 // pred_region
      _
    $region145: #{vae_forward.10} parent=1 // pred_fallthru
      _
    // Predicated region
    $region146: #{vae_forward.10} parent=1 // pred_check
      _
    $region147: #{vae_forward.10} parent=1 // pred_check_branch
      %2399 = sbr.rel (0) target = $region149
    $region148: #{vae_forward.10} parent=1 // pred_region
      %2400 = dma.done [#allocation25], 32
    $region149: #{vae_forward.10} parent=1 // pred_fallthru
      _
    %2401 = vsyncpa [#allocation3], 1
    %2402 = vsyncpa [#allocation6], 1
    %2403 = vsyncpa [#allocation9], 1
    %2404 = vsyncpa [#allocation12], 1
    %2405 = vsyncpa [#allocation15], 1
    %2406 = vsyncpa [#allocation18], 1
    %2407 = vsyncpa [#allocation4], 1
    %2408 = vsyncpa [#allocation22], 1
    %2409 = vsyncpa [#allocation25], 1

// kernel: vae_forward.12
$region0: #{vae_forward.12}
  #allocation0 [shape = 'u32[]', space=smem, size = 0x4, offset = 0x4, fixed_abs, tag = 'smem constant byte address 0x4 - core index']
  #allocation1 [shape = 'u32[144,128]{1,0:T(1,128)}', space=vmem, size = 0x12000, scoped, tag = 'internal scratch']
  %s0 = inlined_call_operand.vmem [shape: f32[16,192], index: 0, kind: input, shape index: {}]
  %s1 = inlined_call_operand.vmem [shape: f32[192,32], index: 1, kind: input, shape index: {}]
  %s2 = inlined_call_operand.vmem [shape: f32[1,32], index: 2, kind: input, shape index: {}]
  %s3 = inlined_call_operand.vmem [shape: f32[16,32], index: 3, kind: output, shape index: {}]
  %s4 = sld [smem:[#allocation0]]
  $region22: #{vae_forward.12} parent=0
    _
  %s6 = ssub.s32 1, %s4
  %s7 = scalar_select 0, %s6, %s4
  // Predicated region
  $region2: #{vae_forward.12} parent=0 // pred_check
    _
  $region3: #{vae_forward.12} parent=0 // pred_check_branch
    %9 = sbr.rel (0) target = $region5
  $region4: #{vae_forward.12} parent=0 // pred_region
    _
  $region5: #{vae_forward.12} parent=0 // pred_fallthru
    _
  // Predicated region
  $region6: #{vae_forward.12} parent=0 // pred_check
    _
  $region7: #{vae_forward.12} parent=0 // pred_check_branch
    %11 = sbr.rel (0) target = $region9
  $region8: #{vae_forward.12} parent=0 // pred_region
    _
  $region9: #{vae_forward.12} parent=0 // pred_fallthru
    _
  // Predicated region
  $region10: #{vae_forward.12} parent=0 // pred_check
    _
  $region11: #{vae_forward.12} parent=0 // pred_check_branch
    %13 = sbr.rel (0) target = $region13
  $region12: #{vae_forward.12} parent=0 // pred_region
    _
  $region13: #{vae_forward.12} parent=0 // pred_fallthru
    _
  %v14 = vld [vmem:[%s0] sm:$0xff]
  %v15 = vld [vmem:[%s0 + $0x8] sm:$0xff]
  %v16 = vld [vmem:[%s0 + $0x10] sm:$0xff]
  %v17 = vld [vmem:[%s0 + $0x18] sm:$0xff]
  %v18 = vld [vmem:[%s1] sm:$0xff]
  %v19 = vld [vmem:[%s1 + $0x8] sm:$0xff]
  %v20 = vld [vmem:[%s1 + $0x10] sm:$0xff]
  %v21 = vld [vmem:[%s1 + $0x18] sm:$0xff]
  %v22 = vld [vmem:[%s1 + $0x20] sm:$0xff]
  %v23 = vld [vmem:[%s1 + $0x28] sm:$0xff]
  %v24 = vld [vmem:[%s1 + $0x30] sm:$0xff]
  %v25 = vld [vmem:[%s1 + $0x38] sm:$0xff]
  %v26 = vld [vmem:[%s1 + $0x40] sm:$0xff]
  %v27 = vld [vmem:[%s1 + $0x48] sm:$0xff]
  %v28 = vld [vmem:[%s1 + $0x50] sm:$0xff]
  %v29 = vld [vmem:[%s1 + $0x58] sm:$0xff]
  %v30 = vld [vmem:[%s1 + $0x60] sm:$0xff]
  %v31 = vld [vmem:[%s1 + $0x68] sm:$0xff]
  %v32 = vld [vmem:[%s1 + $0x70] sm:$0xff]
  %v33 = vld [vmem:[%s1 + $0x78] sm:$0xff]
  %v34 = vld [vmem:[%s1 + $0x80] sm:$0xff]
  %v35 = vld [vmem:[%s1 + $0x88] sm:$0xff]
  %v36 = vld [vmem:[%s1 + $0x90] sm:$0xff]
  %v37 = vld [vmem:[%s1 + $0x98] sm:$0xff]
  %v38 = vld [vmem:[%s1 + $0xa0] sm:$0xff]
  %v39 = vld [vmem:[%s1 + $0xa8] sm:$0xff]
  %v40 = vld [vmem:[%s1 + $0xb0] sm:$0xff]
  %v41 = vld [vmem:[%s1 + $0xb8] sm:$0xff]
  %v42 = vld [vmem:[%s2] sm:$0x1]
  %v44 = vlaneseq
  %v45 = vshrl.u32 %v44, 7
  %v46 = vsub.s32 0, %v45
  %v47 = vrot.slane %v42, %v46
  %vm49 = vcmask 523264
  %v51 = vsel %vm49, %v15, 0
  %v54 = vsel %vm49, %v17, 0
  %56 = vmatprep.subr.mxu0 0.0
  %57 = vmatpush1.msra.mxu0 %v18
  %58 = vmatprep.subr.mxu0 0.0
  %59 = vmatpush1.msra.mxu0 %v19
  %60 = vmatprep.subr.mxu0 0.0
  %61 = vmatpush1.msra.mxu0 %v20
  %62 = vmatprep.subr.mxu0 0.0
  %63 = vmatpush1.msra.mxu0 %v21
  %64 = vmatprep.subr.mxu0 0.0
  %65 = vmatpush1.msra.mxu0 %v22
  %66 = vmatprep.subr.mxu0 0.0
  %67 = vmatpush1.msra.mxu0 %v23
  %68 = vmatprep.subr.mxu0 0.0
  %69 = vmatpush1.msra.mxu0 %v24
  %70 = vmatprep.subr.mxu0 0.0
  %71 = vmatpush1.msra.mxu0 %v25
  %72 = vmatprep.subr.mxu0 0.0
  %73 = vmatpush1.msra.mxu0 %v26
  %74 = vmatprep.subr.mxu0 0.0
  %75 = vmatpush1.msra.mxu0 %v27
  %76 = vmatprep.subr.mxu0 0.0
  %77 = vmatpush1.msra.mxu0 %v28
  %78 = vmatprep.subr.mxu0 0.0
  %79 = vmatpush1.msra.mxu0 %v29
  %80 = vmatprep.subr.mxu0 0.0
  %81 = vmatpush1.msra.mxu0 %v30
  %82 = vmatprep.subr.mxu0 0.0
  %83 = vmatpush1.msra.mxu0 %v31
  %84 = vmatprep.subr.mxu0 0.0
  %85 = vmatpush1.msra.mxu0 %v32
  %86 = vmatprep.subr.mxu0 0.0
  %87 = vmatpush1.msra.mxu0 %v33
  %88 = vmatprep.subr.mxu0 0.0
  %89 = vmatpush1.msra.mxu0 %v34
  %90 = vmatprep.subr.mxu0 0.0
  %91 = vmatpush1.msra.mxu0 %v35
  %92 = vmatprep.subr.mxu0 0.0
  %93 = vmatpush1.msra.mxu0 %v36
  %94 = vmatprep.subr.mxu0 0.0
  %95 = vmatpush1.msra.mxu0 %v37
  %96 = vmatprep.subr.mxu0 0.0
  %97 = vmatpush1.msra.mxu0 %v38
  %98 = vmatprep.subr.mxu0 0.0
  %99 = vmatpush1.msra.mxu0 %v39
  %100 = vmatprep.subr.mxu0 0.0
  %101 = vmatpush1.msra.mxu0 %v40
  %102 = vmatprep.subr.mxu0 0.0
  %103 = vmatpush1.msra.mxu0 %v41
  %104 = vmatprep.subr.mxu0 0.0
  %105 = vmatpush1.msra.mxu0 0.0
  %106 = vmatprep.subr.mxu0 0.0
  %107 = vmatpush1.msra.mxu0 0.0
  %108 = vmatprep.subr.mxu0 0.0
  %109 = vmatpush1.msra.mxu0 0.0
  %110 = vmatprep.subr.mxu0 0.0
  %111 = vmatpush1.msra.mxu0 0.0
  %112 = vmatprep.subr.mxu0 0.0
  %113 = vmatpush1.msra.mxu0 0.0
  %114 = vmatprep.subr.mxu0 0.0
  %115 = vmatpush1.msra.mxu0 0.0
  %116 = vmatprep.subr.mxu0 0.0
  %117 = vmatpush1.msra.mxu0 0.0
  %118 = vmatprep.subr.mxu0 0.0
  %119 = vmatpush1.msra.mxu0 0.0
  %120 = vmatprep.mubr.f32.mxu0 %v51
  %121 = vmatmul.mubr.f32.gmra.mrb[0].mxu0 %v14
  %v122 = vpop.f32.mrb[0].mxu0
  %v123 = vadd.f32 %v47, %v122
  %v124 = vpop.f32.mrb[0].mxu0
  %125 = vmatprep.mubr.f32.mxu0 %v54
  %126 = vmatmul.mubr.f32.gmra.mrb[0].mxu0 %v16
  %v127 = vpop.f32.mrb[0].mxu0
  %v128 = vadd.f32 %v47, %v127
  %v129 = vpop.f32.mrb[0].mxu0
  %130 = vdwg.mxu0
  %vm131 = vcmask 261120
  %132 = vst.msk [vmem:[%s3] sm:$0xff] %vm131, %v123
  %133 = vst.msk [vmem:[%s3 + $0x8] sm:$0xff] %vm131, %v128
  // Predicated region
  $region14: #{vae_forward.12} parent=0 // pred_check
    _
  $region15: #{vae_forward.12} parent=0 // pred_check_branch
    %135 = sbr.rel (0) target = $region17
  $region16: #{vae_forward.12} parent=0 // pred_region
    _
  $region17: #{vae_forward.12} parent=0 // pred_fallthru
    _
  // Predicated region
  $region18: #{vae_forward.12} parent=0 // pred_check
    _
  $region19: #{vae_forward.12} parent=0 // pred_check_branch
    %137 = sbr.rel (0) target = $region21
  $region20: #{vae_forward.12} parent=0 // pred_region
    _
  $region21: #{vae_forward.12} parent=0 // pred_fallthru
    _

// kernel: vae_forward.13
$region0: #{vae_forward.13}
  #allocation0 [shape = 'u32[]', space=smem, size = 0x4, offset = 0x4, fixed_abs, tag = 'smem constant byte address 0x4 - core index']
  #allocation1 [shape = 'u32[144,128]{1,0:T(1,128)}', space=vmem, size = 0x12000, scoped, tag = 'internal scratch']
  %s0 = inlined_call_operand.vmem [shape: f32[32,160], index: 0, kind: input, shape index: {}]
  %s1 = inlined_call_operand.vmem [shape: f32[160,4], index: 1, kind: input, shape index: {}]
  %s2 = inlined_call_operand.vmem [shape: f32[1,4], index: 2, kind: input, shape index: {}]
  %s3 = inlined_call_operand.vmem [shape: f32[32,4], index: 3, kind: output, shape index: {}]
  %s4 = sld [smem:[#allocation0]]
  $region22: #{vae_forward.13} parent=0
    _
  %s6 = ssub.s32 1, %s4
  %s7 = scalar_select 0, %s6, %s4
  // Predicated region
  $region2: #{vae_forward.13} parent=0 // pred_check
    _
  $region3: #{vae_forward.13} parent=0 // pred_check_branch
    %9 = sbr.rel (0) target = $region5
  $region4: #{vae_forward.13} parent=0 // pred_region
    _
  $region5: #{vae_forward.13} parent=0 // pred_fallthru
    _
  // Predicated region
  $region6: #{vae_forward.13} parent=0 // pred_check
    _
  $region7: #{vae_forward.13} parent=0 // pred_check_branch
    %11 = sbr.rel (0) target = $region9
  $region8: #{vae_forward.13} parent=0 // pred_region
    _
  $region9: #{vae_forward.13} parent=0 // pred_fallthru
    _
  // Predicated region
  $region10: #{vae_forward.13} parent=0 // pred_check
    _
  $region11: #{vae_forward.13} parent=0 // pred_check_branch
    %13 = sbr.rel (0) target = $region13
  $region12: #{vae_forward.13} parent=0 // pred_region
    _
  $region13: #{vae_forward.13} parent=0 // pred_fallthru
    _
  %v14 = vld [vmem:[%s0] sm:$0xff]
  %v15 = vld [vmem:[%s0 + $0x8] sm:$0xff]
  %v16 = vld [vmem:[%s0 + $0x10] sm:$0xff]
  %v17 = vld [vmem:[%s0 + $0x18] sm:$0xff]
  %v18 = vld [vmem:[%s0 + $0x20] sm:$0xff]
  %v19 = vld [vmem:[%s0 + $0x28] sm:$0xff]
  %v20 = vld [vmem:[%s0 + $0x30] sm:$0xff]
  %v21 = vld [vmem:[%s0 + $0x38] sm:$0xff]
  %v22 = vld [vmem:[%s1] sm:$0xff]
  %v23 = vld [vmem:[%s1 + $0x8] sm:$0xff]
  %v24 = vld [vmem:[%s1 + $0x10] sm:$0xff]
  %v25 = vld [vmem:[%s1 + $0x18] sm:$0xff]
  %v26 = vld [vmem:[%s1 + $0x20] sm:$0xff]
  %v27 = vld [vmem:[%s1 + $0x28] sm:$0xff]
  %v28 = vld [vmem:[%s1 + $0x30] sm:$0xff]
  %v29 = vld [vmem:[%s1 + $0x38] sm:$0xff]
  %v30 = vld [vmem:[%s1 + $0x40] sm:$0xff]
  %v31 = vld [vmem:[%s1 + $0x48] sm:$0xff]
  %v32 = vld [vmem:[%s1 + $0x50] sm:$0xff]
  %v33 = vld [vmem:[%s1 + $0x58] sm:$0xff]
  %v34 = vld [vmem:[%s1 + $0x60] sm:$0xff]
  %v35 = vld [vmem:[%s1 + $0x68] sm:$0xff]
  %v36 = vld [vmem:[%s1 + $0x70] sm:$0xff]
  %v37 = vld [vmem:[%s1 + $0x78] sm:$0xff]
  %v38 = vld [vmem:[%s1 + $0x80] sm:$0xff]
  %v39 = vld [vmem:[%s1 + $0x88] sm:$0xff]
  %v40 = vld [vmem:[%s1 + $0x90] sm:$0xff]
  %v41 = vld [vmem:[%s1 + $0x98] sm:$0xff]
  %v42 = vld [vmem:[%s2] sm:$0x1]
  %v44 = vlaneseq
  %v45 = vshrl.u32 %v44, 7
  %v46 = vsub.s32 0, %v45
  %v47 = vrot.slane %v42, %v46
  %vm49 = vcmask 261120
  %v51 = vsel %vm49, %v15, 0
  %v54 = vsel %vm49, %v17, 0
  %v57 = vsel %vm49, %v19, 0
  %v60 = vsel %vm49, %v21, 0
  %62 = vmatprep.subr.mxu0 0.0
  %63 = vmatpush1.msra.mxu0 %v22
  %64 = vmatprep.subr.mxu0 0.0
  %65 = vmatpush1.msra.mxu0 %v23
  %66 = vmatprep.subr.mxu0 0.0
  %67 = vmatpush1.msra.mxu0 %v24
  %68 = vmatprep.subr.mxu0 0.0
  %69 = vmatpush1.msra.mxu0 %v25
  %70 = vmatprep.subr.mxu0 0.0
  %71 = vmatpush1.msra.mxu0 %v26
  %72 = vmatprep.subr.mxu0 0.0
  %73 = vmatpush1.msra.mxu0 %v27
  %74 = vmatprep.subr.mxu0 0.0
  %75 = vmatpush1.msra.mxu0 %v28
  %76 = vmatprep.subr.mxu0 0.0
  %77 = vmatpush1.msra.mxu0 %v29
  %78 = vmatprep.subr.mxu0 0.0
  %79 = vmatpush1.msra.mxu0 %v30
  %80 = vmatprep.subr.mxu0 0.0
  %81 = vmatpush1.msra.mxu0 %v31
  %82 = vmatprep.subr.mxu0 0.0
  %83 = vmatpush1.msra.mxu0 %v32
  %84 = vmatprep.subr.mxu0 0.0
  %85 = vmatpush1.msra.mxu0 %v33
  %86 = vmatprep.subr.mxu0 0.0
  %87 = vmatpush1.msra.mxu0 %v34
  %88 = vmatprep.subr.mxu0 0.0
  %89 = vmatpush1.msra.mxu0 %v35
  %90 = vmatprep.subr.mxu0 0.0
  %91 = vmatpush1.msra.mxu0 %v36
  %92 = vmatprep.subr.mxu0 0.0
  %93 = vmatpush1.msra.mxu0 %v37
  %94 = vmatprep.subr.mxu0 0.0
  %95 = vmatpush1.msra.mxu0 %v38
  %96 = vmatprep.subr.mxu0 0.0
  %97 = vmatpush1.msra.mxu0 %v39
  %98 = vmatprep.subr.mxu0 0.0
  %99 = vmatpush1.msra.mxu0 %v40
  %100 = vmatprep.subr.mxu0 0.0
  %101 = vmatpush1.msra.mxu0 %v41
  %102 = vmatprep.subr.mxu0 0.0
  %103 = vmatpush1.msra.mxu0 0.0
  %104 = vmatprep.subr.mxu0 0.0
  %105 = vmatpush1.msra.mxu0 0.0
  %106 = vmatprep.subr.mxu0 0.0
  %107 = vmatpush1.msra.mxu0 0.0
  %108 = vmatprep.subr.mxu0 0.0
  %109 = vmatpush1.msra.mxu0 0.0
  %110 = vmatprep.subr.mxu0 0.0
  %111 = vmatpush1.msra.mxu0 0.0
  %112 = vmatprep.subr.mxu0 0.0
  %113 = vmatpush1.msra.mxu0 0.0
  %114 = vmatprep.subr.mxu0 0.0
  %115 = vmatpush1.msra.mxu0 0.0
  %116 = vmatprep.subr.mxu0 0.0
  %117 = vmatpush1.msra.mxu0 0.0
  %118 = vmatprep.subr.mxu0 0.0
  %119 = vmatpush1.msra.mxu0 0.0
  %120 = vmatprep.subr.mxu0 0.0
  %121 = vmatpush1.msra.mxu0 0.0
  %122 = vmatprep.subr.mxu0 0.0
  %123 = vmatpush1.msra.mxu0 0.0
  %124 = vmatprep.subr.mxu0 0.0
  %125 = vmatpush1.msra.mxu0 0.0
  %126 = vmatprep.mubr.f32.mxu0 %v51
  %127 = vmatmul.mubr.f32.gmra.mrb[0].mxu0 %v14
  %v128 = vpop.f32.mrb[0].mxu0
  %v129 = vadd.f32 %v47, %v128
  %v130 = vpop.f32.mrb[0].mxu0
  %131 = vmatprep.mubr.f32.mxu0 %v54
  %132 = vmatmul.mubr.f32.gmra.mrb[0].mxu0 %v16
  %v133 = vpop.f32.mrb[0].mxu0
  %v134 = vadd.f32 %v47, %v133
  %v135 = vpop.f32.mrb[0].mxu0
  %136 = vmatprep.mubr.f32.mxu0 %v57
  %137 = vmatmul.mubr.f32.gmra.mrb[0].mxu0 %v18
  %v138 = vpop.f32.mrb[0].mxu0
  %v139 = vadd.f32 %v47, %v138
  %v140 = vpop.f32.mrb[0].mxu0
  %141 = vmatprep.mubr.f32.mxu0 %v60
  %142 = vmatmul.mubr.f32.gmra.mrb[0].mxu0 %v20
  %v143 = vpop.f32.mrb[0].mxu0
  %v144 = vadd.f32 %v47, %v143
  %v145 = vpop.f32.mrb[0].mxu0
  %146 = vdwg.mxu0
  %v147 = vxor.u32 %v129, 2147483648
  %v148 = vxor.u32 %v134, 2147483648
  %v149 = vxor.u32 %v139, 2147483648
  %v150 = vxor.u32 %v144, 2147483648
  %v151 = vmul.f32 %v147, 1.442695
  %v152 = vpow.pop %v151
  %v153 = vmul.f32 %v148, 1.442695
  %v154 = vpow.pop %v153
  %v155 = vmul.f32 %v149, 1.442695
  %v156 = vpow.pop %v155
  %v157 = vmul.f32 %v150, 1.442695
  %v158 = vpow.pop %v157
  %v159 = vadd.f32 %v152, 1.0
  %v160 = vadd.f32 %v154, 1.0
  %v161 = vadd.f32 %v156, 1.0
  %v162 = vadd.f32 %v158, 1.0
  %v163 = vrcp.pop %v159
  %v164 = vmul.f32 1.0, %v163
  %v165 = vrcp.pop %v160
  %v166 = vmul.f32 1.0, %v165
  %v167 = vrcp.pop %v161
  %v168 = vmul.f32 1.0, %v167
  %v169 = vrcp.pop %v162
  %v170 = vmul.f32 1.0, %v169
  %vm171 = vcmask 31744
  %172 = vst.msk [vmem:[%s3] sm:$0xff] %vm171, %v164
  %173 = vst.msk [vmem:[%s3 + $0x8] sm:$0xff] %vm171, %v166
  %174 = vst.msk [vmem:[%s3 + $0x10] sm:$0xff] %vm171, %v168
  %175 = vst.msk [vmem:[%s3 + $0x18] sm:$0xff] %vm171, %v170
  // Predicated region
  $region14: #{vae_forward.13} parent=0 // pred_check
    _
  $region15: #{vae_forward.13} parent=0 // pred_check_branch
    %177 = sbr.rel (0) target = $region17
  $region16: #{vae_forward.13} parent=0 // pred_region
    _
  $region17: #{vae_forward.13} parent=0 // pred_fallthru
    _
  // Predicated region
  $region18: #{vae_forward.13} parent=0 // pred_check
    _
  $region19: #{vae_forward.13} parent=0 // pred_check_branch
    %179 = sbr.rel (0) target = $region21
  $region20: #{vae_forward.13} parent=0 // pred_region
    _
  $region21: #{vae_forward.13} parent=0 // pred_fallthru
    _

</llo_original>
